<compile_context>
chip_gen: v7x
topology: tpu7x:2x2x1
jax: 0.10.0
libtpu: 0.0.40
codegen_flags: <defaults>
</compile_context>

<pallas_src>
import functools

import jax
import jax.numpy as jnp
import numpy as np
from jax import lax
from jax.experimental import pallas as pl
from jax.experimental.pallas import tpu as pltpu


def attnmil5_kernel(x_ref, w1_ref, wvu_ref, bvu_ref, ww_ref, bw_ref,
                    wc_ref, bc_ref, ws_ref, bs_ref,
                    outputs_ref, slide_ref, aout_ref,
                    m_scr, l_scr, acc_scr,
                    *, n_patch, compute_dtype):
    step = pl.program_id(0)
    last = pl.num_programs(0) - 1
    tile_n = x_ref.shape[0]
    d_attn = wvu_ref.shape[1] // 2

    @pl.when(step == 0)
    def _init():
        m_scr[...] = jnp.full(m_scr.shape, -jnp.inf, jnp.float32)
        l_scr[...] = jnp.zeros(l_scr.shape, jnp.float32)
        acc_scr[...] = jnp.zeros(acc_scr.shape, jnp.float32)

    def process(mask_tail):
        # In-kernel cast: bf16 operands feed the MXU at native rate on v5e/v6e/v7x
        # without a separate wrapper-side astype pass over the bag in HBM.
        x = x_ref[...].astype(compute_dtype)

        # --- DimReduction: Linear(feat_d -> d_inner, bias=False) + ReLU ------------
        med = jnp.maximum(
            jnp.dot(x, w1_ref[...], preferred_element_type=jnp.float32), 0.0)
        if mask_tail:
            # Ragged tail handled in-kernel (no wrapper jnp.pad).  OOB rows of the
            # boundary block contain unspecified data; zero them so garbage/NaN can't
            # reach the accumulator through 0*NaN in the p@med matmul below.
            row = (lax.broadcasted_iota(jnp.int32, (med.shape[0], 1), 0)
                   + step * tile_n)
            med = jnp.where(row < n_patch, med, 0.0)
        med = med.astype(compute_dtype)                              # (TILE_N, d_inner)

        # --- Attention_Gated: V|U projections fused in one matmul ------------------
        vu = jnp.dot(med, wvu_ref[...],
                     preferred_element_type=jnp.float32) + bvu_ref[...]  # (TILE_N, 2D)
        gate = (jnp.tanh(vu[:, :d_attn]) *
                jax.nn.sigmoid(vu[:, d_attn:])).astype(compute_dtype)    # (TILE_N, D)

        # --- attention scores directly in (K, TILE_N) layout (lane-dense store) ----
        s_kn = lax.dot_general(ww_ref[...], gate, (((0,), (1,)), ((), ())),
                               preferred_element_type=jnp.float32) + bw_ref[...]
        if mask_tail:
            col = (lax.broadcasted_iota(jnp.int32, (1, s_kn.shape[1]), 1)
                   + step * tile_n)
            s_kn = jnp.where(col < n_patch, s_kn, -1e9)

        # TODO(synk): n_masked_patch>0 training-time random top-k masking (torch.rand
        # + argsort + scatter_) is skipped; kernel implements is_train=False semantics.
        aout_ref[...] = s_kn          # raw A (pre-softmax); OOB columns clipped on store

        # --- online softmax over patches + attention pooling (flash-style) ---------
        m_prev = m_scr[...]
        m_new = jnp.maximum(m_prev, jnp.max(s_kn, axis=-1, keepdims=True))
        alpha = jnp.exp(m_prev - m_new)
        p = jnp.exp(s_kn - m_new)                                        # (K, TILE_N)
        l_scr[...] = alpha * l_scr[...] + jnp.sum(p, axis=-1, keepdims=True)
        acc_scr[...] = alpha * acc_scr[...] + jnp.dot(
            p.astype(compute_dtype), med, preferred_element_type=jnp.float32)
        m_scr[...] = m_new

    if n_patch % tile_n:                 # static: the grid has a ragged last tile
        @pl.when(step != last)           # full tiles pay no masking cost
        def _full():
            process(mask_tail=False)

        @pl.when(step == last)           # only the last tile masks rows/columns
        def _tail():
            process(mask_tail=True)
    else:
        process(mask_tail=False)

    @pl.when(step == last)
    def _finalize():
        afeat = acc_scr[...] * pl.reciprocal(l_scr[...], approx=False)   # (K, d_inner)
        # per-token classifiers fused: outputs[k] = afeat[k] @ wc[k].T + bc[k]
        outputs_ref[...] = (
            jnp.sum(afeat[:, None, :] * wc_ref[...], axis=-1) + bc_ref[...])
        slide = jnp.dot(afeat, ws_ref[...],
                        preferred_element_type=jnp.float32) + bs_ref[...]
        slide_ref[...] = jnp.max(slide, axis=0, keepdims=True)


def attnmil5_forward(x, params, *, tile_n=512, compute_dtype=jnp.bfloat16):
    """x: (1, N, feat_d). Returns (outputs (K, n_class), slide (1, n_class),
    A_out (1, K, N)) matching the PyTorch module with is_train=False.

    tile_n: sweep 512-1024.  Per-step DMA of the x tile (tile_n * feat_d) dominates;
    larger tiles amortize the ~0.35 us per-step overhead and keep the store of the
    (K, tile_n) score slab lane-dense.  Double-buffered x + weights + intermediates
    stay well under the 32 MiB scoped VMEM limit on all of v5e/v6e/v7x.
    compute_dtype: bf16 operands (f32 accumulation) on all generations; pass
    jnp.float32 for a bit-exact-ish path.
    """
    xb = x[0]
    n_patch, feat_d = xb.shape
    n_token = params["wc"].shape[0]
    n_class = params["wc"].shape[2]
    d_inner = params["w1"].shape[1]
    d_attn = params["wv"].shape[1]

    grid = (pl.cdiv(n_patch, tile_n),)   # ragged tail is masked in-kernel (no jnp.pad)

    cd = compute_dtype
    # fuse V|U gate weights; biases stay f32 (added after f32-accumulated matmuls)
    wvu = jnp.concatenate([params["wv"], params["wu"]], axis=1).astype(cd)
    bvu = jnp.concatenate([params["bv"], params["bu"]], axis=1).astype(jnp.float32)
    bw_k1 = params["bw"].T.astype(jnp.float32)                      # (K, 1)
    wc_kcd = jnp.swapaxes(params["wc"], 1, 2).astype(jnp.float32)   # (K, n_class, d_inner)

    # x stays in its HBM dtype; the compute-dtype cast happens in-kernel on the tile.
    args = (xb, params["w1"].astype(cd), wvu, bvu,
            params["ww"].astype(cd), bw_k1,
            wc_kcd, params["bc"].astype(jnp.float32),
            params["ws"].astype(jnp.float32), params["bs"].astype(jnp.float32))

    flops = int(2 * n_patch * (feat_d * d_inner + d_inner * 2 * d_attn
                               + d_attn * n_token + n_token * d_inner))
    transcendentals = int(n_patch * (2 * d_attn + 2 * n_token))
    bytes_accessed = int(sum(int(np.prod(a.shape)) * a.dtype.itemsize for a in args)
                         + (n_token * n_patch + n_token * n_class + n_class) * 4)

    kernel = functools.partial(attnmil5_kernel, n_patch=n_patch, compute_dtype=cd)

    outputs, slide, aout = pl.pallas_call(
        kernel,
        out_shape=(
            jax.ShapeDtypeStruct((n_token, n_class), jnp.float32),
            jax.ShapeDtypeStruct((1, n_class), jnp.float32),
            jax.ShapeDtypeStruct((n_token, n_patch), jnp.float32),
        ),
        grid_spec=pltpu.PrefetchScalarGridSpec(
            num_scalar_prefetch=0,
            grid=grid,
            in_specs=[
                pl.BlockSpec((tile_n, feat_d), lambda n: (n, 0)),          # x tile
                pl.BlockSpec((feat_d, d_inner), lambda n: (0, 0)),         # w1
                pl.BlockSpec((d_inner, 2 * d_attn), lambda n: (0, 0)),     # wv|wu
                pl.BlockSpec((1, 2 * d_attn), lambda n: (0, 0)),           # bv|bu
                pl.BlockSpec((d_attn, n_token), lambda n: (0, 0)),         # ww
                pl.BlockSpec((n_token, 1), lambda n: (0, 0)),              # bw
                pl.BlockSpec((n_token, n_class, d_inner), lambda n: (0, 0, 0)),  # wc
                pl.BlockSpec((n_token, n_class), lambda n: (0, 0)),        # bc
                pl.BlockSpec((d_inner, n_class), lambda n: (0, 0)),        # ws
                pl.BlockSpec((1, n_class), lambda n: (0, 0)),              # bs
            ],
            out_specs=(
                pl.BlockSpec((n_token, n_class), lambda n: (0, 0)),        # outputs
                pl.BlockSpec((1, n_class), lambda n: (0, 0)),              # slide
                pl.BlockSpec((n_token, tile_n), lambda n: (0, n)),         # A_out tiles
            ),
            scratch_shapes=[
                pltpu.VMEM((n_token, 1), jnp.float32),        # running max
                pltpu.VMEM((n_token, 1), jnp.float32),        # running denominator
                pltpu.VMEM((n_token, d_inner), jnp.float32),  # running pooled feature
            ],
        ),
        compiler_params=pltpu.CompilerParams(
            dimension_semantics=("arbitrary",),
            # explicit limit: v5e default scoped VMEM is only 16 MiB; 32 MiB is still
            # conservative w.r.t. v7x's 64 MiB physical VMEM.
            vmem_limit_bytes=32 * 1024 * 1024,
        ),
        cost_estimate=pl.CostEstimate(flops=flops, transcendentals=transcendentals,
                                      bytes_accessed=bytes_accessed),
    )(*args)

    return outputs, slide, aout[None]


def init_params(key, feat_d, d_inner, d_attn, n_token, n_class):
    ks = jax.random.split(key, 11)

    def lin(k, fan_in, shape):
        bound = 1.0 / np.sqrt(fan_in)
        return jax.random.uniform(k, shape, jnp.float32, -bound, bound)

    return dict(
        w1=lin(ks[0], feat_d, (feat_d, d_inner)),              # DimReduction (no bias)
        wv=lin(ks[1], d_inner, (d_inner, d_attn)),
        bv=lin(ks[2], d_inner, (1, d_attn)),
        wu=lin(ks[3], d_inner, (d_inner, d_attn)),
        bu=lin(ks[4], d_inner, (1, d_attn)),
        ww=lin(ks[5], d_attn, (d_attn, n_token)),
        bw=lin(ks[6], d_attn, (1, n_token)),
        wc=lin(ks[7], d_inner, (n_token, d_inner, n_class)),   # per-token classifiers
        bc=lin(ks[8], d_inner, (n_token, n_class)),
        ws=lin(ks[9], d_inner, (d_inner, n_class)),            # Slide_classifier
        bs=lin(ks[10], d_inner, (1, n_class)),
    )


def ref_forward(x, p):
    """Pure-JAX reference mirroring the PyTorch forward (is_train=False)."""
    xb = x[0]
    med = jax.nn.relu(xb @ p["w1"])
    av = jnp.tanh(med @ p["wv"] + p["bv"])
    au = jax.nn.sigmoid(med @ p["wu"] + p["bu"])
    a = ((av * au) @ p["ww"] + p["bw"]).T
    a_soft = jax.nn.softmax(a, axis=1)
    afeat = a_soft @ med
    n_token = p["wc"].shape[0]
    outputs = jnp.stack([afeat[k] @ p["wc"][k] + p["bc"][k] for k in range(n_token)])
    slide = jnp.max(afeat @ p["ws"] + p["bs"], axis=0, keepdims=True)
    return outputs, slide, a[None]


if __name__ == "__main__":
    # conf: feat_d=256, D_inner=128, attention D=128, n_token=2, n_class=4
    feat_d, d_inner, d_attn, n_token, n_class = 256, 128, 128, 2, 4

    key = jax.random.PRNGKey(0)
    kx, kp = jax.random.split(key)
    params = init_params(kp, feat_d, d_inner, d_attn, n_token, n_class)

    cases = (
        # (n_patch, tile_n, compute_dtype, rtol, atol)
        (1024, 512, jnp.float32, 2e-2, 2e-3),        # evenly tiled, f32 operands
        (1500, 512, jnp.bfloat16, 1.5e-1, 1.5e-1),   # ragged tail, bf16 MXU operands
        (500,  512, jnp.bfloat16, 1.5e-1, 1.5e-1),   # single ragged block (N < tile_n)
    )
    for n_patch, tn, cdt, rtol, atol in cases:
        x = jax.random.normal(kx, (1, n_patch, feat_d), jnp.float32)
        outputs, slide, a_out = jax.block_until_ready(
            attnmil5_forward(x, params, tile_n=tn, compute_dtype=cdt))

        ref_outputs, ref_slide, ref_a = ref_forward(x, params)
        np.testing.assert_allclose(np.asarray(outputs), np.asarray(ref_outputs),
                                   rtol=rtol, atol=atol)
        np.testing.assert_allclose(np.asarray(slide), np.asarray(ref_slide),
                                   rtol=rtol, atol=atol)
        np.testing.assert_allclose(np.asarray(a_out), np.asarray(ref_a),
                                   rtol=rtol, atol=atol)

        assert outputs.shape == (n_token, n_class)
        assert slide.shape == (1, n_class)
        assert a_out.shape == (1, n_token, n_patch)

    print("KERNEL_OK")
</pallas_src>

<mosaic_0001>
module attributes {stable_mosaic.version = 11 : i64} {
  func.func @attnmil5_kernel(%arg0: i32, %arg1: memref<512x256xf32, #tpu.memory_space<vmem>>, %arg2: memref<256x128xf32, #tpu.memory_space<vmem>>, %arg3: memref<128x256xf32, #tpu.memory_space<vmem>>, %arg4: memref<1x256xf32, #tpu.memory_space<vmem>>, %arg5: memref<128x2xf32, #tpu.memory_space<vmem>>, %arg6: memref<2x1xf32, #tpu.memory_space<vmem>>, %arg7: memref<2x4x128xf32, #tpu.memory_space<vmem>>, %arg8: memref<2x4xf32, #tpu.memory_space<vmem>>, %arg9: memref<128x4xf32, #tpu.memory_space<vmem>>, %arg10: memref<1x4xf32, #tpu.memory_space<vmem>>, %arg11: memref<2x4xf32, #tpu.memory_space<vmem>>, %arg12: memref<1x4xf32, #tpu.memory_space<vmem>>, %arg13: memref<2x512xf32, #tpu.memory_space<vmem>>, %arg14: memref<2x1xf32, #tpu.memory_space<vmem>>, %arg15: memref<2x1xf32, #tpu.memory_space<vmem>>, %arg16: memref<2x128xf32, #tpu.memory_space<vmem>>) attributes {dimension_semantics = [#tpu.dimension_semantics<arbitrary>], iteration_bounds = array<i64: 2>, scalar_prefetch = 0 : i64, scratch_operands = 3 : i64, tpu.core_type = #tpu.core_type<tc>, window_params = [{transform_indices = @transform_0, window_bounds = array<i64: 512, 256>}, {pipeline_mode = #tpu.pipeline_mode<synchronous>, transform_indices = @transform_1, window_bounds = array<i64: 256, 128>}, {pipeline_mode = #tpu.pipeline_mode<synchronous>, transform_indices = @transform_2, window_bounds = array<i64: 128, 256>}, {pipeline_mode = #tpu.pipeline_mode<synchronous>, transform_indices = @transform_3, window_bounds = array<i64: 1, 256>}, {pipeline_mode = #tpu.pipeline_mode<synchronous>, transform_indices = @transform_4, window_bounds = array<i64: 128, 2>}, {pipeline_mode = #tpu.pipeline_mode<synchronous>, transform_indices = @transform_5, window_bounds = array<i64: 2, 1>}, {pipeline_mode = #tpu.pipeline_mode<synchronous>, transform_indices = @transform_6, window_bounds = array<i64: 2, 4, 128>}, {pipeline_mode = #tpu.pipeline_mode<synchronous>, transform_indices = @transform_7, window_bounds = array<i64: 2, 4>}, {pipeline_mode = #tpu.pipeline_mode<synchronous>, transform_indices = @transform_8, window_bounds = array<i64: 128, 4>}, {pipeline_mode = #tpu.pipeline_mode<synchronous>, transform_indices = @transform_9, window_bounds = array<i64: 1, 4>}, {pipeline_mode = #tpu.pipeline_mode<synchronous>, transform_indices = @transform_10, window_bounds = array<i64: 2, 4>}, {pipeline_mode = #tpu.pipeline_mode<synchronous>, transform_indices = @transform_11, window_bounds = array<i64: 1, 4>}, {transform_indices = @transform_12, window_bounds = array<i64: 2, 512>}]} {
    %c0_i32 = arith.constant 0 : i32
    %0 = arith.cmpi eq, %arg0, %c0_i32 : i32
    %1 = arith.extui %0 : i1 to i32
    %c0_i32_0 = arith.constant 0 : i32
    %2 = arith.cmpi ne, %1, %c0_i32_0 : i32
    scf.if %2 {
      %cst_34 = arith.constant 0xFF800000 : f32
      %53 = vector.broadcast %cst_34 : f32 to vector<2x1xf32>
      %c0_35 = arith.constant 0 : index
      %c0_36 = arith.constant 0 : index
      %54 = vector.load %arg14[%c0_35, %c0_36] : memref<2x1xf32, #tpu.memory_space<vmem>>, vector<2x1xf32>
      tpu.vector_store %arg14[%c0_35, %c0_36], %53 {strides = array<i32>} : memref<2x1xf32, #tpu.memory_space<vmem>>, vector<2x1xf32>,
      %cst_37 = arith.constant 0.000000e+00 : f32
      %55 = vector.broadcast %cst_37 : f32 to vector<2x1xf32>
      %c0_38 = arith.constant 0 : index
      %c0_39 = arith.constant 0 : index
      %56 = vector.load %arg15[%c0_38, %c0_39] : memref<2x1xf32, #tpu.memory_space<vmem>>, vector<2x1xf32>
      tpu.vector_store %arg15[%c0_38, %c0_39], %55 {strides = array<i32>} : memref<2x1xf32, #tpu.memory_space<vmem>>, vector<2x1xf32>,
      %cst_40 = arith.constant 0.000000e+00 : f32
      %57 = vector.broadcast %cst_40 : f32 to vector<2x128xf32>
      %c0_41 = arith.constant 0 : index
      %c0_42 = arith.constant 0 : index
      %58 = vector.load %arg16[%c0_41, %c0_42] : memref<2x128xf32, #tpu.memory_space<vmem>>, vector<2x128xf32>
      tpu.vector_store %arg16[%c0_41, %c0_42], %57 {strides = array<i32>} : memref<2x128xf32, #tpu.memory_space<vmem>>, vector<2x128xf32>,
    } else {
    }
    %c0 = arith.constant 0 : index
    %c0_1 = arith.constant 0 : index
    %3 = vector.load %arg1[%c0, %c0_1] : memref<512x256xf32, #tpu.memory_space<vmem>>, vector<512x256xf32>
    %c0_2 = arith.constant 0 : index
    %c0_3 = arith.constant 0 : index
    %4 = vector.load %arg2[%c0_2, %c0_3] : memref<256x128xf32, #tpu.memory_space<vmem>>, vector<256x128xf32>
    %cst = arith.constant dense<0.000000e+00> : vector<512x128xf32>
    %5 = tpu.matmul %3, %4, %cst {dimension_numbers = #tpu.dot_dimension_numbers<[1], [0], [0], [1], [0, 0, 1, 1], [], []>} : vector<512x256xf32>, vector<256x128xf32>, vector<512x128xf32> -> vector<512x128xf32>
    %cst_4 = arith.constant 0.000000e+00 : f32
    %6 = vector.broadcast %cst_4 : f32 to vector<512x128xf32>
    %7 = arith.maximumf %5, %6 : vector<512x128xf32>
    %c0_5 = arith.constant 0 : index
    %c0_6 = arith.constant 0 : index
    %8 = vector.load %arg3[%c0_5, %c0_6] : memref<128x256xf32, #tpu.memory_space<vmem>>, vector<128x256xf32>
    %cst_7 = arith.constant dense<0.000000e+00> : vector<512x256xf32>
    %9 = tpu.matmul %7, %8, %cst_7 {dimension_numbers = #tpu.dot_dimension_numbers<[1], [0], [0], [1], [0, 0, 1, 1], [], []>} : vector<512x128xf32>, vector<128x256xf32>, vector<512x256xf32> -> vector<512x256xf32>
    %c0_8 = arith.constant 0 : index
    %c0_9 = arith.constant 0 : index
    %10 = vector.load %arg4[%c0_8, %c0_9] : memref<1x256xf32, #tpu.memory_space<vmem>>, vector<1x256xf32>
    %11 = vector.broadcast %10 : vector<1x256xf32> to vector<512x256xf32>
    %12 = arith.addf %9, %11 : vector<512x256xf32>
    %13 = vector.extract_strided_slice %12 {offsets = [0, 0], sizes = [512, 128], strides = [1, 1]} : vector<512x256xf32> to vector<512x128xf32>
    %14 = math.tanh %13 : vector<512x128xf32>
    %15 = vector.extract_strided_slice %12 {offsets = [0, 128], sizes = [512, 128], strides = [1, 1]} : vector<512x256xf32> to vector<512x128xf32>
    %16 = arith.negf %15 : vector<512x128xf32>
    %17 = math.exp %16 : vector<512x128xf32>
    %cst_10 = arith.constant 1.000000e+00 : f32
    %18 = vector.broadcast %cst_10 : f32 to vector<512x128xf32>
    %19 = arith.addf %18, %17 : vector<512x128xf32>
    %20 = arith.divf %18, %19 : vector<512x128xf32>
    %21 = arith.mulf %14, %20 : vector<512x128xf32>
    %c0_11 = arith.constant 0 : index
    %c0_12 = arith.constant 0 : index
    %22 = vector.load %arg5[%c0_11, %c0_12] : memref<128x2xf32, #tpu.memory_space<vmem>>, vector<128x2xf32>
    %cst_13 = arith.constant dense<0.000000e+00> : vector<2x512xf32>
    %23 = tpu.matmul %22, %21, %cst_13 {dimension_numbers = #tpu.dot_dimension_numbers<[0], [1], [1], [0], [0, 1, 1, 0], [], []>} : vector<128x2xf32>, vector<512x128xf32>, vector<2x512xf32> -> vector<2x512xf32>
    %c0_14 = arith.constant 0 : index
    %c0_15 = arith.constant 0 : index
    %24 = vector.load %arg6[%c0_14, %c0_15] : memref<2x1xf32, #tpu.memory_space<vmem>>, vector<2x1xf32>
    %25 = vector.broadcast %24 : vector<2x1xf32> to vector<2x512xf32>
    %26 = arith.addf %23, %25 : vector<2x512xf32>
    %c0_16 = arith.constant 0 : index
    %c0_17 = arith.constant 0 : index
    %27 = vector.load %arg13[%c0_16, %c0_17] : memref<2x512xf32, #tpu.memory_space<vmem>>, vector<2x512xf32>
    tpu.vector_store %arg13[%c0_16, %c0_17], %26 {strides = array<i32>} : memref<2x512xf32, #tpu.memory_space<vmem>>, vector<2x512xf32>,
    %c0_18 = arith.constant 0 : index
    %c0_19 = arith.constant 0 : index
    %28 = vector.load %arg14[%c0_18, %c0_19] : memref<2x1xf32, #tpu.memory_space<vmem>>, vector<2x1xf32>
    %cst_20 = arith.constant dense<0xFF800000> : vector<2xf32>
    %29 = vector.multi_reduction <maximumf>, %26, %cst_20 [1] : vector<2x512xf32> to vector<2xf32>
    %30 = vector.shape_cast %29 : vector<2xf32> to vector<2x1xf32>
    %31 = arith.maximumf %28, %30 : vector<2x1xf32>
    %32 = arith.subf %28, %31 : vector<2x1xf32>
    %33 = math.exp %32 : vector<2x1xf32>
    %34 = vector.broadcast %31 : vector<2x1xf32> to vector<2x512xf32>
    %35 = arith.subf %26, %34 : vector<2x512xf32>
    %36 = math.exp %35 : vector<2x512xf32>
    %c0_21 = arith.constant 0 : index
    %c0_22 = arith.constant 0 : index
    %37 = vector.load %arg15[%c0_21, %c0_22] : memref<2x1xf32, #tpu.memory_space<vmem>>, vector<2x1xf32>
    %38 = arith.mulf %33, %37 : vector<2x1xf32>
    %cst_23 = arith.constant dense<0.000000e+00> : vector<2xf32>
    %39 = vector.multi_reduction <add>, %36, %cst_23 [1] : vector<2x512xf32> to vector<2xf32>
    %40 = vector.shape_cast %39 : vector<2xf32> to vector<2x1xf32>
    %41 = arith.addf %38, %40 : vector<2x1xf32>
    %c0_24 = arith.constant 0 : index
    %c0_25 = arith.constant 0 : index
    %42 = vector.load %arg15[%c0_24, %c0_25] : memref<2x1xf32, #tpu.memory_space<vmem>>, vector<2x1xf32>
    tpu.vector_store %arg15[%c0_24, %c0_25], %41 {strides = array<i32>} : memref<2x1xf32, #tpu.memory_space<vmem>>, vector<2x1xf32>,
    %c0_26 = arith.constant 0 : index
    %c0_27 = arith.constant 0 : index
    %43 = vector.load %arg16[%c0_26, %c0_27] : memref<2x128xf32, #tpu.memory_space<vmem>>, vector<2x128xf32>
    %44 = vector.broadcast %33 : vector<2x1xf32> to vector<2x128xf32>
    %45 = arith.mulf %44, %43 : vector<2x128xf32>
    %cst_28 = arith.constant dense<0.000000e+00> : vector<2x128xf32>
    %46 = tpu.matmul %36, %7, %cst_28 {dimension_numbers = #tpu.dot_dimension_numbers<[1], [0], [0], [1], [0, 0, 1, 1], [], []>} : vector<2x512xf32>, vector<512x128xf32>, vector<2x128xf32> -> vector<2x128xf32>
    %47 = arith.addf %45, %46 : vector<2x128xf32>
    %c0_29 = arith.constant 0 : index
    %c0_30 = arith.constant 0 : index
    %48 = vector.load %arg16[%c0_29, %c0_30] : memref<2x128xf32, #tpu.memory_space<vmem>>, vector<2x128xf32>
    tpu.vector_store %arg16[%c0_29, %c0_30], %47 {strides = array<i32>} : memref<2x128xf32, #tpu.memory_space<vmem>>, vector<2x128xf32>,
    %c0_31 = arith.constant 0 : index
    %c0_32 = arith.constant 0 : index
    %49 = vector.load %arg14[%c0_31, %c0_32] : memref<2x1xf32, #tpu.memory_space<vmem>>, vector<2x1xf32>
    tpu.vector_store %arg14[%c0_31, %c0_32], %31 {strides = array<i32>} : memref<2x1xf32, #tpu.memory_space<vmem>>, vector<2x1xf32>,
    %c1_i32 = arith.constant 1 : i32
    %50 = arith.cmpi eq, %arg0, %c1_i32 : i32
    %51 = arith.extui %50 : i1 to i32
    %c0_i32_33 = arith.constant 0 : i32
    %52 = arith.cmpi ne, %51, %c0_i32_33 : i32
    scf.if %52 {
      %c0_34 = arith.constant 0 : index
      %c0_35 = arith.constant 0 : index
      %53 = vector.load %arg16[%c0_34, %c0_35] : memref<2x128xf32, #tpu.memory_space<vmem>>, vector<2x128xf32>
      %c0_36 = arith.constant 0 : index
      %c0_37 = arith.constant 0 : index
      %54 = vector.load %arg15[%c0_36, %c0_37] : memref<2x1xf32, #tpu.memory_space<vmem>>, vector<2x1xf32>
      %55 = tpu.reciprocal %54 : vector<2x1xf32> -> vector<2x1xf32>
      %56 = vector.broadcast %55 : vector<2x1xf32> to vector<2x128xf32>
      %57 = arith.mulf %53, %56 : vector<2x128xf32>
      %58 = vector.shape_cast %57 : vector<2x128xf32> to vector<2x1x128xf32>
      %c0_38 = arith.constant 0 : index
      %c0_39 = arith.constant 0 : index
      %c0_40 = arith.constant 0 : index
      %59 = vector.load %arg7[%c0_38, %c0_39, %c0_40] : memref<2x4x128xf32, #tpu.memory_space<vmem>>, vector<2x4x128xf32>
      %60 = vector.broadcast %58 : vector<2x1x128xf32> to vector<2x4x128xf32>
      %61 = arith.mulf %60, %59 : vector<2x4x128xf32>
      %cst_41 = arith.constant dense<0.000000e+00> : vector<2x4xf32>
      %62 = vector.multi_reduction <add>, %61, %cst_41 [2] : vector<2x4x128xf32> to vector<2x4xf32>
      %c0_42 = arith.constant 0 : index
      %c0_43 = arith.constant 0 : index
      %63 = vector.load %arg8[%c0_42, %c0_43] : memref<2x4xf32, #tpu.memory_space<vmem>>, vector<2x4xf32>
      %64 = arith.addf %62, %63 : vector<2x4xf32>
      %c0_44 = arith.constant 0 : index
      %c0_45 = arith.constant 0 : index
      %65 = vector.load %arg11[%c0_44, %c0_45] : memref<2x4xf32, #tpu.memory_space<vmem>>, vector<2x4xf32>
      tpu.vector_store %arg11[%c0_44, %c0_45], %64 {strides = array<i32>} : memref<2x4xf32, #tpu.memory_space<vmem>>, vector<2x4xf32>,
      %c0_46 = arith.constant 0 : index
      %c0_47 = arith.constant 0 : index
      %66 = vector.load %arg9[%c0_46, %c0_47] : memref<128x4xf32, #tpu.memory_space<vmem>>, vector<128x4xf32>
      %cst_48 = arith.constant dense<0.000000e+00> : vector<2x4xf32>
      %67 = tpu.matmul %57, %66, %cst_48 {dimension_numbers = #tpu.dot_dimension_numbers<[1], [0], [0], [1], [0, 0, 1, 1], [], []>} : vector<2x128xf32>, vector<128x4xf32>, vector<2x4xf32> -> vector<2x4xf32>
      %c0_49 = arith.constant 0 : index
      %c0_50 = arith.constant 0 : index
      %68 = vector.load %arg10[%c0_49, %c0_50] : memref<1x4xf32, #tpu.memory_space<vmem>>, vector<1x4xf32>
      %69 = vector.broadcast %68 : vector<1x4xf32> to vector<2x4xf32>
      %70 = arith.addf %67, %69 : vector<2x4xf32>
      %cst_51 = arith.constant dense<0xFF800000> : vector<4xf32>
      %71 = vector.multi_reduction <maximumf>, %70, %cst_51 [0] : vector<2x4xf32> to vector<4xf32>
      %72 = vector.shape_cast %71 : vector<4xf32> to vector<1x4xf32>
      %c0_52 = arith.constant 0 : index
      %c0_53 = arith.constant 0 : index
      %73 = vector.load %arg12[%c0_52, %c0_53] : memref<1x4xf32, #tpu.memory_space<vmem>>, vector<1x4xf32>
      tpu.vector_store %arg12[%c0_52, %c0_53], %72 {strides = array<i32>} : memref<1x4xf32, #tpu.memory_space<vmem>>, vector<1x4xf32>,
    } else {
    }
    return
  }
  func.func @transform_0(%arg0: i32) -> (i32, i32) {
    %c0_i32 = arith.constant 0 : i32
    %c0_i32_0 = arith.constant 0 : i32
    return %arg0, %c0_i32 : i32, i32
  }
  func.func @transform_1(%arg0: i32) -> (i32, i32) {
    %c0_i32 = arith.constant 0 : i32
    %c0_i32_0 = arith.constant 0 : i32
    %c0_i32_1 = arith.constant 0 : i32
    return %c0_i32, %c0_i32_0 : i32, i32
  }
  func.func @transform_2(%arg0: i32) -> (i32, i32) {
    %c0_i32 = arith.constant 0 : i32
    %c0_i32_0 = arith.constant 0 : i32
    %c0_i32_1 = arith.constant 0 : i32
    return %c0_i32, %c0_i32_0 : i32, i32
  }
  func.func @transform_3(%arg0: i32) -> (i32, i32) {
    %c0_i32 = arith.constant 0 : i32
    %c0_i32_0 = arith.constant 0 : i32
    %c0_i32_1 = arith.constant 0 : i32
    return %c0_i32, %c0_i32_0 : i32, i32
  }
  func.func @transform_4(%arg0: i32) -> (i32, i32) {
    %c0_i32 = arith.constant 0 : i32
    %c0_i32_0 = arith.constant 0 : i32
    %c0_i32_1 = arith.constant 0 : i32
    return %c0_i32, %c0_i32_0 : i32, i32
  }
  func.func @transform_5(%arg0: i32) -> (i32, i32) {
    %c0_i32 = arith.constant 0 : i32
    %c0_i32_0 = arith.constant 0 : i32
    %c0_i32_1 = arith.constant 0 : i32
    return %c0_i32, %c0_i32_0 : i32, i32
  }
  func.func @transform_6(%arg0: i32) -> (i32, i32, i32) {
    %c0_i32 = arith.constant 0 : i32
    %c0_i32_0 = arith.constant 0 : i32
    %c0_i32_1 = arith.constant 0 : i32
    %c0_i32_2 = arith.constant 0 : i32
    return %c0_i32, %c0_i32_0, %c0_i32_1 : i32, i32, i32
  }
  func.func @transform_7(%arg0: i32) -> (i32, i32) {
    %c0_i32 = arith.constant 0 : i32
    %c0_i32_0 = arith.constant 0 : i32
    %c0_i32_1 = arith.constant 0 : i32
    return %c0_i32, %c0_i32_0 : i32, i32
  }
  func.func @transform_8(%arg0: i32) -> (i32, i32) {
    %c0_i32 = arith.constant 0 : i32
    %c0_i32_0 = arith.constant 0 : i32
    %c0_i32_1 = arith.constant 0 : i32
    return %c0_i32, %c0_i32_0 : i32, i32
  }
  func.func @transform_9(%arg0: i32) -> (i32, i32) {
    %c0_i32 = arith.constant 0 : i32
    %c0_i32_0 = arith.constant 0 : i32
    %c0_i32_1 = arith.constant 0 : i32
    return %c0_i32, %c0_i32_0 : i32, i32
  }
  func.func @transform_10(%arg0: i32) -> (i32, i32) {
    %c0_i32 = arith.constant 0 : i32
    %c0_i32_0 = arith.constant 0 : i32
    %c0_i32_1 = arith.constant 0 : i32
    return %c0_i32, %c0_i32_0 : i32, i32
  }
  func.func @transform_11(%arg0: i32) -> (i32, i32) {
    %c0_i32 = arith.constant 0 : i32
    %c0_i32_0 = arith.constant 0 : i32
    %c0_i32_1 = arith.constant 0 : i32
    return %c0_i32, %c0_i32_0 : i32, i32
  }
  func.func @transform_12(%arg0: i32) -> (i32, i32) {
    %c0_i32 = arith.constant 0 : i32
    %c0_i32_0 = arith.constant 0 : i32
    return %c0_i32, %arg0 : i32, i32
  }
}

</mosaic_0001>

<llo_original>
// kernel: tpu_custom_call.1
$region0: #{tpu_custom_call.1}
  #allocation0 [shape = 'u32[]', space=smem, size = 0x4, offset = 0x4, fixed_abs, tag = 'smem constant byte address 0x4 - core index']
  #allocation1 [shape = 'u32[144,128]{1,0:T(1,128)}', space=vmem, size = 0x12000, scoped, tag = 'internal scratch']
  #allocation2 [shape = 'f32[2,1]{1,0:T(2,128)}', space=vmem, size = 0x400, scoped, tag = 'scratch operand']
  #allocation3 [shape = 'f32[2,1]{1,0:T(2,128)}', space=vmem, size = 0x400, scoped, tag = 'scratch operand']
  #allocation4 [shape = 'f32[2,128]{1,0:T(2,128)}', space=vmem, size = 0x400, scoped, tag = 'scratch operand']
  %s0 = inlined_call_operand.hbm [shape: f32[1024,256], index: 0, kind: input, shape index: {}]
  %s1 = inlined_call_operand.vmem [shape: f32[256,128], index: 1, kind: input, shape index: {}]
  %s2 = inlined_call_operand.hbm [shape: f32[128,256], index: 2, kind: input, shape index: {}]
  %s3 = inlined_call_operand.vmem [shape: f32[1,256], index: 3, kind: input, shape index: {}]
  %s4 = inlined_call_operand.vmem [shape: f32[128,2], index: 4, kind: input, shape index: {}]
  %s5 = inlined_call_operand.vmem [shape: f32[2,1], index: 5, kind: input, shape index: {}]
  %s6 = inlined_call_operand.vmem [shape: f32[2,4,128], index: 6, kind: input, shape index: {}]
  %s7 = inlined_call_operand.vmem [shape: f32[2,4], index: 7, kind: input, shape index: {}]
  %s8 = inlined_call_operand.vmem [shape: f32[128,4], index: 8, kind: input, shape index: {}]
  %s9 = inlined_call_operand.vmem [shape: f32[1,4], index: 9, kind: input, shape index: {}]
  %s10 = inlined_call_operand.hbm [shape: f32[2,4], index: 10, kind: output, shape index: {0}]
  %s11 = inlined_call_operand.hbm [shape: f32[1,4], index: 11, kind: output, shape index: {1}]
  %s12 = inlined_call_operand.hbm [shape: f32[2,1024], index: 12, kind: output, shape index: {2}]
  %13 = xla_tuple %s10, %s11, %s12
  %s14 = sld [smem:[#allocation0]]
  $region105: #{tpu_custom_call.1} parent=0
    _
  %s16 = ssub.s32 1, %s14
  %s17 = scalar_select 0, %s16, %s14
  $region1: #{tpu_custom_call.1} parent=0
    #allocation5 [shape = 'u8[1048576]{0}', space=vmem, size = 0x100000, scoped, tag = 'input window, operand 0']
    #allocation6 [shape = 's32[2]{0}', space=sflag, size = 0x8, scoped, tag = 'scoped memory for tpu_custom_call.1']
    #allocation7 [shape = 's32[2]{0}', space=sflag, size = 0x8, scoped, tag = 'scoped memory for tpu_custom_call.1']
    #allocation8 [shape = 'u8[131072]{0}', space=vmem, size = 0x20000, scoped, tag = 'input window, operand 2, single buffered']
    #allocation9 [shape = 's32[1]{0}', space=sflag, size = 0x4, scoped, tag = 'scoped memory for tpu_custom_call.1']
    #allocation10 [shape = 'u8[1024]{0}', space=vmem, size = 0x400, scoped, tag = 'output window, operand 0, single buffered']
    #allocation11 [shape = 'u8[512]{0}', space=vmem, size = 0x400, scoped, tag = 'output window, operand 1, single buffered']
    #allocation12 [shape = 's32[1]{0}', space=sflag, size = 0x4, scoped, tag = 'scoped memory for tpu_custom_call.1']
    #allocation13 [shape = 'u8[8192]{0}', space=vmem, size = 0x2000, scoped, tag = 'output window, operand 2']
    %18 = vsyncpa [#allocation6], 0
    %s19 = scalar_lea.sflag [#allocation6], 1
    %20 = vsyncpa %s19, 0
    %21 = vsyncpa [#allocation9], 0
    %22 = vsyncpa [#allocation7], 0
    %23 = vsyncpa [#allocation12], 0
    loop: start=0, step=1, limit=4
    $region2: #{tpu_custom_call.1} parent=1 // loop_pre_header
      _
    $region3: #{tpu_custom_call.1} parent=1 // loop_header
      %s25 = sphi 0, %s29
      %p26 = scmp.ge.s32.totalorder %s25, 4
      %s35 = sphi 0, %s37
      %s38 = sphi 0, %s35
      %s39 = sphi 0, %s38
      %s55 = sphi 0, %s39
      %s59 = sphi 0, %s59
      %s61 = sphi 0, %s59
      %s62 = sphi 0, %s61
      %s76 = sphi 0, %s62
      %s80 = sphi 0, %s80
      %s82 = sphi 0, %s80
      %s83 = sphi 0, %s82
      %s97 = sphi 0, %s83
      %s101 = sphi 0, %s101
      %s103 = sphi 0, %s101
      %s104 = sphi 0, %s103
      %s118 = sphi 0, %s104
      %s122 = sphi 0, %s122
      %s124 = sphi 0, %s122
      %s125 = sphi 0, %s124
      %s139 = sphi 0, %s125
      %s143 = sphi 0, %s143
      %s145 = sphi 0, %s143
      %s146 = sphi 0, %s145
      %s160 = sphi 0, %s146
      %s164 = sphi 0, %s164
      %s166 = sphi 0, %s164
      %s167 = sphi 0, %s166
      %s181 = sphi 0, %s167
      %s185 = sphi 0, %s185
      %s187 = sphi 0, %s185
      %s188 = sphi 0, %s187
      %s202 = sphi 0, %s188
      %s206 = sphi 0, %s206
      %s208 = sphi 0, %s206
      %s209 = sphi 0, %s208
      %s223 = sphi 0, %s209
      %s227 = sphi 0, %s227
      %s229 = sphi 0, %s227
      %s230 = sphi 0, %s229
      %s244 = sphi 0, %s230
      %s248 = sphi 0, %s248
      %s250 = sphi 0, %s248
      %s251 = sphi 0, %s250
      %s265 = sphi 0, %s251
      %s269 = sphi 0, %s269
      %s271 = sphi 0, %s269
      %s272 = sphi 0, %s271
      %s286 = sphi 0, %s272
      %s292 = sphi 0, %s294
      %s295 = sphi 0, %s292
      %s296 = sphi 0, %s295
      %s312 = sphi 0, %s296
    $region4: #{tpu_custom_call.1} parent=1 // loop_header_branch
      %28 = sbr.rel (%p26) target = $region8
    $region5: #{tpu_custom_call.1} parent=1 // loop_body
      %s30 = ssub.s32 %s25, 1
      %s31 = ssub.s32 %s25, 2
      %s32 = sadd.s32 %s25, 1
      %s33 = ssub.s32 %s25, %s32
      %p34 = scmp.eq.s32.totalorder %s33, 0
      %s36 = sadd.s32 %s35, 1
      %s37 = scalar_select %p34, %s35, %s36
      %p40 = pneg %p34
      %p41 = scmp.eq.s32.totalorder %s25, 1
      %p42 = por %p40, %p41
      %p43 = scmp.ne.s32.totalorder %s35, %s38
      %p44 = scmp.eq.s32.totalorder %s25, 0
      %p45 = por %p43, %p44
      %p46 = scmp.ne.s32.totalorder %s35, %s38
      %p47 = scmp.eq.s32.totalorder %s30, 1
      %p48 = por %p46, %p47
      %p49 = scmp.ne.s32.totalorder %s38, %s39
      %p50 = scmp.eq.s32.totalorder %s30, 0
      %p51 = por %p49, %p50
      %p52 = scmp.ne.s32.totalorder %s38, %s39
      %p53 = scmp.eq.s32.totalorder %s31, 1
      %p54 = por %p52, %p53
      %p56 = scmp.ne.s32.totalorder %s39, %s55
      %p57 = scmp.eq.s32.totalorder %s31, 0
      %p58 = por %p56, %p57
      %s60 = sadd.s32 %s59, 1
      %p63 = scmp.eq.s32.totalorder %s25, 1
      %p64 = scmp.ne.s32.totalorder %s59, %s61
      %p65 = scmp.eq.s32.totalorder %s25, 0
      %p66 = por %p64, %p65
      %p67 = scmp.ne.s32.totalorder %s59, %s61
      %p68 = scmp.eq.s32.totalorder %s30, 1
      %p69 = por %p67, %p68
      %p70 = scmp.ne.s32.totalorder %s61, %s62
      %p71 = scmp.eq.s32.totalorder %s30, 0
      %p72 = por %p70, %p71
      %p73 = scmp.ne.s32.totalorder %s61, %s62
      %p74 = scmp.eq.s32.totalorder %s31, 1
      %p75 = por %p73, %p74
      %p77 = scmp.ne.s32.totalorder %s62, %s76
      %p78 = scmp.eq.s32.totalorder %s31, 0
      %p79 = por %p77, %p78
      %s81 = sadd.s32 %s80, 1
      %p84 = scmp.eq.s32.totalorder %s25, 1
      %p85 = scmp.ne.s32.totalorder %s80, %s82
      %p86 = scmp.eq.s32.totalorder %s25, 0
      %p87 = por %p85, %p86
      %p88 = scmp.ne.s32.totalorder %s80, %s82
      %p89 = scmp.eq.s32.totalorder %s30, 1
      %p90 = por %p88, %p89
      %p91 = scmp.ne.s32.totalorder %s82, %s83
      %p92 = scmp.eq.s32.totalorder %s30, 0
      %p93 = por %p91, %p92
      %p94 = scmp.ne.s32.totalorder %s82, %s83
      %p95 = scmp.eq.s32.totalorder %s31, 1
      %p96 = por %p94, %p95
      %p98 = scmp.ne.s32.totalorder %s83, %s97
      %p99 = scmp.eq.s32.totalorder %s31, 0
      %p100 = por %p98, %p99
      %s102 = sadd.s32 %s101, 1
      %p105 = scmp.eq.s32.totalorder %s25, 1
      %p106 = scmp.ne.s32.totalorder %s101, %s103
      %p107 = scmp.eq.s32.totalorder %s25, 0
      %p108 = por %p106, %p107
      %p109 = scmp.ne.s32.totalorder %s101, %s103
      %p110 = scmp.eq.s32.totalorder %s30, 1
      %p111 = por %p109, %p110
      %p112 = scmp.ne.s32.totalorder %s103, %s104
      %p113 = scmp.eq.s32.totalorder %s30, 0
      %p114 = por %p112, %p113
      %p115 = scmp.ne.s32.totalorder %s103, %s104
      %p116 = scmp.eq.s32.totalorder %s31, 1
      %p117 = por %p115, %p116
      %p119 = scmp.ne.s32.totalorder %s104, %s118
      %p120 = scmp.eq.s32.totalorder %s31, 0
      %p121 = por %p119, %p120
      %s123 = sadd.s32 %s122, 1
      %p126 = scmp.eq.s32.totalorder %s25, 1
      %p127 = scmp.ne.s32.totalorder %s122, %s124
      %p128 = scmp.eq.s32.totalorder %s25, 0
      %p129 = por %p127, %p128
      %p130 = scmp.ne.s32.totalorder %s122, %s124
      %p131 = scmp.eq.s32.totalorder %s30, 1
      %p132 = por %p130, %p131
      %p133 = scmp.ne.s32.totalorder %s124, %s125
      %p134 = scmp.eq.s32.totalorder %s30, 0
      %p135 = por %p133, %p134
      %p136 = scmp.ne.s32.totalorder %s124, %s125
      %p137 = scmp.eq.s32.totalorder %s31, 1
      %p138 = por %p136, %p137
      %p140 = scmp.ne.s32.totalorder %s125, %s139
      %p141 = scmp.eq.s32.totalorder %s31, 0
      %p142 = por %p140, %p141
      %s144 = sadd.s32 %s143, 1
      %p147 = scmp.eq.s32.totalorder %s25, 1
      %p148 = scmp.ne.s32.totalorder %s143, %s145
      %p149 = scmp.eq.s32.totalorder %s25, 0
      %p150 = por %p148, %p149
      %p151 = scmp.ne.s32.totalorder %s143, %s145
      %p152 = scmp.eq.s32.totalorder %s30, 1
      %p153 = por %p151, %p152
      %p154 = scmp.ne.s32.totalorder %s145, %s146
      %p155 = scmp.eq.s32.totalorder %s30, 0
      %p156 = por %p154, %p155
      %p157 = scmp.ne.s32.totalorder %s145, %s146
      %p158 = scmp.eq.s32.totalorder %s31, 1
      %p159 = por %p157, %p158
      %p161 = scmp.ne.s32.totalorder %s146, %s160
      %p162 = scmp.eq.s32.totalorder %s31, 0
      %p163 = por %p161, %p162
      %s165 = sadd.s32 %s164, 1
      %p168 = scmp.eq.s32.totalorder %s25, 1
      %p169 = scmp.ne.s32.totalorder %s164, %s166
      %p170 = scmp.eq.s32.totalorder %s25, 0
      %p171 = por %p169, %p170
      %p172 = scmp.ne.s32.totalorder %s164, %s166
      %p173 = scmp.eq.s32.totalorder %s30, 1
      %p174 = por %p172, %p173
      %p175 = scmp.ne.s32.totalorder %s166, %s167
      %p176 = scmp.eq.s32.totalorder %s30, 0
      %p177 = por %p175, %p176
      %p178 = scmp.ne.s32.totalorder %s166, %s167
      %p179 = scmp.eq.s32.totalorder %s31, 1
      %p180 = por %p178, %p179
      %p182 = scmp.ne.s32.totalorder %s167, %s181
      %p183 = scmp.eq.s32.totalorder %s31, 0
      %p184 = por %p182, %p183
      %s186 = sadd.s32 %s185, 1
      %p189 = scmp.eq.s32.totalorder %s25, 1
      %p190 = scmp.ne.s32.totalorder %s185, %s187
      %p191 = scmp.eq.s32.totalorder %s25, 0
      %p192 = por %p190, %p191
      %p193 = scmp.ne.s32.totalorder %s185, %s187
      %p194 = scmp.eq.s32.totalorder %s30, 1
      %p195 = por %p193, %p194
      %p196 = scmp.ne.s32.totalorder %s187, %s188
      %p197 = scmp.eq.s32.totalorder %s30, 0
      %p198 = por %p196, %p197
      %p199 = scmp.ne.s32.totalorder %s187, %s188
      %p200 = scmp.eq.s32.totalorder %s31, 1
      %p201 = por %p199, %p200
      %p203 = scmp.ne.s32.totalorder %s188, %s202
      %p204 = scmp.eq.s32.totalorder %s31, 0
      %p205 = por %p203, %p204
      %s207 = sadd.s32 %s206, 1
      %p210 = scmp.eq.s32.totalorder %s25, 1
      %p211 = scmp.ne.s32.totalorder %s206, %s208
      %p212 = scmp.eq.s32.totalorder %s25, 0
      %p213 = por %p211, %p212
      %p214 = scmp.ne.s32.totalorder %s206, %s208
      %p215 = scmp.eq.s32.totalorder %s30, 1
      %p216 = por %p214, %p215
      %p217 = scmp.ne.s32.totalorder %s208, %s209
      %p218 = scmp.eq.s32.totalorder %s30, 0
      %p219 = por %p217, %p218
      %p220 = scmp.ne.s32.totalorder %s208, %s209
      %p221 = scmp.eq.s32.totalorder %s31, 1
      %p222 = por %p220, %p221
      %p224 = scmp.ne.s32.totalorder %s209, %s223
      %p225 = scmp.eq.s32.totalorder %s31, 0
      %p226 = por %p224, %p225
      %s228 = sadd.s32 %s227, 1
      %p231 = scmp.eq.s32.totalorder %s25, 1
      %p232 = scmp.ne.s32.totalorder %s227, %s229
      %p233 = scmp.eq.s32.totalorder %s25, 0
      %p234 = por %p232, %p233
      %p235 = scmp.ne.s32.totalorder %s227, %s229
      %p236 = scmp.eq.s32.totalorder %s30, 1
      %p237 = por %p235, %p236
      %p238 = scmp.ne.s32.totalorder %s229, %s230
      %p239 = scmp.eq.s32.totalorder %s30, 0
      %p240 = por %p238, %p239
      %p241 = scmp.ne.s32.totalorder %s229, %s230
      %p242 = scmp.eq.s32.totalorder %s31, 1
      %p243 = por %p241, %p242
      %p245 = scmp.ne.s32.totalorder %s230, %s244
      %p246 = scmp.eq.s32.totalorder %s31, 0
      %p247 = por %p245, %p246
      %s249 = sadd.s32 %s248, 1
      %p252 = scmp.eq.s32.totalorder %s25, 1
      %p253 = scmp.ne.s32.totalorder %s248, %s250
      %p254 = scmp.eq.s32.totalorder %s25, 0
      %p255 = por %p253, %p254
      %p256 = scmp.ne.s32.totalorder %s248, %s250
      %p257 = scmp.eq.s32.totalorder %s30, 1
      %p258 = por %p256, %p257
      %p259 = scmp.ne.s32.totalorder %s250, %s251
      %p260 = scmp.eq.s32.totalorder %s30, 0
      %p261 = por %p259, %p260
      %p262 = scmp.ne.s32.totalorder %s250, %s251
      %p263 = scmp.eq.s32.totalorder %s31, 1
      %p264 = por %p262, %p263
      %p266 = scmp.ne.s32.totalorder %s251, %s265
      %p267 = scmp.eq.s32.totalorder %s31, 0
      %p268 = por %p266, %p267
      %s270 = sadd.s32 %s269, 1
      %p273 = scmp.eq.s32.totalorder %s25, 1
      %p274 = scmp.ne.s32.totalorder %s269, %s271
      %p275 = scmp.eq.s32.totalorder %s25, 0
      %p276 = por %p274, %p275
      %p277 = scmp.ne.s32.totalorder %s269, %s271
      %p278 = scmp.eq.s32.totalorder %s30, 1
      %p279 = por %p277, %p278
      %p280 = scmp.ne.s32.totalorder %s271, %s272
      %p281 = scmp.eq.s32.totalorder %s30, 0
      %p282 = por %p280, %p281
      %p283 = scmp.ne.s32.totalorder %s271, %s272
      %p284 = scmp.eq.s32.totalorder %s31, 1
      %p285 = por %p283, %p284
      %p287 = scmp.ne.s32.totalorder %s272, %s286
      %p288 = scmp.eq.s32.totalorder %s31, 0
      %p289 = por %p287, %p288
      %s290 = ssub.s32 %s25, %s32
      %p291 = scmp.eq.s32.totalorder %s290, 0
      %s293 = sadd.s32 %s292, 1
      %s294 = scalar_select %p291, %s292, %s293
      %p297 = pneg %p291
      %p298 = scmp.eq.s32.totalorder %s25, 1
      %p299 = por %p297, %p298
      %p300 = scmp.ne.s32.totalorder %s292, %s295
      %p301 = scmp.eq.s32.totalorder %s25, 0
      %p302 = por %p300, %p301
      %p303 = scmp.ne.s32.totalorder %s292, %s295
      %p304 = scmp.eq.s32.totalorder %s30, 1
      %p305 = por %p303, %p304
      %p306 = scmp.ne.s32.totalorder %s295, %s296
      %p307 = scmp.eq.s32.totalorder %s30, 0
      %p308 = por %p306, %p307
      %p309 = scmp.ne.s32.totalorder %s295, %s296
      %p310 = scmp.eq.s32.totalorder %s31, 1
      %p311 = por %p309, %p310
      %p313 = scmp.ne.s32.totalorder %s296, %s312
      %p314 = scmp.eq.s32.totalorder %s31, 0
      %p315 = por %p313, %p314
      %p316 = scmp.le.s32.totalorder 1, %s25
      %p317 = scmp.lt.s32.totalorder %s25, 3
      %p318 = pnand %p316, %p317
      %p319 = pneg %p318
      // Predicated region
      $region9: #{tpu_custom_call.1} parent=5 // pred_check
        _
      $region10: #{tpu_custom_call.1} parent=5 // pred_check_branch
        %321 = sbr.rel (%p318) target = $region12
      $region11: #{tpu_custom_call.1} parent=5 // pred_region
        %s322 = ssub.s32 %s25, 1
        // Predicated region
        $region13: #{tpu_custom_call.1} parent=11 // pred_check
          %p323 = pneg %p72
        $region14: #{tpu_custom_call.1} parent=11 // pred_check_branch
          %325 = sbr.rel (%p323) target = $region16
        $region15: #{tpu_custom_call.1} parent=11 // pred_region
          _
        $region16: #{tpu_custom_call.1} parent=11 // pred_fallthru
          _
        // Predicated region
        $region17: #{tpu_custom_call.1} parent=11 // pred_check
          %p326 = pneg %p93
        $region18: #{tpu_custom_call.1} parent=11 // pred_check_branch
          %328 = sbr.rel (%p326) target = $region20
        $region19: #{tpu_custom_call.1} parent=11 // pred_region
          %s330 = ssub.s32 4096, 4096
          %331 = vsyncadd [#allocation9], %s330
          %s332 = sshll.u32 [#allocation8], 4
          %s333 = int_to_ptr.vmem [resolvable:$true] %s332
          %338 = dma.hbm_to_vmem [thread:$0]  %s2, 4096, %s333, [#allocation9], 256, 256, 16
        $region20: #{tpu_custom_call.1} parent=11 // pred_fallthru
          _
        // Predicated region
        $region21: #{tpu_custom_call.1} parent=11 // pred_check
          %p339 = pneg %p114
        $region22: #{tpu_custom_call.1} parent=11 // pred_check_branch
          %341 = sbr.rel (%p339) target = $region24
        $region23: #{tpu_custom_call.1} parent=11 // pred_region
          _
        $region24: #{tpu_custom_call.1} parent=11 // pred_fallthru
          _
        // Predicated region
        $region25: #{tpu_custom_call.1} parent=11 // pred_check
          %p342 = pneg %p135
        $region26: #{tpu_custom_call.1} parent=11 // pred_check_branch
          %344 = sbr.rel (%p342) target = $region28
        $region27: #{tpu_custom_call.1} parent=11 // pred_region
          _
        $region28: #{tpu_custom_call.1} parent=11 // pred_fallthru
          _
        // Predicated region
        $region29: #{tpu_custom_call.1} parent=11 // pred_check
          %p345 = pneg %p156
        $region30: #{tpu_custom_call.1} parent=11 // pred_check_branch
          %347 = sbr.rel (%p345) target = $region32
        $region31: #{tpu_custom_call.1} parent=11 // pred_region
          _
        $region32: #{tpu_custom_call.1} parent=11 // pred_fallthru
          _
        // Predicated region
        $region33: #{tpu_custom_call.1} parent=11 // pred_check
          %p348 = pneg %p177
        $region34: #{tpu_custom_call.1} parent=11 // pred_check_branch
          %350 = sbr.rel (%p348) target = $region36
        $region35: #{tpu_custom_call.1} parent=11 // pred_region
          _
        $region36: #{tpu_custom_call.1} parent=11 // pred_fallthru
          _
        // Predicated region
        $region37: #{tpu_custom_call.1} parent=11 // pred_check
          %p351 = pneg %p198
        $region38: #{tpu_custom_call.1} parent=11 // pred_check_branch
          %353 = sbr.rel (%p351) target = $region40
        $region39: #{tpu_custom_call.1} parent=11 // pred_region
          _
        $region40: #{tpu_custom_call.1} parent=11 // pred_fallthru
          _
        // Predicated region
        $region41: #{tpu_custom_call.1} parent=11 // pred_check
          %p354 = pneg %p219
        $region42: #{tpu_custom_call.1} parent=11 // pred_check_branch
          %356 = sbr.rel (%p354) target = $region44
        $region43: #{tpu_custom_call.1} parent=11 // pred_region
          _
        $region44: #{tpu_custom_call.1} parent=11 // pred_fallthru
          _
        // Predicated region
        $region45: #{tpu_custom_call.1} parent=11 // pred_check
          %p357 = pneg %p240
        $region46: #{tpu_custom_call.1} parent=11 // pred_check_branch
          %359 = sbr.rel (%p357) target = $region48
        $region47: #{tpu_custom_call.1} parent=11 // pred_region
          _
        $region48: #{tpu_custom_call.1} parent=11 // pred_fallthru
          _
      $region12: #{tpu_custom_call.1} parent=5 // pred_fallthru
        _
      %p360 = scmp.lt.s32.totalorder %s25, 2
      // Predicated region
      $region49: #{tpu_custom_call.1} parent=5 // pred_check
        %p361 = pneg %p360
      $region50: #{tpu_custom_call.1} parent=5 // pred_check_branch
        %363 = sbr.rel (%p361) target = $region52
      $region51: #{tpu_custom_call.1} parent=5 // pred_region
        // Predicated region
        $region53: #{tpu_custom_call.1} parent=51 // pred_check
          %p364 = pneg %p45
        $region54: #{tpu_custom_call.1} parent=51 // pred_check_branch
          %366 = sbr.rel (%p364) target = $region56
        $region55: #{tpu_custom_call.1} parent=51 // pred_region
          %s367 = sand.u32 %s35, 1
          %s368 = scalar_lea.sflag [#allocation6], %s367
          %s369 = sand.u32 %s35, 1
          %s370 = smul.addr %s369, 1024
          %s371 = scalar_lea.vmem [#allocation5], %s370
          %s372 = smul.u32 64, %s25
          %s374 = ssub.s32 16384, 16384
          %375 = vsyncadd %s368, %s374
          %s376 = smul.addr %s372, 2
          %s377 = smul.addr %s376, 128
          %s378 = scalar_lea.hbm %s0, %s377
          %s379 = sshll.u32 %s371, 4
          %s380 = int_to_ptr.vmem [resolvable:$true] %s379
          %385 = dma.hbm_to_vmem [thread:$0]  %s378, 16384, %s380, %s368, 256, 256, 16
        $region56: #{tpu_custom_call.1} parent=51 // pred_fallthru
          _
      $region52: #{tpu_custom_call.1} parent=5 // pred_fallthru
        _
      %p386 = scmp.le.s32.totalorder 1, %s25
      %p387 = scmp.lt.s32.totalorder %s25, 3
      %p388 = pnand %p386, %p387
      %p389 = pneg %p388
      // Predicated region
      $region57: #{tpu_custom_call.1} parent=5 // pred_check
        _
      $region58: #{tpu_custom_call.1} parent=5 // pred_check_branch
        %391 = sbr.rel (%p388) target = $region60
      $region59: #{tpu_custom_call.1} parent=5 // pred_region
        %s392 = ssub.s32 %s25, 1
        %s393 = sand.u32 %s38, 1
        %s394 = scalar_lea.sflag [#allocation6], %s393
        %s395 = sand.u32 %s38, 1
        %s396 = smul.addr %s395, 1024
        %s397 = scalar_lea.vmem [#allocation5], %s396
        // Predicated region
        $region61: #{tpu_custom_call.1} parent=59 // pred_check
          %p398 = pneg %p51
        $region62: #{tpu_custom_call.1} parent=59 // pred_check_branch
          %400 = sbr.rel (%p398) target = $region64
        $region63: #{tpu_custom_call.1} parent=59 // pred_region
          %401 = dma.done %s394, 16384
        $region64: #{tpu_custom_call.1} parent=59 // pred_fallthru
          _
        // Predicated region
        $region65: #{tpu_custom_call.1} parent=59 // pred_check
          %p402 = pneg %p93
        $region66: #{tpu_custom_call.1} parent=59 // pred_check_branch
          %404 = sbr.rel (%p402) target = $region68
        $region67: #{tpu_custom_call.1} parent=59 // pred_region
          %405 = dma.done [#allocation9], 4096
        $region68: #{tpu_custom_call.1} parent=59 // pred_fallthru
          _
        %s406 = sand.u32 %s38, 1
        %s407 = scalar_lea.sflag [#allocation6], %s406
        %s408 = sand.u32 %s38, 1
        %s409 = smul.addr %s408, 1024
        %s410 = scalar_lea.vmem [#allocation5], %s409
        %p411 = pneg %p51
        %p412 = pneg %p48
        %p413 = pneg %p72
        %p414 = pneg %p69
        %p415 = pneg %p93
        %p416 = pneg %p90
        %p417 = pneg %p114
        %p418 = pneg %p111
        %p419 = pneg %p135
        %p420 = pneg %p132
        %p421 = pneg %p156
        %p422 = pneg %p153
        %p423 = pneg %p177
        %p424 = pneg %p174
        %p425 = pneg %p198
        %p426 = pneg %p195
        %p427 = pneg %p219
        %p428 = pneg %p216
        %p429 = pneg %p240
        %p430 = pneg %p237
        %p431 = pneg %p261
        %p432 = pneg %p258
        %p433 = pneg %p282
        %p434 = pneg %p279
        %p435 = pneg %p308
        %p436 = pneg %p305
        %s437 = sand.u32 %s30, 1
        %s438 = scalar_lea.sflag [#allocation7], %s437
        %s439 = sand.u32 %s295, 1
        %s440 = smul.addr %s439, 8
        %s441 = scalar_lea.vmem [#allocation13], %s440
        %s442 = smul.u32 64, %s30
        %s443 = smul.u32 4, %s30
        %p444 = scmp.eq.s32.totalorder %s30, 0
        // Predicated region
        $region69: #{tpu_custom_call.1} parent=59 // pred_check
          %p445 = pneg %p444
        $region70: #{tpu_custom_call.1} parent=59 // pred_check_branch
          %447 = sbr.rel (%p445) target = $region72
        $region71: #{tpu_custom_call.1} parent=59 // pred_region
          %vm448 = vcmask 1024
          %449 = vst.msk [vmem:[#allocation2] sm:$0x3] %vm448, -inf
          %450 = vst.msk [vmem:[#allocation3] sm:$0x3] %vm448, 0.0
          %451 = vst [vmem:[#allocation4] sm:$0x3] 0.0
        $region72: #{tpu_custom_call.1} parent=59 // pred_fallthru
          _
        %v452 = vld [vmem:[%s397] sm:$0xff]
        %v453 = vld [vmem:[%s397 + $0x8] sm:$0xff]
        %v454 = vld [vmem:[%s397 + $0x10] sm:$0xff]
        %v455 = vld [vmem:[%s397 + $0x18] sm:$0xff]
        %v456 = vld [vmem:[%s397 + $0x20] sm:$0xff]
        %v457 = vld [vmem:[%s397 + $0x28] sm:$0xff]
        %v458 = vld [vmem:[%s397 + $0x30] sm:$0xff]
        %v459 = vld [vmem:[%s397 + $0x38] sm:$0xff]
        %v460 = vld [vmem:[%s397 + $0x40] sm:$0xff]
        %v461 = vld [vmem:[%s397 + $0x48] sm:$0xff]
        %v462 = vld [vmem:[%s397 + $0x50] sm:$0xff]
        %v463 = vld [vmem:[%s397 + $0x58] sm:$0xff]
        %v464 = vld [vmem:[%s397 + $0x60] sm:$0xff]
        %v465 = vld [vmem:[%s397 + $0x68] sm:$0xff]
        %v466 = vld [vmem:[%s397 + $0x70] sm:$0xff]
        %v467 = vld [vmem:[%s397 + $0x78] sm:$0xff]
        %v468 = vld [vmem:[%s397 + $0x80] sm:$0xff]
        %v469 = vld [vmem:[%s397 + $0x88] sm:$0xff]
        %v470 = vld [vmem:[%s397 + $0x90] sm:$0xff]
        %v471 = vld [vmem:[%s397 + $0x98] sm:$0xff]
        %v472 = vld [vmem:[%s397 + $0xa0] sm:$0xff]
        %v473 = vld [vmem:[%s397 + $0xa8] sm:$0xff]
        %v474 = vld [vmem:[%s397 + $0xb0] sm:$0xff]
        %v475 = vld [vmem:[%s397 + $0xb8] sm:$0xff]
        %v476 = vld [vmem:[%s397 + $0xc0] sm:$0xff]
        %v477 = vld [vmem:[%s397 + $0xc8] sm:$0xff]
        %v478 = vld [vmem:[%s397 + $0xd0] sm:$0xff]
        %v479 = vld [vmem:[%s397 + $0xd8] sm:$0xff]
        %v480 = vld [vmem:[%s397 + $0xe0] sm:$0xff]
        %v481 = vld [vmem:[%s397 + $0xe8] sm:$0xff]
        %v482 = vld [vmem:[%s397 + $0xf0] sm:$0xff]
        %v483 = vld [vmem:[%s397 + $0xf8] sm:$0xff]
        %v484 = vld [vmem:[%s397 + $0x100] sm:$0xff]
        %v485 = vld [vmem:[%s397 + $0x108] sm:$0xff]
        %v486 = vld [vmem:[%s397 + $0x110] sm:$0xff]
        %v487 = vld [vmem:[%s397 + $0x118] sm:$0xff]
        %v488 = vld [vmem:[%s397 + $0x120] sm:$0xff]
        %v489 = vld [vmem:[%s397 + $0x128] sm:$0xff]
        %v490 = vld [vmem:[%s397 + $0x130] sm:$0xff]
        %v491 = vld [vmem:[%s397 + $0x138] sm:$0xff]
        %v492 = vld [vmem:[%s397 + $0x140] sm:$0xff]
        %v493 = vld [vmem:[%s397 + $0x148] sm:$0xff]
        %v494 = vld [vmem:[%s397 + $0x150] sm:$0xff]
        %v495 = vld [vmem:[%s397 + $0x158] sm:$0xff]
        %v496 = vld [vmem:[%s397 + $0x160] sm:$0xff]
        %v497 = vld [vmem:[%s397 + $0x168] sm:$0xff]
        %v498 = vld [vmem:[%s397 + $0x170] sm:$0xff]
        %v499 = vld [vmem:[%s397 + $0x178] sm:$0xff]
        %v500 = vld [vmem:[%s397 + $0x180] sm:$0xff]
        %v501 = vld [vmem:[%s397 + $0x188] sm:$0xff]
        %v502 = vld [vmem:[%s397 + $0x190] sm:$0xff]
        %v503 = vld [vmem:[%s397 + $0x198] sm:$0xff]
        %v504 = vld [vmem:[%s397 + $0x1a0] sm:$0xff]
        %v505 = vld [vmem:[%s397 + $0x1a8] sm:$0xff]
        %v506 = vld [vmem:[%s397 + $0x1b0] sm:$0xff]
        %v507 = vld [vmem:[%s397 + $0x1b8] sm:$0xff]
        %v508 = vld [vmem:[%s397 + $0x1c0] sm:$0xff]
        %v509 = vld [vmem:[%s397 + $0x1c8] sm:$0xff]
        %v510 = vld [vmem:[%s397 + $0x1d0] sm:$0xff]
        %v511 = vld [vmem:[%s397 + $0x1d8] sm:$0xff]
        %v512 = vld [vmem:[%s397 + $0x1e0] sm:$0xff]
        %v513 = vld [vmem:[%s397 + $0x1e8] sm:$0xff]
        %v514 = vld [vmem:[%s397 + $0x1f0] sm:$0xff]
        %v515 = vld [vmem:[%s397 + $0x1f8] sm:$0xff]
        %v516 = vld [vmem:[%s397 + $0x200] sm:$0xff]
        %v517 = vld [vmem:[%s397 + $0x208] sm:$0xff]
        %v518 = vld [vmem:[%s397 + $0x210] sm:$0xff]
        %v519 = vld [vmem:[%s397 + $0x218] sm:$0xff]
        %v520 = vld [vmem:[%s397 + $0x220] sm:$0xff]
        %v521 = vld [vmem:[%s397 + $0x228] sm:$0xff]
        %v522 = vld [vmem:[%s397 + $0x230] sm:$0xff]
        %v523 = vld [vmem:[%s397 + $0x238] sm:$0xff]
        %v524 = vld [vmem:[%s397 + $0x240] sm:$0xff]
        %v525 = vld [vmem:[%s397 + $0x248] sm:$0xff]
        %v526 = vld [vmem:[%s397 + $0x250] sm:$0xff]
        %v527 = vld [vmem:[%s397 + $0x258] sm:$0xff]
        %v528 = vld [vmem:[%s397 + $0x260] sm:$0xff]
        %v529 = vld [vmem:[%s397 + $0x268] sm:$0xff]
        %v530 = vld [vmem:[%s397 + $0x270] sm:$0xff]
        %v531 = vld [vmem:[%s397 + $0x278] sm:$0xff]
        %v532 = vld [vmem:[%s397 + $0x280] sm:$0xff]
        %v533 = vld [vmem:[%s397 + $0x288] sm:$0xff]
        %v534 = vld [vmem:[%s397 + $0x290] sm:$0xff]
        %v535 = vld [vmem:[%s397 + $0x298] sm:$0xff]
        %v536 = vld [vmem:[%s397 + $0x2a0] sm:$0xff]
        %v537 = vld [vmem:[%s397 + $0x2a8] sm:$0xff]
        %v538 = vld [vmem:[%s397 + $0x2b0] sm:$0xff]
        %v539 = vld [vmem:[%s397 + $0x2b8] sm:$0xff]
        %v540 = vld [vmem:[%s397 + $0x2c0] sm:$0xff]
        %v541 = vld [vmem:[%s397 + $0x2c8] sm:$0xff]
        %v542 = vld [vmem:[%s397 + $0x2d0] sm:$0xff]
        %v543 = vld [vmem:[%s397 + $0x2d8] sm:$0xff]
        %v544 = vld [vmem:[%s397 + $0x2e0] sm:$0xff]
        %v545 = vld [vmem:[%s397 + $0x2e8] sm:$0xff]
        %v546 = vld [vmem:[%s397 + $0x2f0] sm:$0xff]
        %v547 = vld [vmem:[%s397 + $0x2f8] sm:$0xff]
        %v548 = vld [vmem:[%s397 + $0x300] sm:$0xff]
        %v549 = vld [vmem:[%s397 + $0x308] sm:$0xff]
        %v550 = vld [vmem:[%s397 + $0x310] sm:$0xff]
        %v551 = vld [vmem:[%s397 + $0x318] sm:$0xff]
        %v552 = vld [vmem:[%s397 + $0x320] sm:$0xff]
        %v553 = vld [vmem:[%s397 + $0x328] sm:$0xff]
        %v554 = vld [vmem:[%s397 + $0x330] sm:$0xff]
        %v555 = vld [vmem:[%s397 + $0x338] sm:$0xff]
        %v556 = vld [vmem:[%s397 + $0x340] sm:$0xff]
        %v557 = vld [vmem:[%s397 + $0x348] sm:$0xff]
        %v558 = vld [vmem:[%s397 + $0x350] sm:$0xff]
        %v559 = vld [vmem:[%s397 + $0x358] sm:$0xff]
        %v560 = vld [vmem:[%s397 + $0x360] sm:$0xff]
        %v561 = vld [vmem:[%s397 + $0x368] sm:$0xff]
        %v562 = vld [vmem:[%s397 + $0x370] sm:$0xff]
        %v563 = vld [vmem:[%s397 + $0x378] sm:$0xff]
        %v564 = vld [vmem:[%s397 + $0x380] sm:$0xff]
        %v565 = vld [vmem:[%s397 + $0x388] sm:$0xff]
        %v566 = vld [vmem:[%s397 + $0x390] sm:$0xff]
        %v567 = vld [vmem:[%s397 + $0x398] sm:$0xff]
        %v568 = vld [vmem:[%s397 + $0x3a0] sm:$0xff]
        %v569 = vld [vmem:[%s397 + $0x3a8] sm:$0xff]
        %v570 = vld [vmem:[%s397 + $0x3b0] sm:$0xff]
        %v571 = vld [vmem:[%s397 + $0x3b8] sm:$0xff]
        %v572 = vld [vmem:[%s397 + $0x3c0] sm:$0xff]
        %v573 = vld [vmem:[%s397 + $0x3c8] sm:$0xff]
        %v574 = vld [vmem:[%s397 + $0x3d0] sm:$0xff]
        %v575 = vld [vmem:[%s397 + $0x3d8] sm:$0xff]
        %v576 = vld [vmem:[%s397 + $0x3e0] sm:$0xff]
        %v577 = vld [vmem:[%s397 + $0x3e8] sm:$0xff]
        %v578 = vld [vmem:[%s397 + $0x3f0] sm:$0xff]
        %v579 = vld [vmem:[%s397 + $0x3f8] sm:$0xff]
        %v580 = vld [vmem:[%s1] sm:$0xff]
        %v581 = vld [vmem:[%s1 + $0x8] sm:$0xff]
        %v582 = vld [vmem:[%s1 + $0x10] sm:$0xff]
        %v583 = vld [vmem:[%s1 + $0x18] sm:$0xff]
        %v584 = vld [vmem:[%s1 + $0x20] sm:$0xff]
        %v585 = vld [vmem:[%s1 + $0x28] sm:$0xff]
        %v586 = vld [vmem:[%s1 + $0x30] sm:$0xff]
        %v587 = vld [vmem:[%s1 + $0x38] sm:$0xff]
        %v588 = vld [vmem:[%s1 + $0x40] sm:$0xff]
        %v589 = vld [vmem:[%s1 + $0x48] sm:$0xff]
        %v590 = vld [vmem:[%s1 + $0x50] sm:$0xff]
        %v591 = vld [vmem:[%s1 + $0x58] sm:$0xff]
        %v592 = vld [vmem:[%s1 + $0x60] sm:$0xff]
        %v593 = vld [vmem:[%s1 + $0x68] sm:$0xff]
        %v594 = vld [vmem:[%s1 + $0x70] sm:$0xff]
        %v595 = vld [vmem:[%s1 + $0x78] sm:$0xff]
        %v596 = vld [vmem:[%s1 + $0x80] sm:$0xff]
        %v597 = vld [vmem:[%s1 + $0x88] sm:$0xff]
        %v598 = vld [vmem:[%s1 + $0x90] sm:$0xff]
        %v599 = vld [vmem:[%s1 + $0x98] sm:$0xff]
        %v600 = vld [vmem:[%s1 + $0xa0] sm:$0xff]
        %v601 = vld [vmem:[%s1 + $0xa8] sm:$0xff]
        %v602 = vld [vmem:[%s1 + $0xb0] sm:$0xff]
        %v603 = vld [vmem:[%s1 + $0xb8] sm:$0xff]
        %v604 = vld [vmem:[%s1 + $0xc0] sm:$0xff]
        %v605 = vld [vmem:[%s1 + $0xc8] sm:$0xff]
        %v606 = vld [vmem:[%s1 + $0xd0] sm:$0xff]
        %v607 = vld [vmem:[%s1 + $0xd8] sm:$0xff]
        %v608 = vld [vmem:[%s1 + $0xe0] sm:$0xff]
        %v609 = vld [vmem:[%s1 + $0xe8] sm:$0xff]
        %v610 = vld [vmem:[%s1 + $0xf0] sm:$0xff]
        %v611 = vld [vmem:[%s1 + $0xf8] sm:$0xff]
        %612 = vmatprep.subr.mxu0 0.0
        %613 = vmatpush1.msra.mxu0 %v580
        %614 = vmatprep.subr.mxu0 0.0
        %615 = vmatpush1.msra.mxu0 %v581
        %616 = vmatprep.subr.mxu0 0.0
        %617 = vmatpush1.msra.mxu0 %v582
        %618 = vmatprep.subr.mxu0 0.0
        %619 = vmatpush1.msra.mxu0 %v583
        %620 = vmatprep.subr.mxu0 0.0
        %621 = vmatpush1.msra.mxu0 %v584
        %622 = vmatprep.subr.mxu0 0.0
        %623 = vmatpush1.msra.mxu0 %v585
        %624 = vmatprep.subr.mxu0 0.0
        %625 = vmatpush1.msra.mxu0 %v586
        %626 = vmatprep.subr.mxu0 0.0
        %627 = vmatpush1.msra.mxu0 %v587
        %628 = vmatprep.subr.mxu0 0.0
        %629 = vmatpush1.msra.mxu0 %v588
        %630 = vmatprep.subr.mxu0 0.0
        %631 = vmatpush1.msra.mxu0 %v589
        %632 = vmatprep.subr.mxu0 0.0
        %633 = vmatpush1.msra.mxu0 %v590
        %634 = vmatprep.subr.mxu0 0.0
        %635 = vmatpush1.msra.mxu0 %v591
        %636 = vmatprep.subr.mxu0 0.0
        %637 = vmatpush1.msra.mxu0 %v592
        %638 = vmatprep.subr.mxu0 0.0
        %639 = vmatpush1.msra.mxu0 %v593
        %640 = vmatprep.subr.mxu0 0.0
        %641 = vmatpush1.msra.mxu0 %v594
        %642 = vmatprep.subr.mxu0 0.0
        %643 = vmatpush1.msra.mxu0 %v595
        %644 = vmatprep.subr.mxu0 0.0
        %645 = vmatpush1.msra.mxu0 %v596
        %646 = vmatprep.subr.mxu0 0.0
        %647 = vmatpush1.msra.mxu0 %v597
        %648 = vmatprep.subr.mxu0 0.0
        %649 = vmatpush1.msra.mxu0 %v598
        %650 = vmatprep.subr.mxu0 0.0
        %651 = vmatpush1.msra.mxu0 %v599
        %652 = vmatprep.subr.mxu0 0.0
        %653 = vmatpush1.msra.mxu0 %v600
        %654 = vmatprep.subr.mxu0 0.0
        %655 = vmatpush1.msra.mxu0 %v601
        %656 = vmatprep.subr.mxu0 0.0
        %657 = vmatpush1.msra.mxu0 %v602
        %658 = vmatprep.subr.mxu0 0.0
        %659 = vmatpush1.msra.mxu0 %v603
        %660 = vmatprep.subr.mxu0 0.0
        %661 = vmatpush1.msra.mxu0 %v604
        %662 = vmatprep.subr.mxu0 0.0
        %663 = vmatpush1.msra.mxu0 %v605
        %664 = vmatprep.subr.mxu0 0.0
        %665 = vmatpush1.msra.mxu0 %v606
        %666 = vmatprep.subr.mxu0 0.0
        %667 = vmatpush1.msra.mxu0 %v607
        %668 = vmatprep.subr.mxu0 0.0
        %669 = vmatpush1.msra.mxu0 %v608
        %670 = vmatprep.subr.mxu0 0.0
        %671 = vmatpush1.msra.mxu0 %v609
        %672 = vmatprep.subr.mxu0 0.0
        %673 = vmatpush1.msra.mxu0 %v610
        %674 = vmatprep.subr.mxu0 0.0
        %675 = vmatpush1.msra.mxu0 %v611
        %676 = vmatprep.mubr.f32.mxu0 %v453
        %677 = vmatmul.mubr.f32.gmra.mrb[0].mxu0 %v452
        %v678 = vpop.f32.mrb[0].mxu0
        %v679 = vadd.f32 0.0, %v678
        %v680 = vpop.f32.mrb[0].mxu0
        %681 = vmatprep.mubr.f32.mxu0 %v455
        %682 = vmatmul.mubr.f32.gmra.mrb[0].mxu0 %v454
        %v683 = vpop.f32.mrb[0].mxu0
        %v684 = vadd.f32 0.0, %v683
        %v685 = vpop.f32.mrb[0].mxu0
        %686 = vmatprep.mubr.f32.mxu0 %v457
        %687 = vmatmul.mubr.f32.gmra.mrb[0].mxu0 %v456
        %v688 = vpop.f32.mrb[0].mxu0
        %v689 = vadd.f32 0.0, %v688
        %v690 = vpop.f32.mrb[0].mxu0
        %691 = vmatprep.mubr.f32.mxu0 %v459
        %692 = vmatmul.mubr.f32.gmra.mrb[0].mxu0 %v458
        %v693 = vpop.f32.mrb[0].mxu0
        %v694 = vadd.f32 0.0, %v693
        %v695 = vpop.f32.mrb[0].mxu0
        %696 = vmatprep.mubr.f32.mxu0 %v461
        %697 = vmatmul.mubr.f32.gmra.mrb[0].mxu0 %v460
        %v698 = vpop.f32.mrb[0].mxu0
        %v699 = vadd.f32 0.0, %v698
        %v700 = vpop.f32.mrb[0].mxu0
        %701 = vmatprep.mubr.f32.mxu0 %v463
        %702 = vmatmul.mubr.f32.gmra.mrb[0].mxu0 %v462
        %v703 = vpop.f32.mrb[0].mxu0
        %v704 = vadd.f32 0.0, %v703
        %v705 = vpop.f32.mrb[0].mxu0
        %706 = vmatprep.mubr.f32.mxu0 %v465
        %707 = vmatmul.mubr.f32.gmra.mrb[0].mxu0 %v464
        %v708 = vpop.f32.mrb[0].mxu0
        %v709 = vadd.f32 0.0, %v708
        %v710 = vpop.f32.mrb[0].mxu0
        %711 = vmatprep.mubr.f32.mxu0 %v467
        %712 = vmatmul.mubr.f32.gmra.mrb[0].mxu0 %v466
        %v713 = vpop.f32.mrb[0].mxu0
        %v714 = vadd.f32 0.0, %v713
        %v715 = vpop.f32.mrb[0].mxu0
        %716 = vmatprep.mubr.f32.mxu0 %v469
        %717 = vmatmul.mubr.f32.gmra.mrb[0].mxu0 %v468
        %v718 = vpop.f32.mrb[0].mxu0
        %v719 = vadd.f32 0.0, %v718
        %v720 = vpop.f32.mrb[0].mxu0
        %721 = vmatprep.mubr.f32.mxu0 %v471
        %722 = vmatmul.mubr.f32.gmra.mrb[0].mxu0 %v470
        %v723 = vpop.f32.mrb[0].mxu0
        %v724 = vadd.f32 0.0, %v723
        %v725 = vpop.f32.mrb[0].mxu0
        %726 = vmatprep.mubr.f32.mxu0 %v473
        %727 = vmatmul.mubr.f32.gmra.mrb[0].mxu0 %v472
        %v728 = vpop.f32.mrb[0].mxu0
        %v729 = vadd.f32 0.0, %v728
        %v730 = vpop.f32.mrb[0].mxu0
        %731 = vmatprep.mubr.f32.mxu0 %v475
        %732 = vmatmul.mubr.f32.gmra.mrb[0].mxu0 %v474
        %v733 = vpop.f32.mrb[0].mxu0
        %v734 = vadd.f32 0.0, %v733
        %v735 = vpop.f32.mrb[0].mxu0
        %736 = vmatprep.mubr.f32.mxu0 %v477
        %737 = vmatmul.mubr.f32.gmra.mrb[0].mxu0 %v476
        %v738 = vpop.f32.mrb[0].mxu0
        %v739 = vadd.f32 0.0, %v738
        %v740 = vpop.f32.mrb[0].mxu0
        %741 = vmatprep.mubr.f32.mxu0 %v479
        %742 = vmatmul.mubr.f32.gmra.mrb[0].mxu0 %v478
        %v743 = vpop.f32.mrb[0].mxu0
        %v744 = vadd.f32 0.0, %v743
        %v745 = vpop.f32.mrb[0].mxu0
        %746 = vmatprep.mubr.f32.mxu0 %v481
        %747 = vmatmul.mubr.f32.gmra.mrb[0].mxu0 %v480
        %v748 = vpop.f32.mrb[0].mxu0
        %v749 = vadd.f32 0.0, %v748
        %v750 = vpop.f32.mrb[0].mxu0
        %751 = vmatprep.mubr.f32.mxu0 %v483
        %752 = vmatmul.mubr.f32.gmra.mrb[0].mxu0 %v482
        %v753 = vpop.f32.mrb[0].mxu0
        %v754 = vadd.f32 0.0, %v753
        %v755 = vpop.f32.mrb[0].mxu0
        %756 = vmatprep.mubr.f32.mxu0 %v485
        %757 = vmatmul.mubr.f32.gmra.mrb[0].mxu0 %v484
        %v758 = vpop.f32.mrb[0].mxu0
        %v759 = vadd.f32 0.0, %v758
        %v760 = vpop.f32.mrb[0].mxu0
        %761 = vmatprep.mubr.f32.mxu0 %v487
        %762 = vmatmul.mubr.f32.gmra.mrb[0].mxu0 %v486
        %v763 = vpop.f32.mrb[0].mxu0
        %v764 = vadd.f32 0.0, %v763
        %v765 = vpop.f32.mrb[0].mxu0
        %766 = vmatprep.mubr.f32.mxu0 %v489
        %767 = vmatmul.mubr.f32.gmra.mrb[0].mxu0 %v488
        %v768 = vpop.f32.mrb[0].mxu0
        %v769 = vadd.f32 0.0, %v768
        %v770 = vpop.f32.mrb[0].mxu0
        %771 = vmatprep.mubr.f32.mxu0 %v491
        %772 = vmatmul.mubr.f32.gmra.mrb[0].mxu0 %v490
        %v773 = vpop.f32.mrb[0].mxu0
        %v774 = vadd.f32 0.0, %v773
        %v775 = vpop.f32.mrb[0].mxu0
        %776 = vmatprep.mubr.f32.mxu0 %v493
        %777 = vmatmul.mubr.f32.gmra.mrb[0].mxu0 %v492
        %v778 = vpop.f32.mrb[0].mxu0
        %v779 = vadd.f32 0.0, %v778
        %v780 = vpop.f32.mrb[0].mxu0
        %781 = vmatprep.mubr.f32.mxu0 %v495
        %782 = vmatmul.mubr.f32.gmra.mrb[0].mxu0 %v494
        %v783 = vpop.f32.mrb[0].mxu0
        %v784 = vadd.f32 0.0, %v783
        %v785 = vpop.f32.mrb[0].mxu0
        %786 = vmatprep.mubr.f32.mxu0 %v497
        %787 = vmatmul.mubr.f32.gmra.mrb[0].mxu0 %v496
        %v788 = vpop.f32.mrb[0].mxu0
        %v789 = vadd.f32 0.0, %v788
        %v790 = vpop.f32.mrb[0].mxu0
        %791 = vmatprep.mubr.f32.mxu0 %v499
        %792 = vmatmul.mubr.f32.gmra.mrb[0].mxu0 %v498
        %v793 = vpop.f32.mrb[0].mxu0
        %v794 = vadd.f32 0.0, %v793
        %v795 = vpop.f32.mrb[0].mxu0
        %796 = vmatprep.mubr.f32.mxu0 %v501
        %797 = vmatmul.mubr.f32.gmra.mrb[0].mxu0 %v500
        %v798 = vpop.f32.mrb[0].mxu0
        %v799 = vadd.f32 0.0, %v798
        %v800 = vpop.f32.mrb[0].mxu0
        %801 = vmatprep.mubr.f32.mxu0 %v503
        %802 = vmatmul.mubr.f32.gmra.mrb[0].mxu0 %v502
        %v803 = vpop.f32.mrb[0].mxu0
        %v804 = vadd.f32 0.0, %v803
        %v805 = vpop.f32.mrb[0].mxu0
        %806 = vmatprep.mubr.f32.mxu0 %v505
        %807 = vmatmul.mubr.f32.gmra.mrb[0].mxu0 %v504
        %v808 = vpop.f32.mrb[0].mxu0
        %v809 = vadd.f32 0.0, %v808
        %v810 = vpop.f32.mrb[0].mxu0
        %811 = vmatprep.mubr.f32.mxu0 %v507
        %812 = vmatmul.mubr.f32.gmra.mrb[0].mxu0 %v506
        %v813 = vpop.f32.mrb[0].mxu0
        %v814 = vadd.f32 0.0, %v813
        %v815 = vpop.f32.mrb[0].mxu0
        %816 = vmatprep.mubr.f32.mxu0 %v509
        %817 = vmatmul.mubr.f32.gmra.mrb[0].mxu0 %v508
        %v818 = vpop.f32.mrb[0].mxu0
        %v819 = vadd.f32 0.0, %v818
        %v820 = vpop.f32.mrb[0].mxu0
        %821 = vmatprep.mubr.f32.mxu0 %v511
        %822 = vmatmul.mubr.f32.gmra.mrb[0].mxu0 %v510
        %v823 = vpop.f32.mrb[0].mxu0
        %v824 = vadd.f32 0.0, %v823
        %v825 = vpop.f32.mrb[0].mxu0
        %826 = vmatprep.mubr.f32.mxu0 %v513
        %827 = vmatmul.mubr.f32.gmra.mrb[0].mxu0 %v512
        %v828 = vpop.f32.mrb[0].mxu0
        %v829 = vadd.f32 0.0, %v828
        %v830 = vpop.f32.mrb[0].mxu0
        %831 = vmatprep.mubr.f32.mxu0 %v515
        %832 = vmatmul.mubr.f32.gmra.mrb[0].mxu0 %v514
        %v833 = vpop.f32.mrb[0].mxu0
        %v834 = vadd.f32 0.0, %v833
        %v835 = vpop.f32.mrb[0].mxu0
        %836 = vmatprep.mubr.f32.mxu0 %v517
        %837 = vmatmul.mubr.f32.gmra.mrb[0].mxu0 %v516
        %v838 = vpop.f32.mrb[0].mxu0
        %v839 = vadd.f32 0.0, %v838
        %v840 = vpop.f32.mrb[0].mxu0
        %841 = vmatprep.mubr.f32.mxu0 %v519
        %842 = vmatmul.mubr.f32.gmra.mrb[0].mxu0 %v518
        %v843 = vpop.f32.mrb[0].mxu0
        %v844 = vadd.f32 0.0, %v843
        %v845 = vpop.f32.mrb[0].mxu0
        %846 = vmatprep.mubr.f32.mxu0 %v521
        %847 = vmatmul.mubr.f32.gmra.mrb[0].mxu0 %v520
        %v848 = vpop.f32.mrb[0].mxu0
        %v849 = vadd.f32 0.0, %v848
        %v850 = vpop.f32.mrb[0].mxu0
        %851 = vmatprep.mubr.f32.mxu0 %v523
        %852 = vmatmul.mubr.f32.gmra.mrb[0].mxu0 %v522
        %v853 = vpop.f32.mrb[0].mxu0
        %v854 = vadd.f32 0.0, %v853
        %v855 = vpop.f32.mrb[0].mxu0
        %856 = vmatprep.mubr.f32.mxu0 %v525
        %857 = vmatmul.mubr.f32.gmra.mrb[0].mxu0 %v524
        %v858 = vpop.f32.mrb[0].mxu0
        %v859 = vadd.f32 0.0, %v858
        %v860 = vpop.f32.mrb[0].mxu0
        %861 = vmatprep.mubr.f32.mxu0 %v527
        %862 = vmatmul.mubr.f32.gmra.mrb[0].mxu0 %v526
        %v863 = vpop.f32.mrb[0].mxu0
        %v864 = vadd.f32 0.0, %v863
        %v865 = vpop.f32.mrb[0].mxu0
        %866 = vmatprep.mubr.f32.mxu0 %v529
        %867 = vmatmul.mubr.f32.gmra.mrb[0].mxu0 %v528
        %v868 = vpop.f32.mrb[0].mxu0
        %v869 = vadd.f32 0.0, %v868
        %v870 = vpop.f32.mrb[0].mxu0
        %871 = vmatprep.mubr.f32.mxu0 %v531
        %872 = vmatmul.mubr.f32.gmra.mrb[0].mxu0 %v530
        %v873 = vpop.f32.mrb[0].mxu0
        %v874 = vadd.f32 0.0, %v873
        %v875 = vpop.f32.mrb[0].mxu0
        %876 = vmatprep.mubr.f32.mxu0 %v533
        %877 = vmatmul.mubr.f32.gmra.mrb[0].mxu0 %v532
        %v878 = vpop.f32.mrb[0].mxu0
        %v879 = vadd.f32 0.0, %v878
        %v880 = vpop.f32.mrb[0].mxu0
        %881 = vmatprep.mubr.f32.mxu0 %v535
        %882 = vmatmul.mubr.f32.gmra.mrb[0].mxu0 %v534
        %v883 = vpop.f32.mrb[0].mxu0
        %v884 = vadd.f32 0.0, %v883
        %v885 = vpop.f32.mrb[0].mxu0
        %886 = vmatprep.mubr.f32.mxu0 %v537
        %887 = vmatmul.mubr.f32.gmra.mrb[0].mxu0 %v536
        %v888 = vpop.f32.mrb[0].mxu0
        %v889 = vadd.f32 0.0, %v888
        %v890 = vpop.f32.mrb[0].mxu0
        %891 = vmatprep.mubr.f32.mxu0 %v539
        %892 = vmatmul.mubr.f32.gmra.mrb[0].mxu0 %v538
        %v893 = vpop.f32.mrb[0].mxu0
        %v894 = vadd.f32 0.0, %v893
        %v895 = vpop.f32.mrb[0].mxu0
        %896 = vmatprep.mubr.f32.mxu0 %v541
        %897 = vmatmul.mubr.f32.gmra.mrb[0].mxu0 %v540
        %v898 = vpop.f32.mrb[0].mxu0
        %v899 = vadd.f32 0.0, %v898
        %v900 = vpop.f32.mrb[0].mxu0
        %901 = vmatprep.mubr.f32.mxu0 %v543
        %902 = vmatmul.mubr.f32.gmra.mrb[0].mxu0 %v542
        %v903 = vpop.f32.mrb[0].mxu0
        %v904 = vadd.f32 0.0, %v903
        %v905 = vpop.f32.mrb[0].mxu0
        %906 = vmatprep.mubr.f32.mxu0 %v545
        %907 = vmatmul.mubr.f32.gmra.mrb[0].mxu0 %v544
        %v908 = vpop.f32.mrb[0].mxu0
        %v909 = vadd.f32 0.0, %v908
        %v910 = vpop.f32.mrb[0].mxu0
        %911 = vmatprep.mubr.f32.mxu0 %v547
        %912 = vmatmul.mubr.f32.gmra.mrb[0].mxu0 %v546
        %v913 = vpop.f32.mrb[0].mxu0
        %v914 = vadd.f32 0.0, %v913
        %v915 = vpop.f32.mrb[0].mxu0
        %916 = vmatprep.mubr.f32.mxu0 %v549
        %917 = vmatmul.mubr.f32.gmra.mrb[0].mxu0 %v548
        %v918 = vpop.f32.mrb[0].mxu0
        %v919 = vadd.f32 0.0, %v918
        %v920 = vpop.f32.mrb[0].mxu0
        %921 = vmatprep.mubr.f32.mxu0 %v551
        %922 = vmatmul.mubr.f32.gmra.mrb[0].mxu0 %v550
        %v923 = vpop.f32.mrb[0].mxu0
        %v924 = vadd.f32 0.0, %v923
        %v925 = vpop.f32.mrb[0].mxu0
        %926 = vmatprep.mubr.f32.mxu0 %v553
        %927 = vmatmul.mubr.f32.gmra.mrb[0].mxu0 %v552
        %v928 = vpop.f32.mrb[0].mxu0
        %v929 = vadd.f32 0.0, %v928
        %v930 = vpop.f32.mrb[0].mxu0
        %931 = vmatprep.mubr.f32.mxu0 %v555
        %932 = vmatmul.mubr.f32.gmra.mrb[0].mxu0 %v554
        %v933 = vpop.f32.mrb[0].mxu0
        %v934 = vadd.f32 0.0, %v933
        %v935 = vpop.f32.mrb[0].mxu0
        %936 = vmatprep.mubr.f32.mxu0 %v557
        %937 = vmatmul.mubr.f32.gmra.mrb[0].mxu0 %v556
        %v938 = vpop.f32.mrb[0].mxu0
        %v939 = vadd.f32 0.0, %v938
        %v940 = vpop.f32.mrb[0].mxu0
        %941 = vmatprep.mubr.f32.mxu0 %v559
        %942 = vmatmul.mubr.f32.gmra.mrb[0].mxu0 %v558
        %v943 = vpop.f32.mrb[0].mxu0
        %v944 = vadd.f32 0.0, %v943
        %v945 = vpop.f32.mrb[0].mxu0
        %946 = vmatprep.mubr.f32.mxu0 %v561
        %947 = vmatmul.mubr.f32.gmra.mrb[0].mxu0 %v560
        %v948 = vpop.f32.mrb[0].mxu0
        %v949 = vadd.f32 0.0, %v948
        %v950 = vpop.f32.mrb[0].mxu0
        %951 = vmatprep.mubr.f32.mxu0 %v563
        %952 = vmatmul.mubr.f32.gmra.mrb[0].mxu0 %v562
        %v953 = vpop.f32.mrb[0].mxu0
        %v954 = vadd.f32 0.0, %v953
        %v955 = vpop.f32.mrb[0].mxu0
        %956 = vmatprep.mubr.f32.mxu0 %v565
        %957 = vmatmul.mubr.f32.gmra.mrb[0].mxu0 %v564
        %v958 = vpop.f32.mrb[0].mxu0
        %v959 = vadd.f32 0.0, %v958
        %v960 = vpop.f32.mrb[0].mxu0
        %961 = vmatprep.mubr.f32.mxu0 %v567
        %962 = vmatmul.mubr.f32.gmra.mrb[0].mxu0 %v566
        %v963 = vpop.f32.mrb[0].mxu0
        %v964 = vadd.f32 0.0, %v963
        %v965 = vpop.f32.mrb[0].mxu0
        %966 = vmatprep.mubr.f32.mxu0 %v569
        %967 = vmatmul.mubr.f32.gmra.mrb[0].mxu0 %v568
        %v968 = vpop.f32.mrb[0].mxu0
        %v969 = vadd.f32 0.0, %v968
        %v970 = vpop.f32.mrb[0].mxu0
        %971 = vmatprep.mubr.f32.mxu0 %v571
        %972 = vmatmul.mubr.f32.gmra.mrb[0].mxu0 %v570
        %v973 = vpop.f32.mrb[0].mxu0
        %v974 = vadd.f32 0.0, %v973
        %v975 = vpop.f32.mrb[0].mxu0
        %976 = vmatprep.mubr.f32.mxu0 %v573
        %977 = vmatmul.mubr.f32.gmra.mrb[0].mxu0 %v572
        %v978 = vpop.f32.mrb[0].mxu0
        %v979 = vadd.f32 0.0, %v978
        %v980 = vpop.f32.mrb[0].mxu0
        %981 = vmatprep.mubr.f32.mxu0 %v575
        %982 = vmatmul.mubr.f32.gmra.mrb[0].mxu0 %v574
        %v983 = vpop.f32.mrb[0].mxu0
        %v984 = vadd.f32 0.0, %v983
        %v985 = vpop.f32.mrb[0].mxu0
        %986 = vmatprep.mubr.f32.mxu0 %v577
        %987 = vmatmul.mubr.f32.gmra.mrb[0].mxu0 %v576
        %v988 = vpop.f32.mrb[0].mxu0
        %v989 = vadd.f32 0.0, %v988
        %v990 = vpop.f32.mrb[0].mxu0
        %991 = vmatprep.mubr.f32.mxu0 %v579
        %992 = vmatmul.mubr.f32.gmra.mrb[0].mxu0 %v578
        %v993 = vpop.f32.mrb[0].mxu0
        %v994 = vadd.f32 0.0, %v993
        %v995 = vpop.f32.mrb[0].mxu0
        %996 = vdwg.mxu0
        %v997 = vmax.f32 %v679, 0.0
        %v998 = vmax.f32 %v684, 0.0
        %v999 = vmax.f32 %v689, 0.0
        %v1000 = vmax.f32 %v694, 0.0
        %v1001 = vmax.f32 %v699, 0.0
        %v1002 = vmax.f32 %v704, 0.0
        %v1003 = vmax.f32 %v709, 0.0
        %v1004 = vmax.f32 %v714, 0.0
        %v1005 = vmax.f32 %v719, 0.0
        %v1006 = vmax.f32 %v724, 0.0
        %v1007 = vmax.f32 %v729, 0.0
        %v1008 = vmax.f32 %v734, 0.0
        %v1009 = vmax.f32 %v739, 0.0
        %v1010 = vmax.f32 %v744, 0.0
        %v1011 = vmax.f32 %v749, 0.0
        %v1012 = vmax.f32 %v754, 0.0
        %v1013 = vmax.f32 %v759, 0.0
        %v1014 = vmax.f32 %v764, 0.0
        %v1015 = vmax.f32 %v769, 0.0
        %v1016 = vmax.f32 %v774, 0.0
        %v1017 = vmax.f32 %v779, 0.0
        %v1018 = vmax.f32 %v784, 0.0
        %v1019 = vmax.f32 %v789, 0.0
        %v1020 = vmax.f32 %v794, 0.0
        %v1021 = vmax.f32 %v799, 0.0
        %v1022 = vmax.f32 %v804, 0.0
        %v1023 = vmax.f32 %v809, 0.0
        %v1024 = vmax.f32 %v814, 0.0
        %v1025 = vmax.f32 %v819, 0.0
        %v1026 = vmax.f32 %v824, 0.0
        %v1027 = vmax.f32 %v829, 0.0
        %v1028 = vmax.f32 %v834, 0.0
        %v1029 = vmax.f32 %v839, 0.0
        %v1030 = vmax.f32 %v844, 0.0
        %v1031 = vmax.f32 %v849, 0.0
        %v1032 = vmax.f32 %v854, 0.0
        %v1033 = vmax.f32 %v859, 0.0
        %v1034 = vmax.f32 %v864, 0.0
        %v1035 = vmax.f32 %v869, 0.0
        %v1036 = vmax.f32 %v874, 0.0
        %v1037 = vmax.f32 %v879, 0.0
        %v1038 = vmax.f32 %v884, 0.0
        %v1039 = vmax.f32 %v889, 0.0
        %v1040 = vmax.f32 %v894, 0.0
        %v1041 = vmax.f32 %v899, 0.0
        %v1042 = vmax.f32 %v904, 0.0
        %v1043 = vmax.f32 %v909, 0.0
        %v1044 = vmax.f32 %v914, 0.0
        %v1045 = vmax.f32 %v919, 0.0
        %v1046 = vmax.f32 %v924, 0.0
        %v1047 = vmax.f32 %v929, 0.0
        %v1048 = vmax.f32 %v934, 0.0
        %v1049 = vmax.f32 %v939, 0.0
        %v1050 = vmax.f32 %v944, 0.0
        %v1051 = vmax.f32 %v949, 0.0
        %v1052 = vmax.f32 %v954, 0.0
        %v1053 = vmax.f32 %v959, 0.0
        %v1054 = vmax.f32 %v964, 0.0
        %v1055 = vmax.f32 %v969, 0.0
        %v1056 = vmax.f32 %v974, 0.0
        %v1057 = vmax.f32 %v979, 0.0
        %v1058 = vmax.f32 %v984, 0.0
        %v1059 = vmax.f32 %v989, 0.0
        %v1060 = vmax.f32 %v994, 0.0
        %v1061 = vld [vmem:[#allocation8] sm:$0xff]
        %v1062 = vld [vmem:[#allocation8 + $0x8] sm:$0xff]
        %v1063 = vld [vmem:[#allocation8 + $0x10] sm:$0xff]
        %v1064 = vld [vmem:[#allocation8 + $0x18] sm:$0xff]
        %v1065 = vld [vmem:[#allocation8 + $0x20] sm:$0xff]
        %v1066 = vld [vmem:[#allocation8 + $0x28] sm:$0xff]
        %v1067 = vld [vmem:[#allocation8 + $0x30] sm:$0xff]
        %v1068 = vld [vmem:[#allocation8 + $0x38] sm:$0xff]
        %v1069 = vld [vmem:[#allocation8 + $0x40] sm:$0xff]
        %v1070 = vld [vmem:[#allocation8 + $0x48] sm:$0xff]
        %v1071 = vld [vmem:[#allocation8 + $0x50] sm:$0xff]
        %v1072 = vld [vmem:[#allocation8 + $0x58] sm:$0xff]
        %v1073 = vld [vmem:[#allocation8 + $0x60] sm:$0xff]
        %v1074 = vld [vmem:[#allocation8 + $0x68] sm:$0xff]
        %v1075 = vld [vmem:[#allocation8 + $0x70] sm:$0xff]
        %v1076 = vld [vmem:[#allocation8 + $0x78] sm:$0xff]
        %v1077 = vld [vmem:[#allocation8 + $0x80] sm:$0xff]
        %v1078 = vld [vmem:[#allocation8 + $0x88] sm:$0xff]
        %v1079 = vld [vmem:[#allocation8 + $0x90] sm:$0xff]
        %v1080 = vld [vmem:[#allocation8 + $0x98] sm:$0xff]
        %v1081 = vld [vmem:[#allocation8 + $0xa0] sm:$0xff]
        %v1082 = vld [vmem:[#allocation8 + $0xa8] sm:$0xff]
        %v1083 = vld [vmem:[#allocation8 + $0xb0] sm:$0xff]
        %v1084 = vld [vmem:[#allocation8 + $0xb8] sm:$0xff]
        %v1085 = vld [vmem:[#allocation8 + $0xc0] sm:$0xff]
        %v1086 = vld [vmem:[#allocation8 + $0xc8] sm:$0xff]
        %v1087 = vld [vmem:[#allocation8 + $0xd0] sm:$0xff]
        %v1088 = vld [vmem:[#allocation8 + $0xd8] sm:$0xff]
        %v1089 = vld [vmem:[#allocation8 + $0xe0] sm:$0xff]
        %v1090 = vld [vmem:[#allocation8 + $0xe8] sm:$0xff]
        %v1091 = vld [vmem:[#allocation8 + $0xf0] sm:$0xff]
        %v1092 = vld [vmem:[#allocation8 + $0xf8] sm:$0xff]
        %v1093 = vld [vmem:[%s3] sm:$0x3]
        %v1095 = vlaneseq
        %v1096 = vshrl.u32 %v1095, 7
        %v1097 = vsub.s32 0, %v1096
        %v1098 = vrot.slane %v1093, %v1097
        %v1099 = vlaneseq
        %v1100 = vshrl.u32 %v1099, 7
        %v1101 = vsub.s32 1, %v1100
        %v1102 = vrot.slane %v1093, %v1101
        %1105 = vmatprep.subr.mxu0 %v1062
        %1106 = vmatpush1.msra.mxu0 %v1061
        %1107 = vmatprep.subr.mxu0 %v1064
        %1108 = vmatpush1.msra.mxu0 %v1063
        %1109 = vmatprep.subr.mxu0 %v1066
        %1110 = vmatpush1.msra.mxu0 %v1065
        %1111 = vmatprep.subr.mxu0 %v1068
        %1112 = vmatpush1.msra.mxu0 %v1067
        %1113 = vmatprep.subr.mxu0 %v1070
        %1114 = vmatpush1.msra.mxu0 %v1069
        %1115 = vmatprep.subr.mxu0 %v1072
        %1116 = vmatpush1.msra.mxu0 %v1071
        %1117 = vmatprep.subr.mxu0 %v1074
        %1118 = vmatpush1.msra.mxu0 %v1073
        %1119 = vmatprep.subr.mxu0 %v1076
        %1120 = vmatpush1.msra.mxu0 %v1075
        %1121 = vmatprep.subr.mxu0 %v1078
        %1122 = vmatpush1.msra.mxu0 %v1077
        %1123 = vmatprep.subr.mxu0 %v1080
        %1124 = vmatpush1.msra.mxu0 %v1079
        %1125 = vmatprep.subr.mxu0 %v1082
        %1126 = vmatpush1.msra.mxu0 %v1081
        %1127 = vmatprep.subr.mxu0 %v1084
        %1128 = vmatpush1.msra.mxu0 %v1083
        %1129 = vmatprep.subr.mxu0 %v1086
        %1130 = vmatpush1.msra.mxu0 %v1085
        %1131 = vmatprep.subr.mxu0 %v1088
        %1132 = vmatpush1.msra.mxu0 %v1087
        %1133 = vmatprep.subr.mxu0 %v1090
        %1134 = vmatpush1.msra.mxu0 %v1089
        %1135 = vmatprep.subr.mxu0 %v1092
        %1136 = vmatpush1.msra.mxu0 %v1091
        %1137 = vmatprep.subr.mxu0 0.0
        %1138 = vmatpush1.msra.mxu0 0.0
        %1139 = vmatprep.subr.mxu0 0.0
        %1140 = vmatpush1.msra.mxu0 0.0
        %1141 = vmatprep.subr.mxu0 0.0
        %1142 = vmatpush1.msra.mxu0 0.0
        %1143 = vmatprep.subr.mxu0 0.0
        %1144 = vmatpush1.msra.mxu0 0.0
        %1145 = vmatprep.subr.mxu0 0.0
        %1146 = vmatpush1.msra.mxu0 0.0
        %1147 = vmatprep.subr.mxu0 0.0
        %1148 = vmatpush1.msra.mxu0 0.0
        %1149 = vmatprep.subr.mxu0 0.0
        %1150 = vmatpush1.msra.mxu0 0.0
        %1151 = vmatprep.subr.mxu0 0.0
        %1152 = vmatpush1.msra.mxu0 0.0
        %1153 = vmatprep.subr.mxu0 0.0
        %1154 = vmatpush1.msra.mxu0 0.0
        %1155 = vmatprep.subr.mxu0 0.0
        %1156 = vmatpush1.msra.mxu0 0.0
        %1157 = vmatprep.subr.mxu0 0.0
        %1158 = vmatpush1.msra.mxu0 0.0
        %1159 = vmatprep.subr.mxu0 0.0
        %1160 = vmatpush1.msra.mxu0 0.0
        %1161 = vmatprep.subr.mxu0 0.0
        %1162 = vmatpush1.msra.mxu0 0.0
        %1163 = vmatprep.subr.mxu0 0.0
        %1164 = vmatpush1.msra.mxu0 0.0
        %1165 = vmatprep.subr.mxu0 0.0
        %1166 = vmatpush1.msra.mxu0 0.0
        %1167 = vmatprep.subr.mxu0 0.0
        %1168 = vmatpush1.msra.mxu0 0.0
        %1169 = vmatprep.mubr.f32.mxu0 0.0
        %1170 = vmatmul.mubr.f32.gmra.mrb[0].mxu0 %v997
        %v1171 = vpop.f32.mrb[0].mxu0
        %v1172 = vadd.f32 %v1098, %v1171
        %v1173 = vpop.f32.mrb[0].mxu0
        %v1174 = vadd.f32 %v1102, %v1173
        %1175 = vmatprep.mubr.f32.mxu0 0.0
        %1176 = vmatmul.mubr.f32.gmra.mrb[0].mxu0 %v998
        %v1177 = vpop.f32.mrb[0].mxu0
        %v1178 = vadd.f32 %v1098, %v1177
        %v1179 = vpop.f32.mrb[0].mxu0
        %v1180 = vadd.f32 %v1102, %v1179
        %1181 = vmatprep.mubr.f32.mxu0 0.0
        %1182 = vmatmul.mubr.f32.gmra.mrb[0].mxu0 %v999
        %v1183 = vpop.f32.mrb[0].mxu0
        %v1184 = vadd.f32 %v1098, %v1183
        %v1185 = vpop.f32.mrb[0].mxu0
        %v1186 = vadd.f32 %v1102, %v1185
        %1187 = vmatprep.mubr.f32.mxu0 0.0
        %1188 = vmatmul.mubr.f32.gmra.mrb[0].mxu0 %v1000
        %v1189 = vpop.f32.mrb[0].mxu0
        %v1190 = vadd.f32 %v1098, %v1189
        %v1191 = vpop.f32.mrb[0].mxu0
        %v1192 = vadd.f32 %v1102, %v1191
        %1193 = vmatprep.mubr.f32.mxu0 0.0
        %1194 = vmatmul.mubr.f32.gmra.mrb[0].mxu0 %v1001
        %v1195 = vpop.f32.mrb[0].mxu0
        %v1196 = vadd.f32 %v1098, %v1195
        %v1197 = vpop.f32.mrb[0].mxu0
        %v1198 = vadd.f32 %v1102, %v1197
        %1199 = vmatprep.mubr.f32.mxu0 0.0
        %1200 = vmatmul.mubr.f32.gmra.mrb[0].mxu0 %v1002
        %v1201 = vpop.f32.mrb[0].mxu0
        %v1202 = vadd.f32 %v1098, %v1201
        %v1203 = vpop.f32.mrb[0].mxu0
        %v1204 = vadd.f32 %v1102, %v1203
        %1205 = vmatprep.mubr.f32.mxu0 0.0
        %1206 = vmatmul.mubr.f32.gmra.mrb[0].mxu0 %v1003
        %v1207 = vpop.f32.mrb[0].mxu0
        %v1208 = vadd.f32 %v1098, %v1207
        %v1209 = vpop.f32.mrb[0].mxu0
        %v1210 = vadd.f32 %v1102, %v1209
        %1211 = vmatprep.mubr.f32.mxu0 0.0
        %1212 = vmatmul.mubr.f32.gmra.mrb[0].mxu0 %v1004
        %v1213 = vpop.f32.mrb[0].mxu0
        %v1214 = vadd.f32 %v1098, %v1213
        %v1215 = vpop.f32.mrb[0].mxu0
        %v1216 = vadd.f32 %v1102, %v1215
        %1217 = vmatprep.mubr.f32.mxu0 0.0
        %1218 = vmatmul.mubr.f32.gmra.mrb[0].mxu0 %v1005
        %v1219 = vpop.f32.mrb[0].mxu0
        %v1220 = vadd.f32 %v1098, %v1219
        %v1221 = vpop.f32.mrb[0].mxu0
        %v1222 = vadd.f32 %v1102, %v1221
        %1223 = vmatprep.mubr.f32.mxu0 0.0
        %1224 = vmatmul.mubr.f32.gmra.mrb[0].mxu0 %v1006
        %v1225 = vpop.f32.mrb[0].mxu0
        %v1226 = vadd.f32 %v1098, %v1225
        %v1227 = vpop.f32.mrb[0].mxu0
        %v1228 = vadd.f32 %v1102, %v1227
        %1229 = vmatprep.mubr.f32.mxu0 0.0
        %1230 = vmatmul.mubr.f32.gmra.mrb[0].mxu0 %v1007
        %v1231 = vpop.f32.mrb[0].mxu0
        %v1232 = vadd.f32 %v1098, %v1231
        %v1233 = vpop.f32.mrb[0].mxu0
        %v1234 = vadd.f32 %v1102, %v1233
        %1235 = vmatprep.mubr.f32.mxu0 0.0
        %1236 = vmatmul.mubr.f32.gmra.mrb[0].mxu0 %v1008
        %v1237 = vpop.f32.mrb[0].mxu0
        %v1238 = vadd.f32 %v1098, %v1237
        %v1239 = vpop.f32.mrb[0].mxu0
        %v1240 = vadd.f32 %v1102, %v1239
        %1241 = vmatprep.mubr.f32.mxu0 0.0
        %1242 = vmatmul.mubr.f32.gmra.mrb[0].mxu0 %v1009
        %v1243 = vpop.f32.mrb[0].mxu0
        %v1244 = vadd.f32 %v1098, %v1243
        %v1245 = vpop.f32.mrb[0].mxu0
        %v1246 = vadd.f32 %v1102, %v1245
        %1247 = vmatprep.mubr.f32.mxu0 0.0
        %1248 = vmatmul.mubr.f32.gmra.mrb[0].mxu0 %v1010
        %v1249 = vpop.f32.mrb[0].mxu0
        %v1250 = vadd.f32 %v1098, %v1249
        %v1251 = vpop.f32.mrb[0].mxu0
        %v1252 = vadd.f32 %v1102, %v1251
        %1253 = vmatprep.mubr.f32.mxu0 0.0
        %1254 = vmatmul.mubr.f32.gmra.mrb[0].mxu0 %v1011
        %v1255 = vpop.f32.mrb[0].mxu0
        %v1256 = vadd.f32 %v1098, %v1255
        %v1257 = vpop.f32.mrb[0].mxu0
        %v1258 = vadd.f32 %v1102, %v1257
        %1259 = vmatprep.mubr.f32.mxu0 0.0
        %1260 = vmatmul.mubr.f32.gmra.mrb[0].mxu0 %v1012
        %v1261 = vpop.f32.mrb[0].mxu0
        %v1262 = vadd.f32 %v1098, %v1261
        %v1263 = vpop.f32.mrb[0].mxu0
        %v1264 = vadd.f32 %v1102, %v1263
        %1265 = vmatprep.mubr.f32.mxu0 0.0
        %1266 = vmatmul.mubr.f32.gmra.mrb[0].mxu0 %v1013
        %v1267 = vpop.f32.mrb[0].mxu0
        %v1268 = vadd.f32 %v1098, %v1267
        %v1269 = vpop.f32.mrb[0].mxu0
        %v1270 = vadd.f32 %v1102, %v1269
        %1271 = vmatprep.mubr.f32.mxu0 0.0
        %1272 = vmatmul.mubr.f32.gmra.mrb[0].mxu0 %v1014
        %v1273 = vpop.f32.mrb[0].mxu0
        %v1274 = vadd.f32 %v1098, %v1273
        %v1275 = vpop.f32.mrb[0].mxu0
        %v1276 = vadd.f32 %v1102, %v1275
        %1277 = vmatprep.mubr.f32.mxu0 0.0
        %1278 = vmatmul.mubr.f32.gmra.mrb[0].mxu0 %v1015
        %v1279 = vpop.f32.mrb[0].mxu0
        %v1280 = vadd.f32 %v1098, %v1279
        %v1281 = vpop.f32.mrb[0].mxu0
        %v1282 = vadd.f32 %v1102, %v1281
        %1283 = vmatprep.mubr.f32.mxu0 0.0
        %1284 = vmatmul.mubr.f32.gmra.mrb[0].mxu0 %v1016
        %v1285 = vpop.f32.mrb[0].mxu0
        %v1286 = vadd.f32 %v1098, %v1285
        %v1287 = vpop.f32.mrb[0].mxu0
        %v1288 = vadd.f32 %v1102, %v1287
        %1289 = vmatprep.mubr.f32.mxu0 0.0
        %1290 = vmatmul.mubr.f32.gmra.mrb[0].mxu0 %v1017
        %v1291 = vpop.f32.mrb[0].mxu0
        %v1292 = vadd.f32 %v1098, %v1291
        %v1293 = vpop.f32.mrb[0].mxu0
        %v1294 = vadd.f32 %v1102, %v1293
        %1295 = vmatprep.mubr.f32.mxu0 0.0
        %1296 = vmatmul.mubr.f32.gmra.mrb[0].mxu0 %v1018
        %v1297 = vpop.f32.mrb[0].mxu0
        %v1298 = vadd.f32 %v1098, %v1297
        %v1299 = vpop.f32.mrb[0].mxu0
        %v1300 = vadd.f32 %v1102, %v1299
        %1301 = vmatprep.mubr.f32.mxu0 0.0
        %1302 = vmatmul.mubr.f32.gmra.mrb[0].mxu0 %v1019
        %v1303 = vpop.f32.mrb[0].mxu0
        %v1304 = vadd.f32 %v1098, %v1303
        %v1305 = vpop.f32.mrb[0].mxu0
        %v1306 = vadd.f32 %v1102, %v1305
        %1307 = vmatprep.mubr.f32.mxu0 0.0
        %1308 = vmatmul.mubr.f32.gmra.mrb[0].mxu0 %v1020
        %v1309 = vpop.f32.mrb[0].mxu0
        %v1310 = vadd.f32 %v1098, %v1309
        %v1311 = vpop.f32.mrb[0].mxu0
        %v1312 = vadd.f32 %v1102, %v1311
        %1313 = vmatprep.mubr.f32.mxu0 0.0
        %1314 = vmatmul.mubr.f32.gmra.mrb[0].mxu0 %v1021
        %v1315 = vpop.f32.mrb[0].mxu0
        %v1316 = vadd.f32 %v1098, %v1315
        %v1317 = vpop.f32.mrb[0].mxu0
        %v1318 = vadd.f32 %v1102, %v1317
        %1319 = vmatprep.mubr.f32.mxu0 0.0
        %1320 = vmatmul.mubr.f32.gmra.mrb[0].mxu0 %v1022
        %v1321 = vpop.f32.mrb[0].mxu0
        %v1322 = vadd.f32 %v1098, %v1321
        %v1323 = vpop.f32.mrb[0].mxu0
        %v1324 = vadd.f32 %v1102, %v1323
        %1325 = vmatprep.mubr.f32.mxu0 0.0
        %1326 = vmatmul.mubr.f32.gmra.mrb[0].mxu0 %v1023
        %v1327 = vpop.f32.mrb[0].mxu0
        %v1328 = vadd.f32 %v1098, %v1327
        %v1329 = vpop.f32.mrb[0].mxu0
        %v1330 = vadd.f32 %v1102, %v1329
        %1331 = vmatprep.mubr.f32.mxu0 0.0
        %1332 = vmatmul.mubr.f32.gmra.mrb[0].mxu0 %v1024
        %v1333 = vpop.f32.mrb[0].mxu0
        %v1334 = vadd.f32 %v1098, %v1333
        %v1335 = vpop.f32.mrb[0].mxu0
        %v1336 = vadd.f32 %v1102, %v1335
        %1337 = vmatprep.mubr.f32.mxu0 0.0
        %1338 = vmatmul.mubr.f32.gmra.mrb[0].mxu0 %v1025
        %v1339 = vpop.f32.mrb[0].mxu0
        %v1340 = vadd.f32 %v1098, %v1339
        %v1341 = vpop.f32.mrb[0].mxu0
        %v1342 = vadd.f32 %v1102, %v1341
        %1343 = vmatprep.mubr.f32.mxu0 0.0
        %1344 = vmatmul.mubr.f32.gmra.mrb[0].mxu0 %v1026
        %v1345 = vpop.f32.mrb[0].mxu0
        %v1346 = vadd.f32 %v1098, %v1345
        %v1347 = vpop.f32.mrb[0].mxu0
        %v1348 = vadd.f32 %v1102, %v1347
        %1349 = vmatprep.mubr.f32.mxu0 0.0
        %1350 = vmatmul.mubr.f32.gmra.mrb[0].mxu0 %v1027
        %v1351 = vpop.f32.mrb[0].mxu0
        %v1352 = vadd.f32 %v1098, %v1351
        %v1353 = vpop.f32.mrb[0].mxu0
        %v1354 = vadd.f32 %v1102, %v1353
        %1355 = vmatprep.mubr.f32.mxu0 0.0
        %1356 = vmatmul.mubr.f32.gmra.mrb[0].mxu0 %v1028
        %v1357 = vpop.f32.mrb[0].mxu0
        %v1358 = vadd.f32 %v1098, %v1357
        %v1359 = vpop.f32.mrb[0].mxu0
        %v1360 = vadd.f32 %v1102, %v1359
        %1361 = vmatprep.mubr.f32.mxu0 0.0
        %1362 = vmatmul.mubr.f32.gmra.mrb[0].mxu0 %v1029
        %v1363 = vpop.f32.mrb[0].mxu0
        %v1364 = vadd.f32 %v1098, %v1363
        %v1365 = vpop.f32.mrb[0].mxu0
        %v1366 = vadd.f32 %v1102, %v1365
        %1367 = vmatprep.mubr.f32.mxu0 0.0
        %1368 = vmatmul.mubr.f32.gmra.mrb[0].mxu0 %v1030
        %v1369 = vpop.f32.mrb[0].mxu0
        %v1370 = vadd.f32 %v1098, %v1369
        %v1371 = vpop.f32.mrb[0].mxu0
        %v1372 = vadd.f32 %v1102, %v1371
        %1373 = vmatprep.mubr.f32.mxu0 0.0
        %1374 = vmatmul.mubr.f32.gmra.mrb[0].mxu0 %v1031
        %v1375 = vpop.f32.mrb[0].mxu0
        %v1376 = vadd.f32 %v1098, %v1375
        %v1377 = vpop.f32.mrb[0].mxu0
        %v1378 = vadd.f32 %v1102, %v1377
        %1379 = vmatprep.mubr.f32.mxu0 0.0
        %1380 = vmatmul.mubr.f32.gmra.mrb[0].mxu0 %v1032
        %v1381 = vpop.f32.mrb[0].mxu0
        %v1382 = vadd.f32 %v1098, %v1381
        %v1383 = vpop.f32.mrb[0].mxu0
        %v1384 = vadd.f32 %v1102, %v1383
        %1385 = vmatprep.mubr.f32.mxu0 0.0
        %1386 = vmatmul.mubr.f32.gmra.mrb[0].mxu0 %v1033
        %v1387 = vpop.f32.mrb[0].mxu0
        %v1388 = vadd.f32 %v1098, %v1387
        %v1389 = vpop.f32.mrb[0].mxu0
        %v1390 = vadd.f32 %v1102, %v1389
        %1391 = vmatprep.mubr.f32.mxu0 0.0
        %1392 = vmatmul.mubr.f32.gmra.mrb[0].mxu0 %v1034
        %v1393 = vpop.f32.mrb[0].mxu0
        %v1394 = vadd.f32 %v1098, %v1393
        %v1395 = vpop.f32.mrb[0].mxu0
        %v1396 = vadd.f32 %v1102, %v1395
        %1397 = vmatprep.mubr.f32.mxu0 0.0
        %1398 = vmatmul.mubr.f32.gmra.mrb[0].mxu0 %v1035
        %v1399 = vpop.f32.mrb[0].mxu0
        %v1400 = vadd.f32 %v1098, %v1399
        %v1401 = vpop.f32.mrb[0].mxu0
        %v1402 = vadd.f32 %v1102, %v1401
        %1403 = vmatprep.mubr.f32.mxu0 0.0
        %1404 = vmatmul.mubr.f32.gmra.mrb[0].mxu0 %v1036
        %v1405 = vpop.f32.mrb[0].mxu0
        %v1406 = vadd.f32 %v1098, %v1405
        %v1407 = vpop.f32.mrb[0].mxu0
        %v1408 = vadd.f32 %v1102, %v1407
        %1409 = vmatprep.mubr.f32.mxu0 0.0
        %1410 = vmatmul.mubr.f32.gmra.mrb[0].mxu0 %v1037
        %v1411 = vpop.f32.mrb[0].mxu0
        %v1412 = vadd.f32 %v1098, %v1411
        %v1413 = vpop.f32.mrb[0].mxu0
        %v1414 = vadd.f32 %v1102, %v1413
        %1415 = vmatprep.mubr.f32.mxu0 0.0
        %1416 = vmatmul.mubr.f32.gmra.mrb[0].mxu0 %v1038
        %v1417 = vpop.f32.mrb[0].mxu0
        %v1418 = vadd.f32 %v1098, %v1417
        %v1419 = vpop.f32.mrb[0].mxu0
        %v1420 = vadd.f32 %v1102, %v1419
        %1421 = vmatprep.mubr.f32.mxu0 0.0
        %1422 = vmatmul.mubr.f32.gmra.mrb[0].mxu0 %v1039
        %v1423 = vpop.f32.mrb[0].mxu0
        %v1424 = vadd.f32 %v1098, %v1423
        %v1425 = vpop.f32.mrb[0].mxu0
        %v1426 = vadd.f32 %v1102, %v1425
        %1427 = vmatprep.mubr.f32.mxu0 0.0
        %1428 = vmatmul.mubr.f32.gmra.mrb[0].mxu0 %v1040
        %v1429 = vpop.f32.mrb[0].mxu0
        %v1430 = vadd.f32 %v1098, %v1429
        %v1431 = vpop.f32.mrb[0].mxu0
        %v1432 = vadd.f32 %v1102, %v1431
        %1433 = vmatprep.mubr.f32.mxu0 0.0
        %1434 = vmatmul.mubr.f32.gmra.mrb[0].mxu0 %v1041
        %v1435 = vpop.f32.mrb[0].mxu0
        %v1436 = vadd.f32 %v1098, %v1435
        %v1437 = vpop.f32.mrb[0].mxu0
        %v1438 = vadd.f32 %v1102, %v1437
        %1439 = vmatprep.mubr.f32.mxu0 0.0
        %1440 = vmatmul.mubr.f32.gmra.mrb[0].mxu0 %v1042
        %v1441 = vpop.f32.mrb[0].mxu0
        %v1442 = vadd.f32 %v1098, %v1441
        %v1443 = vpop.f32.mrb[0].mxu0
        %v1444 = vadd.f32 %v1102, %v1443
        %1445 = vmatprep.mubr.f32.mxu0 0.0
        %1446 = vmatmul.mubr.f32.gmra.mrb[0].mxu0 %v1043
        %v1447 = vpop.f32.mrb[0].mxu0
        %v1448 = vadd.f32 %v1098, %v1447
        %v1449 = vpop.f32.mrb[0].mxu0
        %v1450 = vadd.f32 %v1102, %v1449
        %1451 = vmatprep.mubr.f32.mxu0 0.0
        %1452 = vmatmul.mubr.f32.gmra.mrb[0].mxu0 %v1044
        %v1453 = vpop.f32.mrb[0].mxu0
        %v1454 = vadd.f32 %v1098, %v1453
        %v1455 = vpop.f32.mrb[0].mxu0
        %v1456 = vadd.f32 %v1102, %v1455
        %1457 = vmatprep.mubr.f32.mxu0 0.0
        %1458 = vmatmul.mubr.f32.gmra.mrb[0].mxu0 %v1045
        %v1459 = vpop.f32.mrb[0].mxu0
        %v1460 = vadd.f32 %v1098, %v1459
        %v1461 = vpop.f32.mrb[0].mxu0
        %v1462 = vadd.f32 %v1102, %v1461
        %1463 = vmatprep.mubr.f32.mxu0 0.0
        %1464 = vmatmul.mubr.f32.gmra.mrb[0].mxu0 %v1046
        %v1465 = vpop.f32.mrb[0].mxu0
        %v1466 = vadd.f32 %v1098, %v1465
        %v1467 = vpop.f32.mrb[0].mxu0
        %v1468 = vadd.f32 %v1102, %v1467
        %1469 = vmatprep.mubr.f32.mxu0 0.0
        %1470 = vmatmul.mubr.f32.gmra.mrb[0].mxu0 %v1047
        %v1471 = vpop.f32.mrb[0].mxu0
        %v1472 = vadd.f32 %v1098, %v1471
        %v1473 = vpop.f32.mrb[0].mxu0
        %v1474 = vadd.f32 %v1102, %v1473
        %1475 = vmatprep.mubr.f32.mxu0 0.0
        %1476 = vmatmul.mubr.f32.gmra.mrb[0].mxu0 %v1048
        %v1477 = vpop.f32.mrb[0].mxu0
        %v1478 = vadd.f32 %v1098, %v1477
        %v1479 = vpop.f32.mrb[0].mxu0
        %v1480 = vadd.f32 %v1102, %v1479
        %1481 = vmatprep.mubr.f32.mxu0 0.0
        %1482 = vmatmul.mubr.f32.gmra.mrb[0].mxu0 %v1049
        %v1483 = vpop.f32.mrb[0].mxu0
        %v1484 = vadd.f32 %v1098, %v1483
        %v1485 = vpop.f32.mrb[0].mxu0
        %v1486 = vadd.f32 %v1102, %v1485
        %1487 = vmatprep.mubr.f32.mxu0 0.0
        %1488 = vmatmul.mubr.f32.gmra.mrb[0].mxu0 %v1050
        %v1489 = vpop.f32.mrb[0].mxu0
        %v1490 = vadd.f32 %v1098, %v1489
        %v1491 = vpop.f32.mrb[0].mxu0
        %v1492 = vadd.f32 %v1102, %v1491
        %1493 = vmatprep.mubr.f32.mxu0 0.0
        %1494 = vmatmul.mubr.f32.gmra.mrb[0].mxu0 %v1051
        %v1495 = vpop.f32.mrb[0].mxu0
        %v1496 = vadd.f32 %v1098, %v1495
        %v1497 = vpop.f32.mrb[0].mxu0
        %v1498 = vadd.f32 %v1102, %v1497
        %1499 = vmatprep.mubr.f32.mxu0 0.0
        %1500 = vmatmul.mubr.f32.gmra.mrb[0].mxu0 %v1052
        %v1501 = vpop.f32.mrb[0].mxu0
        %v1502 = vadd.f32 %v1098, %v1501
        %v1503 = vpop.f32.mrb[0].mxu0
        %v1504 = vadd.f32 %v1102, %v1503
        %1505 = vmatprep.mubr.f32.mxu0 0.0
        %1506 = vmatmul.mubr.f32.gmra.mrb[0].mxu0 %v1053
        %v1507 = vpop.f32.mrb[0].mxu0
        %v1508 = vadd.f32 %v1098, %v1507
        %v1509 = vpop.f32.mrb[0].mxu0
        %v1510 = vadd.f32 %v1102, %v1509
        %1511 = vmatprep.mubr.f32.mxu0 0.0
        %1512 = vmatmul.mubr.f32.gmra.mrb[0].mxu0 %v1054
        %v1513 = vpop.f32.mrb[0].mxu0
        %v1514 = vadd.f32 %v1098, %v1513
        %v1515 = vpop.f32.mrb[0].mxu0
        %v1516 = vadd.f32 %v1102, %v1515
        %1517 = vmatprep.mubr.f32.mxu0 0.0
        %1518 = vmatmul.mubr.f32.gmra.mrb[0].mxu0 %v1055
        %v1519 = vpop.f32.mrb[0].mxu0
        %v1520 = vadd.f32 %v1098, %v1519
        %v1521 = vpop.f32.mrb[0].mxu0
        %v1522 = vadd.f32 %v1102, %v1521
        %1523 = vmatprep.mubr.f32.mxu0 0.0
        %1524 = vmatmul.mubr.f32.gmra.mrb[0].mxu0 %v1056
        %v1525 = vpop.f32.mrb[0].mxu0
        %v1526 = vadd.f32 %v1098, %v1525
        %v1527 = vpop.f32.mrb[0].mxu0
        %v1528 = vadd.f32 %v1102, %v1527
        %1529 = vmatprep.mubr.f32.mxu0 0.0
        %1530 = vmatmul.mubr.f32.gmra.mrb[0].mxu0 %v1057
        %v1531 = vpop.f32.mrb[0].mxu0
        %v1532 = vadd.f32 %v1098, %v1531
        %v1533 = vpop.f32.mrb[0].mxu0
        %v1534 = vadd.f32 %v1102, %v1533
        %1535 = vmatprep.mubr.f32.mxu0 0.0
        %1536 = vmatmul.mubr.f32.gmra.mrb[0].mxu0 %v1058
        %v1537 = vpop.f32.mrb[0].mxu0
        %v1538 = vadd.f32 %v1098, %v1537
        %v1539 = vpop.f32.mrb[0].mxu0
        %v1540 = vadd.f32 %v1102, %v1539
        %1541 = vmatprep.mubr.f32.mxu0 0.0
        %1542 = vmatmul.mubr.f32.gmra.mrb[0].mxu0 %v1059
        %v1543 = vpop.f32.mrb[0].mxu0
        %v1544 = vadd.f32 %v1098, %v1543
        %v1545 = vpop.f32.mrb[0].mxu0
        %v1546 = vadd.f32 %v1102, %v1545
        %1547 = vmatprep.mubr.f32.mxu0 0.0
        %1548 = vmatmul.mubr.f32.gmra.mrb[0].mxu0 %v1060
        %v1549 = vpop.f32.mrb[0].mxu0
        %v1550 = vadd.f32 %v1098, %v1549
        %v1551 = vpop.f32.mrb[0].mxu0
        %v1552 = vadd.f32 %v1102, %v1551
        %1553 = vdwg.mxu0
        %v1554 = vtanh.pop %v1172
        %v1555 = vtanh.pop %v1178
        %v1556 = vtanh.pop %v1184
        %v1557 = vtanh.pop %v1190
        %v1558 = vtanh.pop %v1196
        %v1559 = vtanh.pop %v1202
        %v1560 = vtanh.pop %v1208
        %v1561 = vtanh.pop %v1214
        %v1562 = vtanh.pop %v1220
        %v1563 = vtanh.pop %v1226
        %v1564 = vtanh.pop %v1232
        %v1565 = vtanh.pop %v1238
        %v1566 = vtanh.pop %v1244
        %v1567 = vtanh.pop %v1250
        %v1568 = vtanh.pop %v1256
        %v1569 = vtanh.pop %v1262
        %v1570 = vtanh.pop %v1268
        %v1571 = vtanh.pop %v1274
        %v1572 = vtanh.pop %v1280
        %v1573 = vtanh.pop %v1286
        %v1574 = vtanh.pop %v1292
        %v1575 = vtanh.pop %v1298
        %v1576 = vtanh.pop %v1304
        %v1577 = vtanh.pop %v1310
        %v1578 = vtanh.pop %v1316
        %v1579 = vtanh.pop %v1322
        %v1580 = vtanh.pop %v1328
        %v1581 = vtanh.pop %v1334
        %v1582 = vtanh.pop %v1340
        %v1583 = vtanh.pop %v1346
        %v1584 = vtanh.pop %v1352
        %v1585 = vtanh.pop %v1358
        %v1586 = vtanh.pop %v1364
        %v1587 = vtanh.pop %v1370
        %v1588 = vtanh.pop %v1376
        %v1589 = vtanh.pop %v1382
        %v1590 = vtanh.pop %v1388
        %v1591 = vtanh.pop %v1394
        %v1592 = vtanh.pop %v1400
        %v1593 = vtanh.pop %v1406
        %v1594 = vtanh.pop %v1412
        %v1595 = vtanh.pop %v1418
        %v1596 = vtanh.pop %v1424
        %v1597 = vtanh.pop %v1430
        %v1598 = vtanh.pop %v1436
        %v1599 = vtanh.pop %v1442
        %v1600 = vtanh.pop %v1448
        %v1601 = vtanh.pop %v1454
        %v1602 = vtanh.pop %v1460
        %v1603 = vtanh.pop %v1466
        %v1604 = vtanh.pop %v1472
        %v1605 = vtanh.pop %v1478
        %v1606 = vtanh.pop %v1484
        %v1607 = vtanh.pop %v1490
        %v1608 = vtanh.pop %v1496
        %v1609 = vtanh.pop %v1502
        %v1610 = vtanh.pop %v1508
        %v1611 = vtanh.pop %v1514
        %v1612 = vtanh.pop %v1520
        %v1613 = vtanh.pop %v1526
        %v1614 = vtanh.pop %v1532
        %v1615 = vtanh.pop %v1538
        %v1616 = vtanh.pop %v1544
        %v1617 = vtanh.pop %v1550
        %v1618 = vxor.u32 %v1174, 2147483648
        %v1619 = vxor.u32 %v1180, 2147483648
        %v1620 = vxor.u32 %v1186, 2147483648
        %v1621 = vxor.u32 %v1192, 2147483648
        %v1622 = vxor.u32 %v1198, 2147483648
        %v1623 = vxor.u32 %v1204, 2147483648
        %v1624 = vxor.u32 %v1210, 2147483648
        %v1625 = vxor.u32 %v1216, 2147483648
        %v1626 = vxor.u32 %v1222, 2147483648
        %v1627 = vxor.u32 %v1228, 2147483648
        %v1628 = vxor.u32 %v1234, 2147483648
        %v1629 = vxor.u32 %v1240, 2147483648
        %v1630 = vxor.u32 %v1246, 2147483648
        %v1631 = vxor.u32 %v1252, 2147483648
        %v1632 = vxor.u32 %v1258, 2147483648
        %v1633 = vxor.u32 %v1264, 2147483648
        %v1634 = vxor.u32 %v1270, 2147483648
        %v1635 = vxor.u32 %v1276, 2147483648
        %v1636 = vxor.u32 %v1282, 2147483648
        %v1637 = vxor.u32 %v1288, 2147483648
        %v1638 = vxor.u32 %v1294, 2147483648
        %v1639 = vxor.u32 %v1300, 2147483648
        %v1640 = vxor.u32 %v1306, 2147483648
        %v1641 = vxor.u32 %v1312, 2147483648
        %v1642 = vxor.u32 %v1318, 2147483648
        %v1643 = vxor.u32 %v1324, 2147483648
        %v1644 = vxor.u32 %v1330, 2147483648
        %v1645 = vxor.u32 %v1336, 2147483648
        %v1646 = vxor.u32 %v1342, 2147483648
        %v1647 = vxor.u32 %v1348, 2147483648
        %v1648 = vxor.u32 %v1354, 2147483648
        %v1649 = vxor.u32 %v1360, 2147483648
        %v1650 = vxor.u32 %v1366, 2147483648
        %v1651 = vxor.u32 %v1372, 2147483648
        %v1652 = vxor.u32 %v1378, 2147483648
        %v1653 = vxor.u32 %v1384, 2147483648
        %v1654 = vxor.u32 %v1390, 2147483648
        %v1655 = vxor.u32 %v1396, 2147483648
        %v1656 = vxor.u32 %v1402, 2147483648
        %v1657 = vxor.u32 %v1408, 2147483648
        %v1658 = vxor.u32 %v1414, 2147483648
        %v1659 = vxor.u32 %v1420, 2147483648
        %v1660 = vxor.u32 %v1426, 2147483648
        %v1661 = vxor.u32 %v1432, 2147483648
        %v1662 = vxor.u32 %v1438, 2147483648
        %v1663 = vxor.u32 %v1444, 2147483648
        %v1664 = vxor.u32 %v1450, 2147483648
        %v1665 = vxor.u32 %v1456, 2147483648
        %v1666 = vxor.u32 %v1462, 2147483648
        %v1667 = vxor.u32 %v1468, 2147483648
        %v1668 = vxor.u32 %v1474, 2147483648
        %v1669 = vxor.u32 %v1480, 2147483648
        %v1670 = vxor.u32 %v1486, 2147483648
        %v1671 = vxor.u32 %v1492, 2147483648
        %v1672 = vxor.u32 %v1498, 2147483648
        %v1673 = vxor.u32 %v1504, 2147483648
        %v1674 = vxor.u32 %v1510, 2147483648
        %v1675 = vxor.u32 %v1516, 2147483648
        %v1676 = vxor.u32 %v1522, 2147483648
        %v1677 = vxor.u32 %v1528, 2147483648
        %v1678 = vxor.u32 %v1534, 2147483648
        %v1679 = vxor.u32 %v1540, 2147483648
        %v1680 = vxor.u32 %v1546, 2147483648
        %v1681 = vxor.u32 %v1552, 2147483648
        %v1682 = vmul.f32 %v1618, 1.442695
        %v1683 = vpow.pop %v1682
        %v1684 = vmul.f32 %v1619, 1.442695
        %v1685 = vpow.pop %v1684
        %v1686 = vmul.f32 %v1620, 1.442695
        %v1687 = vpow.pop %v1686
        %v1688 = vmul.f32 %v1621, 1.442695
        %v1689 = vpow.pop %v1688
        %v1690 = vmul.f32 %v1622, 1.442695
        %v1691 = vpow.pop %v1690
        %v1692 = vmul.f32 %v1623, 1.442695
        %v1693 = vpow.pop %v1692
        %v1694 = vmul.f32 %v1624, 1.442695
        %v1695 = vpow.pop %v1694
        %v1696 = vmul.f32 %v1625, 1.442695
        %v1697 = vpow.pop %v1696
        %v1698 = vmul.f32 %v1626, 1.442695
        %v1699 = vpow.pop %v1698
        %v1700 = vmul.f32 %v1627, 1.442695
        %v1701 = vpow.pop %v1700
        %v1702 = vmul.f32 %v1628, 1.442695
        %v1703 = vpow.pop %v1702
        %v1704 = vmul.f32 %v1629, 1.442695
        %v1705 = vpow.pop %v1704
        %v1706 = vmul.f32 %v1630, 1.442695
        %v1707 = vpow.pop %v1706
        %v1708 = vmul.f32 %v1631, 1.442695
        %v1709 = vpow.pop %v1708
        %v1710 = vmul.f32 %v1632, 1.442695
        %v1711 = vpow.pop %v1710
        %v1712 = vmul.f32 %v1633, 1.442695
        %v1713 = vpow.pop %v1712
        %v1714 = vmul.f32 %v1634, 1.442695
        %v1715 = vpow.pop %v1714
        %v1716 = vmul.f32 %v1635, 1.442695
        %v1717 = vpow.pop %v1716
        %v1718 = vmul.f32 %v1636, 1.442695
        %v1719 = vpow.pop %v1718
        %v1720 = vmul.f32 %v1637, 1.442695
        %v1721 = vpow.pop %v1720
        %v1722 = vmul.f32 %v1638, 1.442695
        %v1723 = vpow.pop %v1722
        %v1724 = vmul.f32 %v1639, 1.442695
        %v1725 = vpow.pop %v1724
        %v1726 = vmul.f32 %v1640, 1.442695
        %v1727 = vpow.pop %v1726
        %v1728 = vmul.f32 %v1641, 1.442695
        %v1729 = vpow.pop %v1728
        %v1730 = vmul.f32 %v1642, 1.442695
        %v1731 = vpow.pop %v1730
        %v1732 = vmul.f32 %v1643, 1.442695
        %v1733 = vpow.pop %v1732
        %v1734 = vmul.f32 %v1644, 1.442695
        %v1735 = vpow.pop %v1734
        %v1736 = vmul.f32 %v1645, 1.442695
        %v1737 = vpow.pop %v1736
        %v1738 = vmul.f32 %v1646, 1.442695
        %v1739 = vpow.pop %v1738
        %v1740 = vmul.f32 %v1647, 1.442695
        %v1741 = vpow.pop %v1740
        %v1742 = vmul.f32 %v1648, 1.442695
        %v1743 = vpow.pop %v1742
        %v1744 = vmul.f32 %v1649, 1.442695
        %v1745 = vpow.pop %v1744
        %v1746 = vmul.f32 %v1650, 1.442695
        %v1747 = vpow.pop %v1746
        %v1748 = vmul.f32 %v1651, 1.442695
        %v1749 = vpow.pop %v1748
        %v1750 = vmul.f32 %v1652, 1.442695
        %v1751 = vpow.pop %v1750
        %v1752 = vmul.f32 %v1653, 1.442695
        %v1753 = vpow.pop %v1752
        %v1754 = vmul.f32 %v1654, 1.442695
        %v1755 = vpow.pop %v1754
        %v1756 = vmul.f32 %v1655, 1.442695
        %v1757 = vpow.pop %v1756
        %v1758 = vmul.f32 %v1656, 1.442695
        %v1759 = vpow.pop %v1758
        %v1760 = vmul.f32 %v1657, 1.442695
        %v1761 = vpow.pop %v1760
        %v1762 = vmul.f32 %v1658, 1.442695
        %v1763 = vpow.pop %v1762
        %v1764 = vmul.f32 %v1659, 1.442695
        %v1765 = vpow.pop %v1764
        %v1766 = vmul.f32 %v1660, 1.442695
        %v1767 = vpow.pop %v1766
        %v1768 = vmul.f32 %v1661, 1.442695
        %v1769 = vpow.pop %v1768
        %v1770 = vmul.f32 %v1662, 1.442695
        %v1771 = vpow.pop %v1770
        %v1772 = vmul.f32 %v1663, 1.442695
        %v1773 = vpow.pop %v1772
        %v1774 = vmul.f32 %v1664, 1.442695
        %v1775 = vpow.pop %v1774
        %v1776 = vmul.f32 %v1665, 1.442695
        %v1777 = vpow.pop %v1776
        %v1778 = vmul.f32 %v1666, 1.442695
        %v1779 = vpow.pop %v1778
        %v1780 = vmul.f32 %v1667, 1.442695
        %v1781 = vpow.pop %v1780
        %v1782 = vmul.f32 %v1668, 1.442695
        %v1783 = vpow.pop %v1782
        %v1784 = vmul.f32 %v1669, 1.442695
        %v1785 = vpow.pop %v1784
        %v1786 = vmul.f32 %v1670, 1.442695
        %v1787 = vpow.pop %v1786
        %v1788 = vmul.f32 %v1671, 1.442695
        %v1789 = vpow.pop %v1788
        %v1790 = vmul.f32 %v1672, 1.442695
        %v1791 = vpow.pop %v1790
        %v1792 = vmul.f32 %v1673, 1.442695
        %v1793 = vpow.pop %v1792
        %v1794 = vmul.f32 %v1674, 1.442695
        %v1795 = vpow.pop %v1794
        %v1796 = vmul.f32 %v1675, 1.442695
        %v1797 = vpow.pop %v1796
        %v1798 = vmul.f32 %v1676, 1.442695
        %v1799 = vpow.pop %v1798
        %v1800 = vmul.f32 %v1677, 1.442695
        %v1801 = vpow.pop %v1800
        %v1802 = vmul.f32 %v1678, 1.442695
        %v1803 = vpow.pop %v1802
        %v1804 = vmul.f32 %v1679, 1.442695
        %v1805 = vpow.pop %v1804
        %v1806 = vmul.f32 %v1680, 1.442695
        %v1807 = vpow.pop %v1806
        %v1808 = vmul.f32 %v1681, 1.442695
        %v1809 = vpow.pop %v1808
        %v1810 = vadd.f32 %v1683, 1.0
        %v1811 = vadd.f32 %v1685, 1.0
        %v1812 = vadd.f32 %v1687, 1.0
        %v1813 = vadd.f32 %v1689, 1.0
        %v1814 = vadd.f32 %v1691, 1.0
        %v1815 = vadd.f32 %v1693, 1.0
        %v1816 = vadd.f32 %v1695, 1.0
        %v1817 = vadd.f32 %v1697, 1.0
        %v1818 = vadd.f32 %v1699, 1.0
        %v1819 = vadd.f32 %v1701, 1.0
        %v1820 = vadd.f32 %v1703, 1.0
        %v1821 = vadd.f32 %v1705, 1.0
        %v1822 = vadd.f32 %v1707, 1.0
        %v1823 = vadd.f32 %v1709, 1.0
        %v1824 = vadd.f32 %v1711, 1.0
        %v1825 = vadd.f32 %v1713, 1.0
        %v1826 = vadd.f32 %v1715, 1.0
        %v1827 = vadd.f32 %v1717, 1.0
        %v1828 = vadd.f32 %v1719, 1.0
        %v1829 = vadd.f32 %v1721, 1.0
        %v1830 = vadd.f32 %v1723, 1.0
        %v1831 = vadd.f32 %v1725, 1.0
        %v1832 = vadd.f32 %v1727, 1.0
        %v1833 = vadd.f32 %v1729, 1.0
        %v1834 = vadd.f32 %v1731, 1.0
        %v1835 = vadd.f32 %v1733, 1.0
        %v1836 = vadd.f32 %v1735, 1.0
        %v1837 = vadd.f32 %v1737, 1.0
        %v1838 = vadd.f32 %v1739, 1.0
        %v1839 = vadd.f32 %v1741, 1.0
        %v1840 = vadd.f32 %v1743, 1.0
        %v1841 = vadd.f32 %v1745, 1.0
        %v1842 = vadd.f32 %v1747, 1.0
        %v1843 = vadd.f32 %v1749, 1.0
        %v1844 = vadd.f32 %v1751, 1.0
        %v1845 = vadd.f32 %v1753, 1.0
        %v1846 = vadd.f32 %v1755, 1.0
        %v1847 = vadd.f32 %v1757, 1.0
        %v1848 = vadd.f32 %v1759, 1.0
        %v1849 = vadd.f32 %v1761, 1.0
        %v1850 = vadd.f32 %v1763, 1.0
        %v1851 = vadd.f32 %v1765, 1.0
        %v1852 = vadd.f32 %v1767, 1.0
        %v1853 = vadd.f32 %v1769, 1.0
        %v1854 = vadd.f32 %v1771, 1.0
        %v1855 = vadd.f32 %v1773, 1.0
        %v1856 = vadd.f32 %v1775, 1.0
        %v1857 = vadd.f32 %v1777, 1.0
        %v1858 = vadd.f32 %v1779, 1.0
        %v1859 = vadd.f32 %v1781, 1.0
        %v1860 = vadd.f32 %v1783, 1.0
        %v1861 = vadd.f32 %v1785, 1.0
        %v1862 = vadd.f32 %v1787, 1.0
        %v1863 = vadd.f32 %v1789, 1.0
        %v1864 = vadd.f32 %v1791, 1.0
        %v1865 = vadd.f32 %v1793, 1.0
        %v1866 = vadd.f32 %v1795, 1.0
        %v1867 = vadd.f32 %v1797, 1.0
        %v1868 = vadd.f32 %v1799, 1.0
        %v1869 = vadd.f32 %v1801, 1.0
        %v1870 = vadd.f32 %v1803, 1.0
        %v1871 = vadd.f32 %v1805, 1.0
        %v1872 = vadd.f32 %v1807, 1.0
        %v1873 = vadd.f32 %v1809, 1.0
        %v1874 = vrcp.pop %v1810
        %v1875 = vmul.f32 1.0, %v1874
        %v1876 = vrcp.pop %v1811
        %v1877 = vmul.f32 1.0, %v1876
        %v1878 = vrcp.pop %v1812
        %v1879 = vmul.f32 1.0, %v1878
        %v1880 = vrcp.pop %v1813
        %v1881 = vmul.f32 1.0, %v1880
        %v1882 = vrcp.pop %v1814
        %v1883 = vmul.f32 1.0, %v1882
        %v1884 = vrcp.pop %v1815
        %v1885 = vmul.f32 1.0, %v1884
        %v1886 = vrcp.pop %v1816
        %v1887 = vmul.f32 1.0, %v1886
        %v1888 = vrcp.pop %v1817
        %v1889 = vmul.f32 1.0, %v1888
        %v1890 = vrcp.pop %v1818
        %v1891 = vmul.f32 1.0, %v1890
        %v1892 = vrcp.pop %v1819
        %v1893 = vmul.f32 1.0, %v1892
        %v1894 = vrcp.pop %v1820
        %v1895 = vmul.f32 1.0, %v1894
        %v1896 = vrcp.pop %v1821
        %v1897 = vmul.f32 1.0, %v1896
        %v1898 = vrcp.pop %v1822
        %v1899 = vmul.f32 1.0, %v1898
        %v1900 = vrcp.pop %v1823
        %v1901 = vmul.f32 1.0, %v1900
        %v1902 = vrcp.pop %v1824
        %v1903 = vmul.f32 1.0, %v1902
        %v1904 = vrcp.pop %v1825
        %v1905 = vmul.f32 1.0, %v1904
        %v1906 = vrcp.pop %v1826
        %v1907 = vmul.f32 1.0, %v1906
        %v1908 = vrcp.pop %v1827
        %v1909 = vmul.f32 1.0, %v1908
        %v1910 = vrcp.pop %v1828
        %v1911 = vmul.f32 1.0, %v1910
        %v1912 = vrcp.pop %v1829
        %v1913 = vmul.f32 1.0, %v1912
        %v1914 = vrcp.pop %v1830
        %v1915 = vmul.f32 1.0, %v1914
        %v1916 = vrcp.pop %v1831
        %v1917 = vmul.f32 1.0, %v1916
        %v1918 = vrcp.pop %v1832
        %v1919 = vmul.f32 1.0, %v1918
        %v1920 = vrcp.pop %v1833
        %v1921 = vmul.f32 1.0, %v1920
        %v1922 = vrcp.pop %v1834
        %v1923 = vmul.f32 1.0, %v1922
        %v1924 = vrcp.pop %v1835
        %v1925 = vmul.f32 1.0, %v1924
        %v1926 = vrcp.pop %v1836
        %v1927 = vmul.f32 1.0, %v1926
        %v1928 = vrcp.pop %v1837
        %v1929 = vmul.f32 1.0, %v1928
        %v1930 = vrcp.pop %v1838
        %v1931 = vmul.f32 1.0, %v1930
        %v1932 = vrcp.pop %v1839
        %v1933 = vmul.f32 1.0, %v1932
        %v1934 = vrcp.pop %v1840
        %v1935 = vmul.f32 1.0, %v1934
        %v1936 = vrcp.pop %v1841
        %v1937 = vmul.f32 1.0, %v1936
        %v1938 = vrcp.pop %v1842
        %v1939 = vmul.f32 1.0, %v1938
        %v1940 = vrcp.pop %v1843
        %v1941 = vmul.f32 1.0, %v1940
        %v1942 = vrcp.pop %v1844
        %v1943 = vmul.f32 1.0, %v1942
        %v1944 = vrcp.pop %v1845
        %v1945 = vmul.f32 1.0, %v1944
        %v1946 = vrcp.pop %v1846
        %v1947 = vmul.f32 1.0, %v1946
        %v1948 = vrcp.pop %v1847
        %v1949 = vmul.f32 1.0, %v1948
        %v1950 = vrcp.pop %v1848
        %v1951 = vmul.f32 1.0, %v1950
        %v1952 = vrcp.pop %v1849
        %v1953 = vmul.f32 1.0, %v1952
        %v1954 = vrcp.pop %v1850
        %v1955 = vmul.f32 1.0, %v1954
        %v1956 = vrcp.pop %v1851
        %v1957 = vmul.f32 1.0, %v1956
        %v1958 = vrcp.pop %v1852
        %v1959 = vmul.f32 1.0, %v1958
        %v1960 = vrcp.pop %v1853
        %v1961 = vmul.f32 1.0, %v1960
        %v1962 = vrcp.pop %v1854
        %v1963 = vmul.f32 1.0, %v1962
        %v1964 = vrcp.pop %v1855
        %v1965 = vmul.f32 1.0, %v1964
        %v1966 = vrcp.pop %v1856
        %v1967 = vmul.f32 1.0, %v1966
        %v1968 = vrcp.pop %v1857
        %v1969 = vmul.f32 1.0, %v1968
        %v1970 = vrcp.pop %v1858
        %v1971 = vmul.f32 1.0, %v1970
        %v1972 = vrcp.pop %v1859
        %v1973 = vmul.f32 1.0, %v1972
        %v1974 = vrcp.pop %v1860
        %v1975 = vmul.f32 1.0, %v1974
        %v1976 = vrcp.pop %v1861
        %v1977 = vmul.f32 1.0, %v1976
        %v1978 = vrcp.pop %v1862
        %v1979 = vmul.f32 1.0, %v1978
        %v1980 = vrcp.pop %v1863
        %v1981 = vmul.f32 1.0, %v1980
        %v1982 = vrcp.pop %v1864
        %v1983 = vmul.f32 1.0, %v1982
        %v1984 = vrcp.pop %v1865
        %v1985 = vmul.f32 1.0, %v1984
        %v1986 = vrcp.pop %v1866
        %v1987 = vmul.f32 1.0, %v1986
        %v1988 = vrcp.pop %v1867
        %v1989 = vmul.f32 1.0, %v1988
        %v1990 = vrcp.pop %v1868
        %v1991 = vmul.f32 1.0, %v1990
        %v1992 = vrcp.pop %v1869
        %v1993 = vmul.f32 1.0, %v1992
        %v1994 = vrcp.pop %v1870
        %v1995 = vmul.f32 1.0, %v1994
        %v1996 = vrcp.pop %v1871
        %v1997 = vmul.f32 1.0, %v1996
        %v1998 = vrcp.pop %v1872
        %v1999 = vmul.f32 1.0, %v1998
        %v2000 = vrcp.pop %v1873
        %v2001 = vmul.f32 1.0, %v2000
        %v2002 = vmul.f32 %v1554, %v1875
        %v2003 = vmul.f32 %v1555, %v1877
        %v2004 = vmul.f32 %v1556, %v1879
        %v2005 = vmul.f32 %v1557, %v1881
        %v2006 = vmul.f32 %v1558, %v1883
        %v2007 = vmul.f32 %v1559, %v1885
        %v2008 = vmul.f32 %v1560, %v1887
        %v2009 = vmul.f32 %v1561, %v1889
        %v2010 = vmul.f32 %v1562, %v1891
        %v2011 = vmul.f32 %v1563, %v1893
        %v2012 = vmul.f32 %v1564, %v1895
        %v2013 = vmul.f32 %v1565, %v1897
        %v2014 = vmul.f32 %v1566, %v1899
        %v2015 = vmul.f32 %v1567, %v1901
        %v2016 = vmul.f32 %v1568, %v1903
        %v2017 = vmul.f32 %v1569, %v1905
        %v2018 = vmul.f32 %v1570, %v1907
        %v2019 = vmul.f32 %v1571, %v1909
        %v2020 = vmul.f32 %v1572, %v1911
        %v2021 = vmul.f32 %v1573, %v1913
        %v2022 = vmul.f32 %v1574, %v1915
        %v2023 = vmul.f32 %v1575, %v1917
        %v2024 = vmul.f32 %v1576, %v1919
        %v2025 = vmul.f32 %v1577, %v1921
        %v2026 = vmul.f32 %v1578, %v1923
        %v2027 = vmul.f32 %v1579, %v1925
        %v2028 = vmul.f32 %v1580, %v1927
        %v2029 = vmul.f32 %v1581, %v1929
        %v2030 = vmul.f32 %v1582, %v1931
        %v2031 = vmul.f32 %v1583, %v1933
        %v2032 = vmul.f32 %v1584, %v1935
        %v2033 = vmul.f32 %v1585, %v1937
        %v2034 = vmul.f32 %v1586, %v1939
        %v2035 = vmul.f32 %v1587, %v1941
        %v2036 = vmul.f32 %v1588, %v1943
        %v2037 = vmul.f32 %v1589, %v1945
        %v2038 = vmul.f32 %v1590, %v1947
        %v2039 = vmul.f32 %v1591, %v1949
        %v2040 = vmul.f32 %v1592, %v1951
        %v2041 = vmul.f32 %v1593, %v1953
        %v2042 = vmul.f32 %v1594, %v1955
        %v2043 = vmul.f32 %v1595, %v1957
        %v2044 = vmul.f32 %v1596, %v1959
        %v2045 = vmul.f32 %v1597, %v1961
        %v2046 = vmul.f32 %v1598, %v1963
        %v2047 = vmul.f32 %v1599, %v1965
        %v2048 = vmul.f32 %v1600, %v1967
        %v2049 = vmul.f32 %v1601, %v1969
        %v2050 = vmul.f32 %v1602, %v1971
        %v2051 = vmul.f32 %v1603, %v1973
        %v2052 = vmul.f32 %v1604, %v1975
        %v2053 = vmul.f32 %v1605, %v1977
        %v2054 = vmul.f32 %v1606, %v1979
        %v2055 = vmul.f32 %v1607, %v1981
        %v2056 = vmul.f32 %v1608, %v1983
        %v2057 = vmul.f32 %v1609, %v1985
        %v2058 = vmul.f32 %v1610, %v1987
        %v2059 = vmul.f32 %v1611, %v1989
        %v2060 = vmul.f32 %v1612, %v1991
        %v2061 = vmul.f32 %v1613, %v1993
        %v2062 = vmul.f32 %v1614, %v1995
        %v2063 = vmul.f32 %v1615, %v1997
        %v2064 = vmul.f32 %v1616, %v1999
        %v2065 = vmul.f32 %v1617, %v2001
        %v2066 = vld [vmem:[%s4] sm:$0xff]
        %v2067 = vld [vmem:[%s4 + $0x8] sm:$0xff]
        %v2068 = vld [vmem:[%s4 + $0x10] sm:$0xff]
        %v2069 = vld [vmem:[%s4 + $0x18] sm:$0xff]
        %v2070 = vld [vmem:[%s4 + $0x20] sm:$0xff]
        %v2071 = vld [vmem:[%s4 + $0x28] sm:$0xff]
        %v2072 = vld [vmem:[%s4 + $0x30] sm:$0xff]
        %v2073 = vld [vmem:[%s4 + $0x38] sm:$0xff]
        %v2074 = vld [vmem:[%s4 + $0x40] sm:$0xff]
        %v2075 = vld [vmem:[%s4 + $0x48] sm:$0xff]
        %v2076 = vld [vmem:[%s4 + $0x50] sm:$0xff]
        %v2077 = vld [vmem:[%s4 + $0x58] sm:$0xff]
        %v2078 = vld [vmem:[%s4 + $0x60] sm:$0xff]
        %v2079 = vld [vmem:[%s4 + $0x68] sm:$0xff]
        %v2080 = vld [vmem:[%s4 + $0x70] sm:$0xff]
        %v2081 = vld [vmem:[%s4 + $0x78] sm:$0xff]
        %v2082 = vld [vmem:[%s5] sm:$0x3]
        %2084 = vset.pattern.permute.xlu0 0
        %2085 = vperm.xlu0 %2084, %v2082
        %v2086 = vpop.permute.xlu0 %2085
        %2088 = vxpose.xlu0.b32.start [1/16] %v2066, 128
        %2089 = vxpose.xlu0.b32.cont [2/16] %v2067, 128
        %2090 = vxpose.xlu0.b32.cont [3/16] %v2068, 128
        %2091 = vxpose.xlu0.b32.cont [4/16] %v2069, 128
        %2092 = vxpose.xlu0.b32.cont [5/16] %v2070, 128
        %2093 = vxpose.xlu0.b32.cont [6/16] %v2071, 128
        %2094 = vxpose.xlu0.b32.cont [7/16] %v2072, 128
        %2095 = vxpose.xlu0.b32.cont [8/16] %v2073, 128
        %2096 = vxpose.xlu0.b32.cont [9/16] %v2074, 128
        %2097 = vxpose.xlu0.b32.cont [10/16] %v2075, 128
        %2098 = vxpose.xlu0.b32.cont [11/16] %v2076, 128
        %2099 = vxpose.xlu0.b32.cont [12/16] %v2077, 128
        %2100 = vxpose.xlu0.b32.cont [13/16] %v2078, 128
        %2101 = vxpose.xlu0.b32.cont [14/16] %v2079, 128
        %2102 = vxpose.xlu0.b32.cont [15/16] %v2080, 128
        %2103 = vxpose.xlu0.b32.end [16/16] %v2081, 128
        %v2104 = vpop.trf.xlu0
        %v2105 = vpop.trf.xlu0
        %v2106 = vpop.trf.xlu0
        %v2107 = vpop.trf.xlu0
        %v2108 = vpop.trf.xlu0
        %v2109 = vpop.trf.xlu0
        %v2110 = vpop.trf.xlu0
        %v2111 = vpop.trf.xlu0
        %v2112 = vpop.trf.xlu0
        %v2113 = vpop.trf.xlu0
        %v2114 = vpop.trf.xlu0
        %v2115 = vpop.trf.xlu0
        %v2116 = vpop.trf.xlu0
        %v2117 = vpop.trf.xlu0
        %v2118 = vpop.trf.xlu0
        %v2119 = vpop.trf.xlu0
        %2120 = vmatprep.subr.mxu0 0.0
        %2121 = vmatpush1.xpose.msra.mxu0 %v2002
        %2122 = vmatprep.subr.mxu0 0.0
        %2123 = vmatpush1.xpose.msra.mxu0 %v2003
        %2124 = vmatprep.subr.mxu0 0.0
        %2125 = vmatpush1.xpose.msra.mxu0 %v2004
        %2126 = vmatprep.subr.mxu0 0.0
        %2127 = vmatpush1.xpose.msra.mxu0 %v2005
        %2128 = vmatprep.subr.mxu0 0.0
        %2129 = vmatpush1.xpose.msra.mxu0 %v2006
        %2130 = vmatprep.subr.mxu0 0.0
        %2131 = vmatpush1.xpose.msra.mxu0 %v2007
        %2132 = vmatprep.subr.mxu0 0.0
        %2133 = vmatpush1.xpose.msra.mxu0 %v2008
        %2134 = vmatprep.subr.mxu0 0.0
        %2135 = vmatpush1.xpose.msra.mxu0 %v2009
        %2136 = vmatprep.subr.mxu0 0.0
        %2137 = vmatpush1.xpose.msra.mxu0 %v2010
        %2138 = vmatprep.subr.mxu0 0.0
        %2139 = vmatpush1.xpose.msra.mxu0 %v2011
        %2140 = vmatprep.subr.mxu0 0.0
        %2141 = vmatpush1.xpose.msra.mxu0 %v2012
        %2142 = vmatprep.subr.mxu0 0.0
        %2143 = vmatpush1.xpose.msra.mxu0 %v2013
        %2144 = vmatprep.subr.mxu0 0.0
        %2145 = vmatpush1.xpose.msra.mxu0 %v2014
        %2146 = vmatprep.subr.mxu0 0.0
        %2147 = vmatpush1.xpose.msra.mxu0 %v2015
        %2148 = vmatprep.subr.mxu0 0.0
        %2149 = vmatpush1.xpose.msra.mxu0 %v2016
        %2150 = vmatprep.subr.mxu0 0.0
        %2151 = vmatpush1.xpose.msra.mxu0 %v2017
        %2152 = vmatprep.subr.mxu0 0.0
        %2153 = vmatpush1.xpose.msra.mxu0 %v2018
        %2154 = vmatprep.subr.mxu0 0.0
        %2155 = vmatpush1.xpose.msra.mxu0 %v2019
        %2156 = vmatprep.subr.mxu0 0.0
        %2157 = vmatpush1.xpose.msra.mxu0 %v2020
        %2158 = vmatprep.subr.mxu0 0.0
        %2159 = vmatpush1.xpose.msra.mxu0 %v2021
        %2160 = vmatprep.subr.mxu0 0.0
        %2161 = vmatpush1.xpose.msra.mxu0 %v2022
        %2162 = vmatprep.subr.mxu0 0.0
        %2163 = vmatpush1.xpose.msra.mxu0 %v2023
        %2164 = vmatprep.subr.mxu0 0.0
        %2165 = vmatpush1.xpose.msra.mxu0 %v2024
        %2166 = vmatprep.subr.mxu0 0.0
        %2167 = vmatpush1.xpose.msra.mxu0 %v2025
        %2168 = vmatprep.subr.mxu0 0.0
        %2169 = vmatpush1.xpose.msra.mxu0 %v2026
        %2170 = vmatprep.subr.mxu0 0.0
        %2171 = vmatpush1.xpose.msra.mxu0 %v2027
        %2172 = vmatprep.subr.mxu0 0.0
        %2173 = vmatpush1.xpose.msra.mxu0 %v2028
        %2174 = vmatprep.subr.mxu0 0.0
        %2175 = vmatpush1.xpose.msra.mxu0 %v2029
        %2176 = vmatprep.subr.mxu0 0.0
        %2177 = vmatpush1.xpose.msra.mxu0 %v2030
        %2178 = vmatprep.subr.mxu0 0.0
        %2179 = vmatpush1.xpose.msra.mxu0 %v2031
        %2180 = vmatprep.subr.mxu0 0.0
        %2181 = vmatpush1.xpose.msra.mxu0 %v2032
        %2182 = vmatprep.subr.mxu0 0.0
        %2183 = vmatpush1.xpose.msra.mxu0 %v2033
        %2184 = vmatprep.mubr.f32.mxu0 0.0
        %2185 = vmatmul.mubr.f32.gmra.mrb[0].mxu0 %v2104
        %v2186 = vpop.f32.mrb[0].mxu0
        %v2187 = vadd.f32 %v2086, %v2186
        %v2188 = vpop.f32.mrb[0].mxu0
        %v2189 = vadd.f32 %v2086, %v2188
        %2190 = vdwg.mxu0
        %2191 = vmatprep.subr.mxu0 0.0
        %2192 = vmatpush1.xpose.msra.mxu0 %v2034
        %2193 = vmatprep.subr.mxu0 0.0
        %2194 = vmatpush1.xpose.msra.mxu0 %v2035
        %2195 = vmatprep.subr.mxu0 0.0
        %2196 = vmatpush1.xpose.msra.mxu0 %v2036
        %2197 = vmatprep.subr.mxu0 0.0
        %2198 = vmatpush1.xpose.msra.mxu0 %v2037
        %2199 = vmatprep.subr.mxu0 0.0
        %2200 = vmatpush1.xpose.msra.mxu0 %v2038
        %2201 = vmatprep.subr.mxu0 0.0
        %2202 = vmatpush1.xpose.msra.mxu0 %v2039
        %2203 = vmatprep.subr.mxu0 0.0
        %2204 = vmatpush1.xpose.msra.mxu0 %v2040
        %2205 = vmatprep.subr.mxu0 0.0
        %2206 = vmatpush1.xpose.msra.mxu0 %v2041
        %2207 = vmatprep.subr.mxu0 0.0
        %2208 = vmatpush1.xpose.msra.mxu0 %v2042
        %2209 = vmatprep.subr.mxu0 0.0
        %2210 = vmatpush1.xpose.msra.mxu0 %v2043
        %2211 = vmatprep.subr.mxu0 0.0
        %2212 = vmatpush1.xpose.msra.mxu0 %v2044
        %2213 = vmatprep.subr.mxu0 0.0
        %2214 = vmatpush1.xpose.msra.mxu0 %v2045
        %2215 = vmatprep.subr.mxu0 0.0
        %2216 = vmatpush1.xpose.msra.mxu0 %v2046
        %2217 = vmatprep.subr.mxu0 0.0
        %2218 = vmatpush1.xpose.msra.mxu0 %v2047
        %2219 = vmatprep.subr.mxu0 0.0
        %2220 = vmatpush1.xpose.msra.mxu0 %v2048
        %2221 = vmatprep.subr.mxu0 0.0
        %2222 = vmatpush1.xpose.msra.mxu0 %v2049
        %2223 = vmatprep.subr.mxu0 0.0
        %2224 = vmatpush1.xpose.msra.mxu0 %v2050
        %2225 = vmatprep.subr.mxu0 0.0
        %2226 = vmatpush1.xpose.msra.mxu0 %v2051
        %2227 = vmatprep.subr.mxu0 0.0
        %2228 = vmatpush1.xpose.msra.mxu0 %v2052
        %2229 = vmatprep.subr.mxu0 0.0
        %2230 = vmatpush1.xpose.msra.mxu0 %v2053
        %2231 = vmatprep.subr.mxu0 0.0
        %2232 = vmatpush1.xpose.msra.mxu0 %v2054
        %2233 = vmatprep.subr.mxu0 0.0
        %2234 = vmatpush1.xpose.msra.mxu0 %v2055
        %2235 = vmatprep.subr.mxu0 0.0
        %2236 = vmatpush1.xpose.msra.mxu0 %v2056
        %2237 = vmatprep.subr.mxu0 0.0
        %2238 = vmatpush1.xpose.msra.mxu0 %v2057
        %2239 = vmatprep.subr.mxu0 0.0
        %2240 = vmatpush1.xpose.msra.mxu0 %v2058
        %2241 = vmatprep.subr.mxu0 0.0
        %2242 = vmatpush1.xpose.msra.mxu0 %v2059
        %2243 = vmatprep.subr.mxu0 0.0
        %2244 = vmatpush1.xpose.msra.mxu0 %v2060
        %2245 = vmatprep.subr.mxu0 0.0
        %2246 = vmatpush1.xpose.msra.mxu0 %v2061
        %2247 = vmatprep.subr.mxu0 0.0
        %2248 = vmatpush1.xpose.msra.mxu0 %v2062
        %2249 = vmatprep.subr.mxu0 0.0
        %2250 = vmatpush1.xpose.msra.mxu0 %v2063
        %2251 = vmatprep.subr.mxu0 0.0
        %2252 = vmatpush1.xpose.msra.mxu0 %v2064
        %2253 = vmatprep.subr.mxu0 0.0
        %2254 = vmatpush1.xpose.msra.mxu0 %v2065
        %2255 = vmatprep.mubr.f32.mxu0 0.0
        %2256 = vmatmul.mubr.f32.gmra.mrb[0].mxu0 %v2104
        %v2257 = vpop.f32.mrb[0].mxu0
        %v2258 = vadd.f32 %v2086, %v2257
        %v2259 = vpop.f32.mrb[0].mxu0
        %v2260 = vadd.f32 %v2086, %v2259
        %2261 = vdwg.mxu0
        %v2266 = vcombine.low %v2187, %v2189
        %v2267 = vcombine.low %v2258, %v2260
        %v2269 = vunpack.c.l.s4 1983009808
        %v2270 = vunpack.c.0.s8 %v2269
        %v2271 = vlaneseq
        %v2272 = vshrl.u32 %v2271, 7
        %v2273 = vsub.s32 %v2270, %v2272
        %v2274 = vrot.slane %v2266, %v2273
        %v2276 = vunpack.c.l.s4 1983009808
        %v2277 = vunpack.c.0.s8 %v2276
        %v2278 = vlaneseq
        %v2279 = vshrl.u32 %v2278, 7
        %v2280 = vsub.s32 %v2277, %v2279
        %v2281 = vrot.slane %v2267, %v2280
        %v2282 = vcombine.low %v2274, %v2281
        %2284 = vst [vmem:[%s441] sm:$0xff] %v2282
        %v2285 = vld [vmem:[#allocation2] sm:$0x3]
        %vm2286 = vcmask 1041408
        %v2287 = vsel %vm2286, %v2187, -inf
        %v2288 = vsel %vm2286, %v2189, -inf
        %v2289 = vsel %vm2286, %v2258, -inf
        %v2290 = vsel %vm2286, %v2260, -inf
        %v2291 = vmax.f32 %v2287, %v2288
        %v2292 = vmax.f32 %v2289, %v2290
        %v2293 = vmax.f32 %v2291, %v2292
        %2294 = vmax.xlane.f32.xlu0 %v2293
        %v2295 = vpop.xlane.xlu0 %2294
        %v2296 = vmax.f32 %v2285, %v2295
        %v2297 = vsub.f32 %v2285, %v2296
        %v2298 = vmul.f32 %v2297, 1.442695
        %v2299 = vpow.pop %v2298
        %2301 = vset.pattern.permute.xlu0 0
        %2302 = vperm.xlu0 %2301, %v2296
        %v2303 = vpop.permute.xlu0 %2302
        %v2305 = vsub.f32 %v2187, %v2303
        %v2306 = vsub.f32 %v2189, %v2303
        %v2307 = vsub.f32 %v2258, %v2303
        %v2308 = vsub.f32 %v2260, %v2303
        %v2309 = vmul.f32 %v2305, 1.442695
        %v2310 = vpow.pop %v2309
        %v2311 = vmul.f32 %v2306, 1.442695
        %v2312 = vpow.pop %v2311
        %v2313 = vmul.f32 %v2307, 1.442695
        %v2314 = vpow.pop %v2313
        %v2315 = vmul.f32 %v2308, 1.442695
        %v2316 = vpow.pop %v2315
        %v2317 = vld [vmem:[#allocation3] sm:$0x3]
        %v2318 = vmul.f32 %v2299, %v2317
        %v2319 = vsel %vm2286, %v2310, 0.0
        %v2320 = vsel %vm2286, %v2312, 0.0
        %v2321 = vadd.f32 %v2319, %v2320
        %v2322 = vsel %vm2286, %v2314, 0.0
        %v2323 = vadd.f32 %v2321, %v2322
        %v2324 = vsel %vm2286, %v2316, 0.0
        %v2325 = vadd.f32 %v2323, %v2324
        %2326 = vadd.xlane.f32.xlu0 %v2325
        %v2327 = vpop.xlane.xlu0 %2326
        %v2328 = vadd.f32 %v2318, %v2327
        %vm2329 = vcmask 1024
        %2330 = vst.msk [vmem:[#allocation3] sm:$0x3] %vm2329, %v2328
        %v2331 = vld [vmem:[#allocation4] sm:$0x3]
        %2333 = vset.pattern.permute.xlu0 0
        %2334 = vperm.xlu0 %2333, %v2299
        %v2335 = vpop.permute.xlu0 %2334
        %v2337 = vmul.f32 %v2335, %v2331
        %2338 = vmatprep.subr.mxu0 0.0
        %2339 = vmatpush1.msra.mxu0 %v997
        %2340 = vmatprep.subr.mxu0 0.0
        %2341 = vmatpush1.msra.mxu0 %v998
        %2342 = vmatprep.subr.mxu0 0.0
        %2343 = vmatpush1.msra.mxu0 %v999
        %2344 = vmatprep.subr.mxu0 0.0
        %2345 = vmatpush1.msra.mxu0 %v1000
        %2346 = vmatprep.subr.mxu0 0.0
        %2347 = vmatpush1.msra.mxu0 %v1001
        %2348 = vmatprep.subr.mxu0 0.0
        %2349 = vmatpush1.msra.mxu0 %v1002
        %2350 = vmatprep.subr.mxu0 0.0
        %2351 = vmatpush1.msra.mxu0 %v1003
        %2352 = vmatprep.subr.mxu0 0.0
        %2353 = vmatpush1.msra.mxu0 %v1004
        %2354 = vmatprep.subr.mxu0 0.0
        %2355 = vmatpush1.msra.mxu0 %v1005
        %2356 = vmatprep.subr.mxu0 0.0
        %2357 = vmatpush1.msra.mxu0 %v1006
        %2358 = vmatprep.subr.mxu0 0.0
        %2359 = vmatpush1.msra.mxu0 %v1007
        %2360 = vmatprep.subr.mxu0 0.0
        %2361 = vmatpush1.msra.mxu0 %v1008
        %2362 = vmatprep.subr.mxu0 0.0
        %2363 = vmatpush1.msra.mxu0 %v1009
        %2364 = vmatprep.subr.mxu0 0.0
        %2365 = vmatpush1.msra.mxu0 %v1010
        %2366 = vmatprep.subr.mxu0 0.0
        %2367 = vmatpush1.msra.mxu0 %v1011
        %2368 = vmatprep.subr.mxu0 0.0
        %2369 = vmatpush1.msra.mxu0 %v1012
        %2370 = vmatprep.subr.mxu0 0.0
        %2371 = vmatpush1.msra.mxu0 %v1013
        %2372 = vmatprep.subr.mxu0 0.0
        %2373 = vmatpush1.msra.mxu0 %v1014
        %2374 = vmatprep.subr.mxu0 0.0
        %2375 = vmatpush1.msra.mxu0 %v1015
        %2376 = vmatprep.subr.mxu0 0.0
        %2377 = vmatpush1.msra.mxu0 %v1016
        %2378 = vmatprep.subr.mxu0 0.0
        %2379 = vmatpush1.msra.mxu0 %v1017
        %2380 = vmatprep.subr.mxu0 0.0
        %2381 = vmatpush1.msra.mxu0 %v1018
        %2382 = vmatprep.subr.mxu0 0.0
        %2383 = vmatpush1.msra.mxu0 %v1019
        %2384 = vmatprep.subr.mxu0 0.0
        %2385 = vmatpush1.msra.mxu0 %v1020
        %2386 = vmatprep.subr.mxu0 0.0
        %2387 = vmatpush1.msra.mxu0 %v1021
        %2388 = vmatprep.subr.mxu0 0.0
        %2389 = vmatpush1.msra.mxu0 %v1022
        %2390 = vmatprep.subr.mxu0 0.0
        %2391 = vmatpush1.msra.mxu0 %v1023
        %2392 = vmatprep.subr.mxu0 0.0
        %2393 = vmatpush1.msra.mxu0 %v1024
        %2394 = vmatprep.subr.mxu0 0.0
        %2395 = vmatpush1.msra.mxu0 %v1025
        %2396 = vmatprep.subr.mxu0 0.0
        %2397 = vmatpush1.msra.mxu0 %v1026
        %2398 = vmatprep.subr.mxu0 0.0
        %2399 = vmatpush1.msra.mxu0 %v1027
        %2400 = vmatprep.subr.mxu0 0.0
        %2401 = vmatpush1.msra.mxu0 %v1028
        %2402 = vmatprep.mubr.f32.mxu0 %v2312
        %2403 = vmatmul.mubr.f32.gmra.mrb[0].mxu0 %v2310
        %v2404 = vpop.f32.mrb[0].mxu0
        %v2405 = vadd.f32 0.0, %v2404
        %v2406 = vpop.f32.mrb[0].mxu0
        %2407 = vdwg.mxu0
        %2408 = vmatprep.subr.mxu0 0.0
        %2409 = vmatpush1.msra.mxu0 %v1029
        %2410 = vmatprep.subr.mxu0 0.0
        %2411 = vmatpush1.msra.mxu0 %v1030
        %2412 = vmatprep.subr.mxu0 0.0
        %2413 = vmatpush1.msra.mxu0 %v1031
        %2414 = vmatprep.subr.mxu0 0.0
        %2415 = vmatpush1.msra.mxu0 %v1032
        %2416 = vmatprep.subr.mxu0 0.0
        %2417 = vmatpush1.msra.mxu0 %v1033
        %2418 = vmatprep.subr.mxu0 0.0
        %2419 = vmatpush1.msra.mxu0 %v1034
        %2420 = vmatprep.subr.mxu0 0.0
        %2421 = vmatpush1.msra.mxu0 %v1035
        %2422 = vmatprep.subr.mxu0 0.0
        %2423 = vmatpush1.msra.mxu0 %v1036
        %2424 = vmatprep.subr.mxu0 0.0
        %2425 = vmatpush1.msra.mxu0 %v1037
        %2426 = vmatprep.subr.mxu0 0.0
        %2427 = vmatpush1.msra.mxu0 %v1038
        %2428 = vmatprep.subr.mxu0 0.0
        %2429 = vmatpush1.msra.mxu0 %v1039
        %2430 = vmatprep.subr.mxu0 0.0
        %2431 = vmatpush1.msra.mxu0 %v1040
        %2432 = vmatprep.subr.mxu0 0.0
        %2433 = vmatpush1.msra.mxu0 %v1041
        %2434 = vmatprep.subr.mxu0 0.0
        %2435 = vmatpush1.msra.mxu0 %v1042
        %2436 = vmatprep.subr.mxu0 0.0
        %2437 = vmatpush1.msra.mxu0 %v1043
        %2438 = vmatprep.subr.mxu0 0.0
        %2439 = vmatpush1.msra.mxu0 %v1044
        %2440 = vmatprep.subr.mxu0 0.0
        %2441 = vmatpush1.msra.mxu0 %v1045
        %2442 = vmatprep.subr.mxu0 0.0
        %2443 = vmatpush1.msra.mxu0 %v1046
        %2444 = vmatprep.subr.mxu0 0.0
        %2445 = vmatpush1.msra.mxu0 %v1047
        %2446 = vmatprep.subr.mxu0 0.0
        %2447 = vmatpush1.msra.mxu0 %v1048
        %2448 = vmatprep.subr.mxu0 0.0
        %2449 = vmatpush1.msra.mxu0 %v1049
        %2450 = vmatprep.subr.mxu0 0.0
        %2451 = vmatpush1.msra.mxu0 %v1050
        %2452 = vmatprep.subr.mxu0 0.0
        %2453 = vmatpush1.msra.mxu0 %v1051
        %2454 = vmatprep.subr.mxu0 0.0
        %2455 = vmatpush1.msra.mxu0 %v1052
        %2456 = vmatprep.subr.mxu0 0.0
        %2457 = vmatpush1.msra.mxu0 %v1053
        %2458 = vmatprep.subr.mxu0 0.0
        %2459 = vmatpush1.msra.mxu0 %v1054
        %2460 = vmatprep.subr.mxu0 0.0
        %2461 = vmatpush1.msra.mxu0 %v1055
        %2462 = vmatprep.subr.mxu0 0.0
        %2463 = vmatpush1.msra.mxu0 %v1056
        %2464 = vmatprep.subr.mxu0 0.0
        %2465 = vmatpush1.msra.mxu0 %v1057
        %2466 = vmatprep.subr.mxu0 0.0
        %2467 = vmatpush1.msra.mxu0 %v1058
        %2468 = vmatprep.subr.mxu0 0.0
        %2469 = vmatpush1.msra.mxu0 %v1059
        %2470 = vmatprep.subr.mxu0 0.0
        %2471 = vmatpush1.msra.mxu0 %v1060
        %2472 = vmatprep.mubr.f32.mxu0 %v2316
        %2473 = vmatmul.mubr.f32.gmra.mrb[0].mxu0 %v2314
        %v2474 = vpop.f32.mrb[0].mxu0
        %v2475 = vadd.f32 %v2405, %v2474
        %v2476 = vpop.f32.mrb[0].mxu0
        %2477 = vdwg.mxu0
        %v2478 = vadd.f32 %v2337, %v2475
        %2479 = vst [vmem:[#allocation4] sm:$0x3] %v2478
        %2480 = vst.msk [vmem:[#allocation2] sm:$0x3] %vm2329, %v2296
        %p2481 = scmp.eq.s32.totalorder %s30, 1
        // Predicated region
        $region73: #{tpu_custom_call.1} parent=59 // pred_check
          %p2482 = pneg %p2481
        $region74: #{tpu_custom_call.1} parent=59 // pred_check_branch
          %2484 = sbr.rel (%p2482) target = $region76
        $region75: #{tpu_custom_call.1} parent=59 // pred_region
          %v2485 = vld [vmem:[#allocation4] sm:$0x3]
          %v2486 = vld [vmem:[#allocation3] sm:$0x3]
          %v2487 = vrcp.pop %v2486
          %2489 = vset.pattern.permute.xlu0 0
          %2490 = vperm.xlu0 %2489, %v2487
          %v2491 = vpop.permute.xlu0 %2490
          %v2493 = vmul.f32 %v2485, %v2491
          %v2496 = vunpack.c.l.s4 1966171168
          %v2497 = vunpack.c.0.s8 %v2496
          %v2498 = vlaneseq
          %v2499 = vshrl.u32 %v2498, 7
          %v2500 = vsub.s32 %v2497, %v2499
          %v2501 = vrot.slane %v2493, %v2500
          %v2502 = vcombine.high %v2501, %v2501
          %v2504 = vunpack.c.l.s4 1966171168
          %v2505 = vunpack.c.0.s8 %v2504
          %v2506 = vlaneseq
          %v2507 = vshrl.u32 %v2506, 7
          %v2508 = vsub.s32 %v2505, %v2507
          %v2509 = vrot.slane %v2501, %v2508
          %v2511 = vunpack.c.l.s4 1966171168
          %v2512 = vunpack.c.0.s8 %v2511
          %v2513 = vlaneseq
          %v2514 = vshrl.u32 %v2513, 7
          %v2515 = vsub.s32 %v2512, %v2514
          %v2516 = vrot.slane %v2502, %v2515
          %v2517 = vld [vmem:[%s6] sm:$0xf]
          %v2518 = vld [vmem:[%s6 + $0x4] sm:$0xf]
          %v2519 = vlaneseq
          %v2520 = vshrl.u32 %v2519, 7
          %v2521 = vsub.s32 0, %v2520
          %v2522 = vrot.slane %v2509, %v2521
          %v2523 = vlaneseq
          %v2524 = vshrl.u32 %v2523, 7
          %v2525 = vsub.s32 0, %v2524
          %v2526 = vrot.slane %v2516, %v2525
          %v2529 = vmul.f32 %v2522, %v2517
          %v2530 = vmul.f32 %v2526, %v2518
          %vm2531 = vcmask 1043456
          %v2532 = vsel %vm2531, %v2529, 0.0
          %2533 = vadd.xlane.f32.xlu0 %v2532
          %v2534 = vpop.xlane.xlu0 %2533
          %v2535 = vsel %vm2531, %v2530, 0.0
          %2536 = vadd.xlane.f32.xlu0 %v2535
          %v2537 = vpop.xlane.xlu0 %2536
          %v2538 = vld [vmem:[%s7] sm:$0x3]
          %v2540 = vlaneseq
          %v2541 = vshrl.u32 %v2540, 7
          %v2542 = vsub.s32 0, %v2541
          %v2543 = vrot.slane %v2538, %v2542
          %2545 = vbcast.lane.b32.xlu0 %v2543, 256
          %v2546 = vpop.permute.xlu0 %2545
          %v2547 = vlaneseq
          %v2548 = vshrl.u32 %v2547, 7
          %v2549 = vsub.s32 1, %v2548
          %v2550 = vrot.slane %v2538, %v2549
          %2552 = vbcast.lane.b32.xlu0 %v2550, 256
          %v2553 = vpop.permute.xlu0 %2552
          %v2556 = vadd.f32 %v2534, %v2546
          %v2557 = vadd.f32 %v2537, %v2553
          %2560 = vset.pattern.permute.xlu0 0
          %2561 = vperm.xlu0 %2560, %v2556
          %v2562 = vpop.permute.xlu0 %2561
          %2563 = vset.pattern.permute.xlu0 0
          %2564 = vperm.xlu0 %2563, %v2557
          %v2565 = vpop.permute.xlu0 %2564
          %v2566 = vlaneseq
          %v2567 = vand.u32 %v2566, 127
          %v2568 = vlaneseq
          %v2569 = vshrl.u32 %v2568, 7
          %v2570 = vsub.s32 %v2567, %v2569
          %v2571 = vrot.slane %v2562, %v2570
          %v2572 = vlaneseq
          %v2573 = vshrl.u32 %v2572, 7
          %v2574 = vsub.s32 %v2567, %v2573
          %v2575 = vrot.slane %v2565, %v2574
          %vm2576 = vcmask 1041409
          %v2577 = vsel %vm2576, %v2575, %v2571
          %vm2579 = vcmask 25600
          %2580 = vst.msk [vmem:[#allocation10] sm:$0x3] %vm2579, %v2577
          %v2581 = vld [vmem:[%s8] sm:$0xff]
          %v2582 = vld [vmem:[%s8 + $0x8] sm:$0xff]
          %v2583 = vld [vmem:[%s8 + $0x10] sm:$0xff]
          %v2584 = vld [vmem:[%s8 + $0x18] sm:$0xff]
          %v2585 = vld [vmem:[%s8 + $0x20] sm:$0xff]
          %v2586 = vld [vmem:[%s8 + $0x28] sm:$0xff]
          %v2587 = vld [vmem:[%s8 + $0x30] sm:$0xff]
          %v2588 = vld [vmem:[%s8 + $0x38] sm:$0xff]
          %v2589 = vld [vmem:[%s8 + $0x40] sm:$0xff]
          %v2590 = vld [vmem:[%s8 + $0x48] sm:$0xff]
          %v2591 = vld [vmem:[%s8 + $0x50] sm:$0xff]
          %v2592 = vld [vmem:[%s8 + $0x58] sm:$0xff]
          %v2593 = vld [vmem:[%s8 + $0x60] sm:$0xff]
          %v2594 = vld [vmem:[%s8 + $0x68] sm:$0xff]
          %v2595 = vld [vmem:[%s8 + $0x70] sm:$0xff]
          %v2596 = vld [vmem:[%s8 + $0x78] sm:$0xff]
          %v2597 = vld [vmem:[%s9] sm:$0x1]
          %v2599 = vlaneseq
          %v2600 = vshrl.u32 %v2599, 7
          %v2601 = vsub.s32 0, %v2600
          %v2602 = vrot.slane %v2597, %v2601
          %2604 = vmatprep.subr.mxu0 0.0
          %2605 = vmatpush1.msra.mxu0 %v2581
          %2606 = vmatprep.subr.mxu0 0.0
          %2607 = vmatpush1.msra.mxu0 %v2582
          %2608 = vmatprep.subr.mxu0 0.0
          %2609 = vmatpush1.msra.mxu0 %v2583
          %2610 = vmatprep.subr.mxu0 0.0
          %2611 = vmatpush1.msra.mxu0 %v2584
          %2612 = vmatprep.subr.mxu0 0.0
          %2613 = vmatpush1.msra.mxu0 %v2585
          %2614 = vmatprep.subr.mxu0 0.0
          %2615 = vmatpush1.msra.mxu0 %v2586
          %2616 = vmatprep.subr.mxu0 0.0
          %2617 = vmatpush1.msra.mxu0 %v2587
          %2618 = vmatprep.subr.mxu0 0.0
          %2619 = vmatpush1.msra.mxu0 %v2588
          %2620 = vmatprep.subr.mxu0 0.0
          %2621 = vmatpush1.msra.mxu0 %v2589
          %2622 = vmatprep.subr.mxu0 0.0
          %2623 = vmatpush1.msra.mxu0 %v2590
          %2624 = vmatprep.subr.mxu0 0.0
          %2625 = vmatpush1.msra.mxu0 %v2591
          %2626 = vmatprep.subr.mxu0 0.0
          %2627 = vmatpush1.msra.mxu0 %v2592
          %2628 = vmatprep.subr.mxu0 0.0
          %2629 = vmatpush1.msra.mxu0 %v2593
          %2630 = vmatprep.subr.mxu0 0.0
          %2631 = vmatpush1.msra.mxu0 %v2594
          %2632 = vmatprep.subr.mxu0 0.0
          %2633 = vmatpush1.msra.mxu0 %v2595
          %2634 = vmatprep.subr.mxu0 0.0
          %2635 = vmatpush1.msra.mxu0 %v2596
          %2636 = vmatprep.subr.mxu0 0.0
          %2637 = vmatpush1.msra.mxu0 0.0
          %2638 = vmatprep.subr.mxu0 0.0
          %2639 = vmatpush1.msra.mxu0 0.0
          %2640 = vmatprep.subr.mxu0 0.0
          %2641 = vmatpush1.msra.mxu0 0.0
          %2642 = vmatprep.subr.mxu0 0.0
          %2643 = vmatpush1.msra.mxu0 0.0
          %2644 = vmatprep.subr.mxu0 0.0
          %2645 = vmatpush1.msra.mxu0 0.0
          %2646 = vmatprep.subr.mxu0 0.0
          %2647 = vmatpush1.msra.mxu0 0.0
          %2648 = vmatprep.subr.mxu0 0.0
          %2649 = vmatpush1.msra.mxu0 0.0
          %2650 = vmatprep.subr.mxu0 0.0
          %2651 = vmatpush1.msra.mxu0 0.0
          %2652 = vmatprep.subr.mxu0 0.0
          %2653 = vmatpush1.msra.mxu0 0.0
          %2654 = vmatprep.subr.mxu0 0.0
          %2655 = vmatpush1.msra.mxu0 0.0
          %2656 = vmatprep.subr.mxu0 0.0
          %2657 = vmatpush1.msra.mxu0 0.0
          %2658 = vmatprep.subr.mxu0 0.0
          %2659 = vmatpush1.msra.mxu0 0.0
          %2660 = vmatprep.subr.mxu0 0.0
          %2661 = vmatpush1.msra.mxu0 0.0
          %2662 = vmatprep.subr.mxu0 0.0
          %2663 = vmatpush1.msra.mxu0 0.0
          %2664 = vmatprep.subr.mxu0 0.0
          %2665 = vmatpush1.msra.mxu0 0.0
          %2666 = vmatprep.subr.mxu0 0.0
          %2667 = vmatpush1.msra.mxu0 0.0
          %2668 = vmatprep.mubr.f32.mxu0 0.0
          %2669 = vmatmul.mubr.f32.gmra.mrb[0].mxu0 %v2493
          %v2670 = vpop.f32.mrb[0].mxu0
          %v2671 = vadd.f32 %v2602, %v2670
          %v2672 = vpop.f32.mrb[0].mxu0
          %2673 = vdwg.mxu0
          %v2674 = vsel %vm2579, %v2671, -inf
          %v2675 = vrot.slane %v2674, 4
          %v2676 = vmax.f32 %v2674, %v2675
          %v2677 = vrot.slane %v2676, 2
          %v2678 = vmax.f32 %v2676, %v2677
          %v2679 = vrot.slane %v2678, 1
          %v2680 = vmax.f32 %v2678, %v2679
          %vm2681 = vcmask 24576
          %2682 = vst.msk [vmem:[#allocation11] sm:$0x1] %vm2681, %v2680
        $region76: #{tpu_custom_call.1} parent=59 // pred_fallthru
          _
        %s2683 = sand.u32 %s30, 1
        %s2684 = scalar_lea.sflag [#allocation7], %s2683
        %s2685 = sand.u32 %s295, 1
        %s2686 = smul.addr %s2685, 8
        %s2687 = scalar_lea.vmem [#allocation13], %s2686
        // Predicated region
        $region77: #{tpu_custom_call.1} parent=59 // pred_check
          %p2688 = pneg %p258
        $region78: #{tpu_custom_call.1} parent=59 // pred_check_branch
          %2690 = sbr.rel (%p2688) target = $region80
        $region79: #{tpu_custom_call.1} parent=59 // pred_region
          %s2692 = ssub.s32 32, 32
          %2693 = vsyncadd [#allocation7], %s2692
          %s2695 = sshll.u32 [#allocation10], 4
          %s2696 = int_to_ptr.vmem [resolvable:$true] %s2695
          %2698 = dma.vmem_to_hbm [thread:$0]  %s2696, 32, %s10, [#allocation7]
        $region80: #{tpu_custom_call.1} parent=59 // pred_fallthru
          _
        // Predicated region
        $region81: #{tpu_custom_call.1} parent=59 // pred_check
          %p2699 = pneg %p279
        $region82: #{tpu_custom_call.1} parent=59 // pred_check_branch
          %2701 = sbr.rel (%p2699) target = $region84
        $region83: #{tpu_custom_call.1} parent=59 // pred_region
          %s2703 = ssub.s32 16, 16
          %2704 = vsyncadd [#allocation12], %s2703
          %s2706 = sshll.u32 [#allocation11], 4
          %s2707 = int_to_ptr.vmem [resolvable:$true] %s2706
          %2709 = dma.vmem_to_hbm [thread:$0]  %s2707, 16, %s11, [#allocation12]
        $region84: #{tpu_custom_call.1} parent=59 // pred_fallthru
          _
        // Predicated region
        $region85: #{tpu_custom_call.1} parent=59 // pred_check
          %p2710 = pneg %p305
        $region86: #{tpu_custom_call.1} parent=59 // pred_check_branch
          %2712 = sbr.rel (%p2710) target = $region88
        $region87: #{tpu_custom_call.1} parent=59 // pred_region
          %s2713 = smul.u32 4, %s30
          %s2715 = ssub.s32 128, 128
          %2716 = vsyncadd %s2684, %s2715
          %s2717 = smul.addr %s2713, 32
          %s2718 = scalar_lea.hbm %s12, %s2717
          %s2720 = sshll.u32 %s2687, 4
          %s2721 = int_to_ptr.vmem [resolvable:$true] %s2720
          %2723 = dma.vmem_to_hbm [thread:$0]  %s2721, 128, %s2718, %s2684
        $region88: #{tpu_custom_call.1} parent=59 // pred_fallthru
          _
        // Predicated region
        $region89: #{tpu_custom_call.1} parent=59 // pred_check
          %p2724 = pneg %p258
        $region90: #{tpu_custom_call.1} parent=59 // pred_check_branch
          %2726 = sbr.rel (%p2724) target = $region92
        $region91: #{tpu_custom_call.1} parent=59 // pred_region
          %2727 = dma.done [#allocation7], 32
        $region92: #{tpu_custom_call.1} parent=59 // pred_fallthru
          _
        // Predicated region
        $region93: #{tpu_custom_call.1} parent=59 // pred_check
          %p2728 = pneg %p279
        $region94: #{tpu_custom_call.1} parent=59 // pred_check_branch
          %2730 = sbr.rel (%p2728) target = $region96
        $region95: #{tpu_custom_call.1} parent=59 // pred_region
          %2731 = dma.done [#allocation12], 16
        $region96: #{tpu_custom_call.1} parent=59 // pred_fallthru
          _
      $region60: #{tpu_custom_call.1} parent=5 // pred_fallthru
        _
      %p2732 = scmp.le.s32.totalorder 2, %s25
      // Predicated region
      $region97: #{tpu_custom_call.1} parent=5 // pred_check
        %p2733 = pneg %p2732
      $region98: #{tpu_custom_call.1} parent=5 // pred_check_branch
        %2735 = sbr.rel (%p2733) target = $region100
      $region99: #{tpu_custom_call.1} parent=5 // pred_region
        %s2736 = ssub.s32 %s25, 2
        // Predicated region
        $region101: #{tpu_custom_call.1} parent=99 // pred_check
          %p2737 = pneg %p311
        $region102: #{tpu_custom_call.1} parent=99 // pred_check_branch
          %2739 = sbr.rel (%p2737) target = $region104
        $region103: #{tpu_custom_call.1} parent=99 // pred_region
          %s2740 = sand.u32 %s31, 1
          %s2741 = scalar_lea.sflag [#allocation7], %s2740
          %s2742 = sand.u32 %s296, 1
          %s2743 = smul.addr %s2742, 8
          %s2744 = scalar_lea.vmem [#allocation13], %s2743
          %2745 = dma.done %s2741, 128
        $region104: #{tpu_custom_call.1} parent=99 // pred_fallthru
          _
      $region100: #{tpu_custom_call.1} parent=5 // pred_fallthru
        _
    $region6: #{tpu_custom_call.1} parent=1 // loop_footer
      %s29 = sadd.s32 1, %s25
    $region7: #{tpu_custom_call.1} parent=1 // loop_footer_branch
      %24 = sbr.rel target = $region3
    $region8: #{tpu_custom_call.1} parent=1 // loop_exit
      _
    %2746 = vsyncpa [#allocation6], 1
    %s2747 = scalar_lea.sflag [#allocation6], 1
    %2748 = vsyncpa %s2747, 1
    %2749 = vsyncpa [#allocation9], 1
    %2750 = vsyncpa [#allocation7], 1
    %s2751 = scalar_lea.sflag [#allocation7], 1
    %2752 = vsyncpa %s2751, 1
    %2753 = vsyncpa [#allocation12], 1

</llo_original>
